<compile_context>
chip_gen: v7x
topology: tpu7x:2x2x1
jax: 0.10.0
libtpu: 0.0.40
codegen_flags: <defaults>
</compile_context>

<pallas_src>
import functools

import jax
import jax.numpy as jnp
from jax import lax
from jax.experimental import pallas as pl
from jax.experimental.pallas import tpu as pltpu


def _round_up(x, m):
    return ((x + m - 1) // m) * m


def _choose_ray_tiling(R, ray_tile):
    """Pick (TR, R_pad). Prefer a divisor of R (no HBM pad copy); fall back
    to edge padding only when no reasonably sized divisor exists."""
    target = max(8, (min(ray_tile, max(R, 8)) // 8) * 8)
    if R % 8 == 0:
        floor = min(32, target)
        for cand in range(target, floor - 1, -8):
            if R % cand == 0:
                return cand, R                       # no padding needed
    TR = target if R >= target else _round_up(R, 8)
    return TR, _round_up(R, TR)


def _weighted_sampler_kernel(z_ref, w_ref, u_ref, rd_ref, ro_ref,
                             pts_ref, zout_ref, *, eps, mp):
    # Block shapes (TR = ray tile):
    #   z_ref   : (TR, S)        coarse z values (shared across batch)
    #   w_ref   : (1, TR, S)     weights
    #   u_ref   : (1, TR, N)     uniform samples, sorted DESCENDING per ray
    #   rd_ref  : (1, TR, 3)     ray directions
    #   ro_ref  : (1, TR, 3)     ray origins
    #   pts_ref : (1, 3, TR, M)  output points (channel-major, lane dense)
    #   zout_ref: (1, TR, M)     output sorted z values
    z = z_ref[...]
    w = w_ref[0]
    u = u_ref[0]
    rd = rd_ref[0]
    ro = ro_ref[0]

    R, S = z.shape
    N = u.shape[-1]
    nb = S - 1                    # number of bins == number of cdf entries
    M = S + N
    f32 = z.dtype

    # ---------------- sample_pdf: pdf & cdf ----------------
    wmid = w[:, 1:-1] + eps                                   # (R, S-2)
    pdf = wmid / jnp.sum(wmid, axis=-1, keepdims=True)        # (R, S-2)

    # Inclusive prefix sum (Hillis-Steele) on a 128-lane-padded tile so the
    # per-stage shift is a pltpu.roll (XLU) instead of a materialized concat.
    ns = S - 2
    nsp = _round_up(ns, 128)
    if nsp != ns:
        csum = jnp.concatenate([pdf, jnp.zeros((R, nsp - ns), f32)], axis=-1)
    else:
        csum = pdf
    lane_s = lax.broadcasted_iota(jnp.int32, (R, nsp), 1)
    d = 1
    while d < ns:
        csum = csum + jnp.where(lane_s >= d,
                                pltpu.roll(csum, d, axis=1), 0.0)
        d *= 2
    cdf = jnp.concatenate([jnp.zeros((R, 1), f32), csum[:, :ns]], axis=-1)  # (R, nb)

    # bin midpoints as a full tile
    bins = (z[:, 1:] + z[:, :-1]) * 0.5                               # (R, nb)

    # shift-left-by-one copies, last column clamped: entry k holds the value
    # at index min(k+1, nb-1), i.e. the "above" entry for a "below" index k.
    cdf_n = jnp.concatenate([cdf[:, 1:], cdf[:, nb - 1:nb]], axis=-1)
    bins_n = jnp.concatenate([bins[:, 1:], bins[:, nb - 1:nb]], axis=-1)

    # per-bin slope: (bins_above - bins_below) / clamp(cdf_above - cdf_below);
    # computed once per bin so the gather loop needs no per-sample divide.
    dcdf = cdf_n - cdf
    ratio = (bins_n - bins) / jnp.where(dcdf < 1e-5, 1.0, dcdf)       # (R, nb)

    # ------------- fused searchsorted(side='right') + gather -------------
    # below = last k with cdf[k] <= u.  k = 0 always qualifies (cdf[:,0] == 0
    # and u >= 0) so it is folded into the accumulator init; 3 accumulators.
    # TODO(synk): for very large S, stage cdf/bins/ratio in VMEM scratch and
    # use a bounded fori_loop (dynamic lane slice) instead of a static unroll.
    cdf_b = jnp.zeros((R, N), f32)                        # cdf[:, 0] == 0
    bins_b = jnp.broadcast_to(bins[:, 0:1], (R, N))
    ratio_b = jnp.broadcast_to(ratio[:, 0:1], (R, N))
    for k in range(1, nb):                                # O(S) static loop
        sel = cdf[:, k:k + 1] <= u                        # (R, N)
        cdf_b = jnp.where(sel, cdf[:, k:k + 1], cdf_b)
        bins_b = jnp.where(sel, bins[:, k:k + 1], bins_b)
        ratio_b = jnp.where(sel, ratio[:, k:k + 1], ratio_b)
    z_samples = bins_b + (u - cdf_b) * ratio_b   # (R, N), descending (u desc)

    # ------------- merge two sorted streams: bitonic half-cleaner -------------
    # x = [z ascending | +BIG pad | z_samples descending] is bitonic; a
    # log2(mp)-stage half-cleaner network sorts it ascending.  Pads sort to
    # the tail and are sliced off.  For lane m with bit s clear the partner is
    # m+s (never wraps), for bit s set it is m-s (never wraps), so rotations
    # never contribute wrap values to the selected lanes.
    big = jnp.finfo(f32).max        # note: +inf in z/weights would break this
    pad = mp - M
    parts = [z]
    if pad:
        parts.append(jnp.full((R, pad), big, f32))
    parts.append(z_samples)
    x = jnp.concatenate(parts, axis=-1)                              # (R, mp)

    lane = lax.broadcasted_iota(jnp.int32, (R, mp), 1)
    use_roll = (mp % 128 == 0)      # full-lane tiles -> XLU rotations
    s = mp // 2
    while s >= 1:
        if use_roll:
            x_plus = pltpu.roll(x, mp - s, axis=1)                   # x[m + s]
            x_minus = pltpu.roll(x, s, axis=1)                       # x[m - s]
        else:       # tiny-M fallback: static slice + concat
            x_plus = jnp.concatenate([x[:, s:], x[:, :s]], axis=-1)
            x_minus = jnp.concatenate([x[:, mp - s:], x[:, :mp - s]], axis=-1)
        take_lo = jnp.bitwise_and(lane, s) == 0
        x = jnp.where(take_lo, jnp.minimum(x, x_plus), jnp.maximum(x, x_minus))
        s //= 2
    z_sorted = x[:, :M]                                              # (R, M)

    zout_ref[0] = z_sorted

    # ---------------- points ----------------
    # pts[c, r, m] = ro[r, c] + rd[r, c] * z_sorted[r, m]   (lane-dense stores)
    for c in range(3):
        pts_ref[0, c] = ro[:, c:c + 1] + rd[:, c:c + 1] * z_sorted


def weighted_ray_sampler(rays_d, rays_o, z_vals, weights, *, near, far,
                         n_sample, eps=1e-5, is_deterministic=False, key=None,
                         ray_tile=256, channel_major_points=False,
                         vmem_limit_bytes=None):
    """JAX/Pallas equivalent of WeightedRaySampler(near, far, n_sample).forward.

    ray_tile guidance: 256 (default) is safe everywhere; 512-1024 on v6e and
    up to ~512 on v7x for large R (pass vmem_limit_bytes if raising it past
    the scoped VMEM default).
    """
    del near, far  # stored but unused by the forward pass (as in the reference)
    B, R, _ = rays_d.shape
    S = z_vals.shape[-1]
    z2 = jnp.asarray(z_vals, jnp.float32).reshape(-1, S)
    # z_vals must be (n_rays, n_samples_per_ray), shared across the batch.
    assert z2.shape[0] == R, "z_vals must have shape (n_rays, n_samples_per_ray)"
    N = int(n_sample)
    # The PyTorch code's `expand(z_samples.shape)` requires n_sample == S.
    assert N == S, "WeightedRaySampler requires n_sample == n_samples_per_ray"
    M = S + N
    Mp = int(pl.next_power_of_2(M))

    # u samples (same distribution as torch.rand / torch.linspace), sorted
    # descending so the kernel's inverse-CDF output is already sorted.
    if is_deterministic:
        u = jnp.broadcast_to(jnp.linspace(0.0, 1.0, N, dtype=jnp.float32),
                             (B, R, N))
    else:
        assert key is not None
        u = jax.random.uniform(key, (B, R, N), dtype=jnp.float32)
    u = jnp.flip(jnp.sort(u, axis=-1), axis=-1)

    # ---- tile the ray axis (prefer a divisor of R; pad only as fallback) ----
    TR, R_pad = _choose_ray_tiling(R, ray_tile)

    def pad_rays(a, axis):
        if R_pad == R:
            return a
        widths = [(0, 0)] * a.ndim
        widths[axis] = (0, R_pad - R)
        return jnp.pad(a, widths, mode="edge")

    z2p = pad_rays(z2, 0)
    wp = pad_rays(jnp.asarray(weights, jnp.float32), 1)
    up = pad_rays(u, 1)
    rdp = pad_rays(jnp.asarray(rays_d, jnp.float32), 1)
    rop = pad_rays(jnp.asarray(rays_o, jnp.float32), 1)

    kernel = functools.partial(_weighted_sampler_kernel, eps=float(eps), mp=Mp)

    cp_kwargs = dict(dimension_semantics=("parallel", "parallel"))
    if vmem_limit_bytes is not None:
        cp_kwargs["vmem_limit_bytes"] = int(vmem_limit_bytes)

    # Grid: ray tiles outer, batch inner -> the batch-shared z block keeps the
    # same block index across consecutive steps and is not re-DMA'd.
    pts_t, z_out = pl.pallas_call(
        kernel,
        out_shape=(jax.ShapeDtypeStruct((B, 3, R_pad, M), jnp.float32),
                   jax.ShapeDtypeStruct((B, R_pad, M), jnp.float32)),
        grid_spec=pltpu.PrefetchScalarGridSpec(
            num_scalar_prefetch=0,
            grid=(R_pad // TR, B),
            in_specs=[
                pl.BlockSpec((TR, S), lambda r, b: (r, 0)),        # z (shared)
                pl.BlockSpec((1, TR, S), lambda r, b: (b, r, 0)),  # weights
                pl.BlockSpec((1, TR, N), lambda r, b: (b, r, 0)),  # u (desc)
                pl.BlockSpec((1, TR, 3), lambda r, b: (b, r, 0)),  # rays_d
                pl.BlockSpec((1, TR, 3), lambda r, b: (b, r, 0)),  # rays_o
            ],
            out_specs=[
                pl.BlockSpec((1, 3, TR, M), lambda r, b: (b, 0, r, 0)),
                pl.BlockSpec((1, TR, M), lambda r, b: (b, r, 0)),
            ],
        ),
        compiler_params=pltpu.CompilerParams(**cp_kwargs),
    )(z2p, wp, up, rdp, rop)

    z_out = z_out[:, :R, :]
    if channel_major_points:
        # TODO(synk): downstream consumers (fine MLP) should read this
        # channel-major (B, 3, R, M) layout directly and skip the transpose.
        pts = pts_t[:, :, :R, :]
    else:
        pts = jnp.transpose(pts_t[:, :, :R, :], (0, 2, 3, 1))  # (B, R, M, 3)
    return pts, z_out


# ------------------------- pure-JAX reference -------------------------
def _reference(rays_d, rays_o, z_vals, weights, u, eps):
    z = z_vals.reshape(-1, z_vals.shape[-1])
    bins = (z[:, 1:] + z[:, :-1]) / 2
    w = weights[..., 1:-1] + eps
    pdf = w / jnp.sum(w, axis=-1, keepdims=True)
    cdf = jnp.cumsum(pdf, axis=-1)
    cdf = jnp.concatenate([jnp.zeros_like(cdf[..., :1]), cdf], axis=-1)
    nb = cdf.shape[-1]

    inds = jax.vmap(jax.vmap(
        lambda c, uu: jnp.searchsorted(c, uu, side='right')))(cdf, u)
    below = jnp.maximum(inds - 1, 0)
    above = jnp.minimum(inds, nb - 1)
    cdf_b = jnp.take_along_axis(cdf, below, axis=-1)
    cdf_a = jnp.take_along_axis(cdf, above, axis=-1)
    bins_bc = jnp.broadcast_to(bins, u.shape[:1] + bins.shape)
    bins_b = jnp.take_along_axis(bins_bc, below, axis=-1)
    bins_a = jnp.take_along_axis(bins_bc, above, axis=-1)
    denom = cdf_a - cdf_b
    denom = jnp.where(denom < 1e-5, jnp.ones_like(denom), denom)
    t = (u - cdf_b) / denom
    z_samples = bins_b + t * (bins_a - bins_b)

    z_all = jnp.concatenate(
        [jnp.broadcast_to(z[None], z_samples.shape[:-1] + (z.shape[-1],)),
         z_samples], axis=-1)
    z_all = jnp.sort(z_all, axis=-1)
    pts = rays_o[..., None, :] + rays_d[..., None, :] * z_all[..., :, None]
    return pts, z_all


if __name__ == "__main__":
    key = jax.random.PRNGKey(0)
    k1, k2, k3, k4, k5, k6 = jax.random.split(key, 6)

    near, far, eps = 0.1, 5.0, 1e-5

    # ---- Main config: S = N = 64 -> M = 128 (lane-dense, pltpu.roll path),
    #      R = 16 is a divisor tile (no padding). ----
    B, R, S = 2, 16, 64
    N = S
    rays_d = jax.random.normal(k1, (B, R, 3), dtype=jnp.float32)
    rays_o = jax.random.normal(k2, (B, R, 3), dtype=jnp.float32)
    z_vals = jnp.broadcast_to(
        jnp.linspace(near, far, S, dtype=jnp.float32), (R, S))
    weights = jax.random.uniform(k3, (B, R, S), dtype=jnp.float32)

    # Stochastic path.
    pts, z_out = weighted_ray_sampler(
        rays_d, rays_o, z_vals, weights,
        near=near, far=far, n_sample=N, eps=eps,
        is_deterministic=False, key=k4)
    jax.block_until_ready((pts, z_out))

    u = jax.random.uniform(k4, (B, R, N), dtype=jnp.float32)
    pts_ref, z_ref = _reference(rays_d, rays_o, z_vals, weights, u, eps)
    assert pts.shape == (B, R, S + N, 3)
    assert z_out.shape == (B, R, S + N)
    assert jnp.allclose(z_out, z_ref, atol=1e-4, rtol=1e-4)
    assert jnp.allclose(pts, pts_ref, atol=1e-4, rtol=1e-4)

    # Deterministic path (linspace u), same shapes.
    pts_d, z_d = weighted_ray_sampler(
        rays_d, rays_o, z_vals, weights,
        near=near, far=far, n_sample=N, eps=eps, is_deterministic=True)
    jax.block_until_ready((pts_d, z_d))
    u_lin = jnp.broadcast_to(
        jnp.linspace(0.0, 1.0, N, dtype=jnp.float32), (B, R, N))
    pts_ref_d, z_ref_d = _reference(rays_d, rays_o, z_vals, weights, u_lin, eps)
    assert jnp.allclose(z_d, z_ref_d, atol=1e-4, rtol=1e-4)
    assert jnp.allclose(pts_d, pts_ref_d, atol=1e-4, rtol=1e-4)

    # ---- Small ragged config: R = 12 (edge-pad fallback, 12 -> 16) and
    #      M = 16 < 128 (concat-based merge fallback). ----
    B2, R2, S2 = 2, 12, 8
    N2 = S2
    rays_d2 = jax.random.normal(k5, (B2, R2, 3), dtype=jnp.float32)
    rays_o2 = jax.random.normal(k6, (B2, R2, 3), dtype=jnp.float32)
    z_vals2 = jnp.broadcast_to(
        jnp.linspace(near, far, S2, dtype=jnp.float32), (R2, S2))
    weights2 = jax.random.uniform(k3, (B2, R2, S2), dtype=jnp.float32)
    pts2, z_out2 = weighted_ray_sampler(
        rays_d2, rays_o2, z_vals2, weights2,
        near=near, far=far, n_sample=N2, eps=eps,
        is_deterministic=False, key=k4, ray_tile=8)
    jax.block_until_ready((pts2, z_out2))
    u2 = jax.random.uniform(k4, (B2, R2, N2), dtype=jnp.float32)
    pts_ref2, z_ref2 = _reference(rays_d2, rays_o2, z_vals2, weights2, u2, eps)
    assert jnp.allclose(z_out2, z_ref2, atol=1e-4, rtol=1e-4)
    assert jnp.allclose(pts2, pts_ref2, atol=1e-4, rtol=1e-4)

    print("KERNEL_OK")
</pallas_src>

<mosaic_0001>
module attributes {stable_mosaic.version = 11 : i64} {
  func.func @_weighted_sampler_kernel(%arg0: i32, %arg1: i32, %arg2: memref<16x64xf32, #tpu.memory_space<vmem>>, %arg3: memref<1x16x64xf32, #tpu.memory_space<vmem>>, %arg4: memref<1x16x64xf32, #tpu.memory_space<vmem>>, %arg5: memref<1x16x3xf32, #tpu.memory_space<vmem>>, %arg6: memref<1x16x3xf32, #tpu.memory_space<vmem>>, %arg7: memref<1x3x16x128xf32, #tpu.memory_space<vmem>>, %arg8: memref<1x16x128xf32, #tpu.memory_space<vmem>>) attributes {dimension_semantics = [#tpu.dimension_semantics<parallel>, #tpu.dimension_semantics<parallel>], iteration_bounds = array<i64: 1, 2>, scalar_prefetch = 0 : i64, scratch_operands = 0 : i64, tpu.core_type = #tpu.core_type<tc>, window_params = [{transform_indices = @transform_0, window_bounds = array<i64: 16, 64>}, {transform_indices = @transform_1, window_bounds = array<i64: 1, 16, 64>}, {transform_indices = @transform_2, window_bounds = array<i64: 1, 16, 64>}, {transform_indices = @transform_3, window_bounds = array<i64: 1, 16, 3>}, {transform_indices = @transform_4, window_bounds = array<i64: 1, 16, 3>}, {transform_indices = @transform_5, window_bounds = array<i64: 1, 3, 16, 128>}, {transform_indices = @transform_6, window_bounds = array<i64: 1, 16, 128>}]} {
    %c0 = arith.constant 0 : index
    %c0_0 = arith.constant 0 : index
    %0 = vector.load %arg2[%c0, %c0_0] : memref<16x64xf32, #tpu.memory_space<vmem>>, vector<16x64xf32>
    %c0_1 = arith.constant 0 : index
    %c0_2 = arith.constant 0 : index
    %c0_3 = arith.constant 0 : index
    %1 = vector.load %arg3[%c0_1, %c0_2, %c0_3] : memref<1x16x64xf32, #tpu.memory_space<vmem>>, vector<1x16x64xf32>
    %2 = vector.shape_cast %1 : vector<1x16x64xf32> to vector<16x64xf32>
    %c0_4 = arith.constant 0 : index
    %c0_5 = arith.constant 0 : index
    %c0_6 = arith.constant 0 : index
    %3 = vector.load %arg4[%c0_4, %c0_5, %c0_6] : memref<1x16x64xf32, #tpu.memory_space<vmem>>, vector<1x16x64xf32>
    %4 = vector.shape_cast %3 : vector<1x16x64xf32> to vector<16x64xf32>
    %c0_7 = arith.constant 0 : index
    %c0_8 = arith.constant 0 : index
    %c0_9 = arith.constant 0 : index
    %5 = vector.load %arg5[%c0_7, %c0_8, %c0_9] : memref<1x16x3xf32, #tpu.memory_space<vmem>>, vector<1x16x3xf32>
    %6 = vector.shape_cast %5 : vector<1x16x3xf32> to vector<16x3xf32>
    %c0_10 = arith.constant 0 : index
    %c0_11 = arith.constant 0 : index
    %c0_12 = arith.constant 0 : index
    %7 = vector.load %arg6[%c0_10, %c0_11, %c0_12] : memref<1x16x3xf32, #tpu.memory_space<vmem>>, vector<1x16x3xf32>
    %8 = vector.shape_cast %7 : vector<1x16x3xf32> to vector<16x3xf32>
    %9 = vector.extract_strided_slice %2 {offsets = [0, 1], sizes = [16, 62], strides = [1, 1]} : vector<16x64xf32> to vector<16x62xf32>
    %cst = arith.constant 9.99999974E-6 : f32
    %10 = vector.broadcast %cst : f32 to vector<16x62xf32>
    %11 = arith.addf %9, %10 : vector<16x62xf32>
    %cst_13 = arith.constant dense<0.000000e+00> : vector<16xf32>
    %12 = vector.multi_reduction <add>, %11, %cst_13 [1] : vector<16x62xf32> to vector<16xf32>
    %13 = vector.shape_cast %12 : vector<16xf32> to vector<16x1xf32>
    %14 = vector.broadcast %13 : vector<16x1xf32> to vector<16x62xf32>
    %15 = arith.divf %11, %14 : vector<16x62xf32>
    %cst_14 = arith.constant 0.000000e+00 : f32
    %16 = vector.broadcast %cst_14 : f32 to vector<16x66xf32>
    %17 = tpu.concatenate %15, %16 in 1 : vector<16x62xf32>, vector<16x66xf32> -> vector<16x128xf32>
    %18 = tpu.iota {dimensions = array<i32: 1>} : vector<16x128xi32>
    %c1_i32 = arith.constant 1 : i32
    %19 = vector.broadcast %c1_i32 : i32 to vector<16x128xi32>
    %20 = arith.cmpi sge, %18, %19 : vector<16x128xi32>
    %c1_i32_15 = arith.constant 1 : i32
    %21 = tpu.dynamic_rotate %17 by %c1_i32_15 dim 1 : vector<16x128xf32>, i32 -> vector<16x128xf32>
    %cst_16 = arith.constant 0.000000e+00 : f32
    %22 = vector.broadcast %cst_16 : f32 to vector<16x128xf32>
    %23 = arith.select %20, %21, %22 : vector<16x128xi1>, vector<16x128xf32>
    %24 = arith.addf %17, %23 : vector<16x128xf32>
    %c2_i32 = arith.constant 2 : i32
    %25 = vector.broadcast %c2_i32 : i32 to vector<16x128xi32>
    %26 = arith.cmpi sge, %18, %25 : vector<16x128xi32>
    %c2_i32_17 = arith.constant 2 : i32
    %27 = tpu.dynamic_rotate %24 by %c2_i32_17 dim 1 : vector<16x128xf32>, i32 -> vector<16x128xf32>
    %cst_18 = arith.constant 0.000000e+00 : f32
    %28 = vector.broadcast %cst_18 : f32 to vector<16x128xf32>
    %29 = arith.select %26, %27, %28 : vector<16x128xi1>, vector<16x128xf32>
    %30 = arith.addf %24, %29 : vector<16x128xf32>
    %c4_i32 = arith.constant 4 : i32
    %31 = vector.broadcast %c4_i32 : i32 to vector<16x128xi32>
    %32 = arith.cmpi sge, %18, %31 : vector<16x128xi32>
    %c4_i32_19 = arith.constant 4 : i32
    %33 = tpu.dynamic_rotate %30 by %c4_i32_19 dim 1 : vector<16x128xf32>, i32 -> vector<16x128xf32>
    %cst_20 = arith.constant 0.000000e+00 : f32
    %34 = vector.broadcast %cst_20 : f32 to vector<16x128xf32>
    %35 = arith.select %32, %33, %34 : vector<16x128xi1>, vector<16x128xf32>
    %36 = arith.addf %30, %35 : vector<16x128xf32>
    %c8_i32 = arith.constant 8 : i32
    %37 = vector.broadcast %c8_i32 : i32 to vector<16x128xi32>
    %38 = arith.cmpi sge, %18, %37 : vector<16x128xi32>
    %c8_i32_21 = arith.constant 8 : i32
    %39 = tpu.dynamic_rotate %36 by %c8_i32_21 dim 1 : vector<16x128xf32>, i32 -> vector<16x128xf32>
    %cst_22 = arith.constant 0.000000e+00 : f32
    %40 = vector.broadcast %cst_22 : f32 to vector<16x128xf32>
    %41 = arith.select %38, %39, %40 : vector<16x128xi1>, vector<16x128xf32>
    %42 = arith.addf %36, %41 : vector<16x128xf32>
    %c16_i32 = arith.constant 16 : i32
    %43 = vector.broadcast %c16_i32 : i32 to vector<16x128xi32>
    %44 = arith.cmpi sge, %18, %43 : vector<16x128xi32>
    %c16_i32_23 = arith.constant 16 : i32
    %45 = tpu.dynamic_rotate %42 by %c16_i32_23 dim 1 : vector<16x128xf32>, i32 -> vector<16x128xf32>
    %cst_24 = arith.constant 0.000000e+00 : f32
    %46 = vector.broadcast %cst_24 : f32 to vector<16x128xf32>
    %47 = arith.select %44, %45, %46 : vector<16x128xi1>, vector<16x128xf32>
    %48 = arith.addf %42, %47 : vector<16x128xf32>
    %c32_i32 = arith.constant 32 : i32
    %49 = vector.broadcast %c32_i32 : i32 to vector<16x128xi32>
    %50 = arith.cmpi sge, %18, %49 : vector<16x128xi32>
    %c32_i32_25 = arith.constant 32 : i32
    %51 = tpu.dynamic_rotate %48 by %c32_i32_25 dim 1 : vector<16x128xf32>, i32 -> vector<16x128xf32>
    %cst_26 = arith.constant 0.000000e+00 : f32
    %52 = vector.broadcast %cst_26 : f32 to vector<16x128xf32>
    %53 = arith.select %50, %51, %52 : vector<16x128xi1>, vector<16x128xf32>
    %54 = arith.addf %48, %53 : vector<16x128xf32>
    %cst_27 = arith.constant 0.000000e+00 : f32
    %55 = vector.broadcast %cst_27 : f32 to vector<16x1xf32>
    %56 = vector.extract_strided_slice %54 {offsets = [0, 0], sizes = [16, 62], strides = [1, 1]} : vector<16x128xf32> to vector<16x62xf32>
    %57 = tpu.concatenate %55, %56 in 1 : vector<16x1xf32>, vector<16x62xf32> -> vector<16x63xf32>
    %58 = vector.extract_strided_slice %0 {offsets = [0, 1], sizes = [16, 63], strides = [1, 1]} : vector<16x64xf32> to vector<16x63xf32>
    %59 = vector.extract_strided_slice %0 {offsets = [0, 0], sizes = [16, 63], strides = [1, 1]} : vector<16x64xf32> to vector<16x63xf32>
    %60 = arith.addf %58, %59 : vector<16x63xf32>
    %cst_28 = arith.constant 5.000000e-01 : f32
    %61 = vector.broadcast %cst_28 : f32 to vector<16x63xf32>
    %62 = arith.mulf %60, %61 : vector<16x63xf32>
    %63 = vector.extract_strided_slice %57 {offsets = [0, 1], sizes = [16, 62], strides = [1, 1]} : vector<16x63xf32> to vector<16x62xf32>
    %64 = vector.extract_strided_slice %57 {offsets = [0, 62], sizes = [16, 1], strides = [1, 1]} : vector<16x63xf32> to vector<16x1xf32>
    %65 = tpu.concatenate %63, %64 in 1 : vector<16x62xf32>, vector<16x1xf32> -> vector<16x63xf32>
    %66 = vector.extract_strided_slice %62 {offsets = [0, 1], sizes = [16, 62], strides = [1, 1]} : vector<16x63xf32> to vector<16x62xf32>
    %67 = vector.extract_strided_slice %62 {offsets = [0, 62], sizes = [16, 1], strides = [1, 1]} : vector<16x63xf32> to vector<16x1xf32>
    %68 = tpu.concatenate %66, %67 in 1 : vector<16x62xf32>, vector<16x1xf32> -> vector<16x63xf32>
    %69 = arith.subf %65, %57 : vector<16x63xf32>
    %70 = arith.subf %68, %62 : vector<16x63xf32>
    %cst_29 = arith.constant 9.99999974E-6 : f32
    %71 = vector.broadcast %cst_29 : f32 to vector<16x63xf32>
    %72 = arith.cmpf olt, %69, %71 : vector<16x63xf32>
    %cst_30 = arith.constant 1.000000e+00 : f32
    %73 = vector.broadcast %cst_30 : f32 to vector<16x63xf32>
    %74 = arith.select %72, %73, %69 : vector<16x63xi1>, vector<16x63xf32>
    %75 = arith.divf %70, %74 : vector<16x63xf32>
    %cst_31 = arith.constant 0.000000e+00 : f32
    %76 = vector.broadcast %cst_31 : f32 to vector<16x64xf32>
    %77 = vector.extract_strided_slice %62 {offsets = [0, 0], sizes = [16, 1], strides = [1, 1]} : vector<16x63xf32> to vector<16x1xf32>
    %78 = vector.shape_cast %77 : vector<16x1xf32> to vector<16x1xf32>
    %79 = vector.broadcast %78 : vector<16x1xf32> to vector<16x64xf32>
    %80 = vector.extract_strided_slice %75 {offsets = [0, 0], sizes = [16, 1], strides = [1, 1]} : vector<16x63xf32> to vector<16x1xf32>
    %81 = vector.shape_cast %80 : vector<16x1xf32> to vector<16x1xf32>
    %82 = vector.broadcast %81 : vector<16x1xf32> to vector<16x64xf32>
    %83 = vector.extract_strided_slice %57 {offsets = [0, 1], sizes = [16, 1], strides = [1, 1]} : vector<16x63xf32> to vector<16x1xf32>
    %84 = vector.broadcast %83 : vector<16x1xf32> to vector<16x64xf32>
    %85 = arith.cmpf ole, %84, %4 : vector<16x64xf32>
    %86 = vector.extract_strided_slice %57 {offsets = [0, 1], sizes = [16, 1], strides = [1, 1]} : vector<16x63xf32> to vector<16x1xf32>
    %87 = vector.shape_cast %86 : vector<16x1xf32> to vector<16x1xf32>
    %88 = vector.broadcast %87 : vector<16x1xf32> to vector<16x64xf32>
    %89 = arith.select %85, %88, %76 : vector<16x64xi1>, vector<16x64xf32>
    %90 = vector.extract_strided_slice %62 {offsets = [0, 1], sizes = [16, 1], strides = [1, 1]} : vector<16x63xf32> to vector<16x1xf32>
    %91 = vector.shape_cast %90 : vector<16x1xf32> to vector<16x1xf32>
    %92 = vector.broadcast %91 : vector<16x1xf32> to vector<16x64xf32>
    %93 = arith.select %85, %92, %79 : vector<16x64xi1>, vector<16x64xf32>
    %94 = vector.extract_strided_slice %75 {offsets = [0, 1], sizes = [16, 1], strides = [1, 1]} : vector<16x63xf32> to vector<16x1xf32>
    %95 = vector.shape_cast %94 : vector<16x1xf32> to vector<16x1xf32>
    %96 = vector.broadcast %95 : vector<16x1xf32> to vector<16x64xf32>
    %97 = arith.select %85, %96, %82 : vector<16x64xi1>, vector<16x64xf32>
    %98 = vector.extract_strided_slice %57 {offsets = [0, 2], sizes = [16, 1], strides = [1, 1]} : vector<16x63xf32> to vector<16x1xf32>
    %99 = vector.broadcast %98 : vector<16x1xf32> to vector<16x64xf32>
    %100 = arith.cmpf ole, %99, %4 : vector<16x64xf32>
    %101 = vector.extract_strided_slice %57 {offsets = [0, 2], sizes = [16, 1], strides = [1, 1]} : vector<16x63xf32> to vector<16x1xf32>
    %102 = vector.shape_cast %101 : vector<16x1xf32> to vector<16x1xf32>
    %103 = vector.broadcast %102 : vector<16x1xf32> to vector<16x64xf32>
    %104 = arith.select %100, %103, %89 : vector<16x64xi1>, vector<16x64xf32>
    %105 = vector.extract_strided_slice %62 {offsets = [0, 2], sizes = [16, 1], strides = [1, 1]} : vector<16x63xf32> to vector<16x1xf32>
    %106 = vector.shape_cast %105 : vector<16x1xf32> to vector<16x1xf32>
    %107 = vector.broadcast %106 : vector<16x1xf32> to vector<16x64xf32>
    %108 = arith.select %100, %107, %93 : vector<16x64xi1>, vector<16x64xf32>
    %109 = vector.extract_strided_slice %75 {offsets = [0, 2], sizes = [16, 1], strides = [1, 1]} : vector<16x63xf32> to vector<16x1xf32>
    %110 = vector.shape_cast %109 : vector<16x1xf32> to vector<16x1xf32>
    %111 = vector.broadcast %110 : vector<16x1xf32> to vector<16x64xf32>
    %112 = arith.select %100, %111, %97 : vector<16x64xi1>, vector<16x64xf32>
    %113 = vector.extract_strided_slice %57 {offsets = [0, 3], sizes = [16, 1], strides = [1, 1]} : vector<16x63xf32> to vector<16x1xf32>
    %114 = vector.broadcast %113 : vector<16x1xf32> to vector<16x64xf32>
    %115 = arith.cmpf ole, %114, %4 : vector<16x64xf32>
    %116 = vector.extract_strided_slice %57 {offsets = [0, 3], sizes = [16, 1], strides = [1, 1]} : vector<16x63xf32> to vector<16x1xf32>
    %117 = vector.shape_cast %116 : vector<16x1xf32> to vector<16x1xf32>
    %118 = vector.broadcast %117 : vector<16x1xf32> to vector<16x64xf32>
    %119 = arith.select %115, %118, %104 : vector<16x64xi1>, vector<16x64xf32>
    %120 = vector.extract_strided_slice %62 {offsets = [0, 3], sizes = [16, 1], strides = [1, 1]} : vector<16x63xf32> to vector<16x1xf32>
    %121 = vector.shape_cast %120 : vector<16x1xf32> to vector<16x1xf32>
    %122 = vector.broadcast %121 : vector<16x1xf32> to vector<16x64xf32>
    %123 = arith.select %115, %122, %108 : vector<16x64xi1>, vector<16x64xf32>
    %124 = vector.extract_strided_slice %75 {offsets = [0, 3], sizes = [16, 1], strides = [1, 1]} : vector<16x63xf32> to vector<16x1xf32>
    %125 = vector.shape_cast %124 : vector<16x1xf32> to vector<16x1xf32>
    %126 = vector.broadcast %125 : vector<16x1xf32> to vector<16x64xf32>
    %127 = arith.select %115, %126, %112 : vector<16x64xi1>, vector<16x64xf32>
    %128 = vector.extract_strided_slice %57 {offsets = [0, 4], sizes = [16, 1], strides = [1, 1]} : vector<16x63xf32> to vector<16x1xf32>
    %129 = vector.broadcast %128 : vector<16x1xf32> to vector<16x64xf32>
    %130 = arith.cmpf ole, %129, %4 : vector<16x64xf32>
    %131 = vector.extract_strided_slice %57 {offsets = [0, 4], sizes = [16, 1], strides = [1, 1]} : vector<16x63xf32> to vector<16x1xf32>
    %132 = vector.shape_cast %131 : vector<16x1xf32> to vector<16x1xf32>
    %133 = vector.broadcast %132 : vector<16x1xf32> to vector<16x64xf32>
    %134 = arith.select %130, %133, %119 : vector<16x64xi1>, vector<16x64xf32>
    %135 = vector.extract_strided_slice %62 {offsets = [0, 4], sizes = [16, 1], strides = [1, 1]} : vector<16x63xf32> to vector<16x1xf32>
    %136 = vector.shape_cast %135 : vector<16x1xf32> to vector<16x1xf32>
    %137 = vector.broadcast %136 : vector<16x1xf32> to vector<16x64xf32>
    %138 = arith.select %130, %137, %123 : vector<16x64xi1>, vector<16x64xf32>
    %139 = vector.extract_strided_slice %75 {offsets = [0, 4], sizes = [16, 1], strides = [1, 1]} : vector<16x63xf32> to vector<16x1xf32>
    %140 = vector.shape_cast %139 : vector<16x1xf32> to vector<16x1xf32>
    %141 = vector.broadcast %140 : vector<16x1xf32> to vector<16x64xf32>
    %142 = arith.select %130, %141, %127 : vector<16x64xi1>, vector<16x64xf32>
    %143 = vector.extract_strided_slice %57 {offsets = [0, 5], sizes = [16, 1], strides = [1, 1]} : vector<16x63xf32> to vector<16x1xf32>
    %144 = vector.broadcast %143 : vector<16x1xf32> to vector<16x64xf32>
    %145 = arith.cmpf ole, %144, %4 : vector<16x64xf32>
    %146 = vector.extract_strided_slice %57 {offsets = [0, 5], sizes = [16, 1], strides = [1, 1]} : vector<16x63xf32> to vector<16x1xf32>
    %147 = vector.shape_cast %146 : vector<16x1xf32> to vector<16x1xf32>
    %148 = vector.broadcast %147 : vector<16x1xf32> to vector<16x64xf32>
    %149 = arith.select %145, %148, %134 : vector<16x64xi1>, vector<16x64xf32>
    %150 = vector.extract_strided_slice %62 {offsets = [0, 5], sizes = [16, 1], strides = [1, 1]} : vector<16x63xf32> to vector<16x1xf32>
    %151 = vector.shape_cast %150 : vector<16x1xf32> to vector<16x1xf32>
    %152 = vector.broadcast %151 : vector<16x1xf32> to vector<16x64xf32>
    %153 = arith.select %145, %152, %138 : vector<16x64xi1>, vector<16x64xf32>
    %154 = vector.extract_strided_slice %75 {offsets = [0, 5], sizes = [16, 1], strides = [1, 1]} : vector<16x63xf32> to vector<16x1xf32>
    %155 = vector.shape_cast %154 : vector<16x1xf32> to vector<16x1xf32>
    %156 = vector.broadcast %155 : vector<16x1xf32> to vector<16x64xf32>
    %157 = arith.select %145, %156, %142 : vector<16x64xi1>, vector<16x64xf32>
    %158 = vector.extract_strided_slice %57 {offsets = [0, 6], sizes = [16, 1], strides = [1, 1]} : vector<16x63xf32> to vector<16x1xf32>
    %159 = vector.broadcast %158 : vector<16x1xf32> to vector<16x64xf32>
    %160 = arith.cmpf ole, %159, %4 : vector<16x64xf32>
    %161 = vector.extract_strided_slice %57 {offsets = [0, 6], sizes = [16, 1], strides = [1, 1]} : vector<16x63xf32> to vector<16x1xf32>
    %162 = vector.shape_cast %161 : vector<16x1xf32> to vector<16x1xf32>
    %163 = vector.broadcast %162 : vector<16x1xf32> to vector<16x64xf32>
    %164 = arith.select %160, %163, %149 : vector<16x64xi1>, vector<16x64xf32>
    %165 = vector.extract_strided_slice %62 {offsets = [0, 6], sizes = [16, 1], strides = [1, 1]} : vector<16x63xf32> to vector<16x1xf32>
    %166 = vector.shape_cast %165 : vector<16x1xf32> to vector<16x1xf32>
    %167 = vector.broadcast %166 : vector<16x1xf32> to vector<16x64xf32>
    %168 = arith.select %160, %167, %153 : vector<16x64xi1>, vector<16x64xf32>
    %169 = vector.extract_strided_slice %75 {offsets = [0, 6], sizes = [16, 1], strides = [1, 1]} : vector<16x63xf32> to vector<16x1xf32>
    %170 = vector.shape_cast %169 : vector<16x1xf32> to vector<16x1xf32>
    %171 = vector.broadcast %170 : vector<16x1xf32> to vector<16x64xf32>
    %172 = arith.select %160, %171, %157 : vector<16x64xi1>, vector<16x64xf32>
    %173 = vector.extract_strided_slice %57 {offsets = [0, 7], sizes = [16, 1], strides = [1, 1]} : vector<16x63xf32> to vector<16x1xf32>
    %174 = vector.broadcast %173 : vector<16x1xf32> to vector<16x64xf32>
    %175 = arith.cmpf ole, %174, %4 : vector<16x64xf32>
    %176 = vector.extract_strided_slice %57 {offsets = [0, 7], sizes = [16, 1], strides = [1, 1]} : vector<16x63xf32> to vector<16x1xf32>
    %177 = vector.shape_cast %176 : vector<16x1xf32> to vector<16x1xf32>
    %178 = vector.broadcast %177 : vector<16x1xf32> to vector<16x64xf32>
    %179 = arith.select %175, %178, %164 : vector<16x64xi1>, vector<16x64xf32>
    %180 = vector.extract_strided_slice %62 {offsets = [0, 7], sizes = [16, 1], strides = [1, 1]} : vector<16x63xf32> to vector<16x1xf32>
    %181 = vector.shape_cast %180 : vector<16x1xf32> to vector<16x1xf32>
    %182 = vector.broadcast %181 : vector<16x1xf32> to vector<16x64xf32>
    %183 = arith.select %175, %182, %168 : vector<16x64xi1>, vector<16x64xf32>
    %184 = vector.extract_strided_slice %75 {offsets = [0, 7], sizes = [16, 1], strides = [1, 1]} : vector<16x63xf32> to vector<16x1xf32>
    %185 = vector.shape_cast %184 : vector<16x1xf32> to vector<16x1xf32>
    %186 = vector.broadcast %185 : vector<16x1xf32> to vector<16x64xf32>
    %187 = arith.select %175, %186, %172 : vector<16x64xi1>, vector<16x64xf32>
    %188 = vector.extract_strided_slice %57 {offsets = [0, 8], sizes = [16, 1], strides = [1, 1]} : vector<16x63xf32> to vector<16x1xf32>
    %189 = vector.broadcast %188 : vector<16x1xf32> to vector<16x64xf32>
    %190 = arith.cmpf ole, %189, %4 : vector<16x64xf32>
    %191 = vector.extract_strided_slice %57 {offsets = [0, 8], sizes = [16, 1], strides = [1, 1]} : vector<16x63xf32> to vector<16x1xf32>
    %192 = vector.shape_cast %191 : vector<16x1xf32> to vector<16x1xf32>
    %193 = vector.broadcast %192 : vector<16x1xf32> to vector<16x64xf32>
    %194 = arith.select %190, %193, %179 : vector<16x64xi1>, vector<16x64xf32>
    %195 = vector.extract_strided_slice %62 {offsets = [0, 8], sizes = [16, 1], strides = [1, 1]} : vector<16x63xf32> to vector<16x1xf32>
    %196 = vector.shape_cast %195 : vector<16x1xf32> to vector<16x1xf32>
    %197 = vector.broadcast %196 : vector<16x1xf32> to vector<16x64xf32>
    %198 = arith.select %190, %197, %183 : vector<16x64xi1>, vector<16x64xf32>
    %199 = vector.extract_strided_slice %75 {offsets = [0, 8], sizes = [16, 1], strides = [1, 1]} : vector<16x63xf32> to vector<16x1xf32>
    %200 = vector.shape_cast %199 : vector<16x1xf32> to vector<16x1xf32>
    %201 = vector.broadcast %200 : vector<16x1xf32> to vector<16x64xf32>
    %202 = arith.select %190, %201, %187 : vector<16x64xi1>, vector<16x64xf32>
    %203 = vector.extract_strided_slice %57 {offsets = [0, 9], sizes = [16, 1], strides = [1, 1]} : vector<16x63xf32> to vector<16x1xf32>
    %204 = vector.broadcast %203 : vector<16x1xf32> to vector<16x64xf32>
    %205 = arith.cmpf ole, %204, %4 : vector<16x64xf32>
    %206 = vector.extract_strided_slice %57 {offsets = [0, 9], sizes = [16, 1], strides = [1, 1]} : vector<16x63xf32> to vector<16x1xf32>
    %207 = vector.shape_cast %206 : vector<16x1xf32> to vector<16x1xf32>
    %208 = vector.broadcast %207 : vector<16x1xf32> to vector<16x64xf32>
    %209 = arith.select %205, %208, %194 : vector<16x64xi1>, vector<16x64xf32>
    %210 = vector.extract_strided_slice %62 {offsets = [0, 9], sizes = [16, 1], strides = [1, 1]} : vector<16x63xf32> to vector<16x1xf32>
    %211 = vector.shape_cast %210 : vector<16x1xf32> to vector<16x1xf32>
    %212 = vector.broadcast %211 : vector<16x1xf32> to vector<16x64xf32>
    %213 = arith.select %205, %212, %198 : vector<16x64xi1>, vector<16x64xf32>
    %214 = vector.extract_strided_slice %75 {offsets = [0, 9], sizes = [16, 1], strides = [1, 1]} : vector<16x63xf32> to vector<16x1xf32>
    %215 = vector.shape_cast %214 : vector<16x1xf32> to vector<16x1xf32>
    %216 = vector.broadcast %215 : vector<16x1xf32> to vector<16x64xf32>
    %217 = arith.select %205, %216, %202 : vector<16x64xi1>, vector<16x64xf32>
    %218 = vector.extract_strided_slice %57 {offsets = [0, 10], sizes = [16, 1], strides = [1, 1]} : vector<16x63xf32> to vector<16x1xf32>
    %219 = vector.broadcast %218 : vector<16x1xf32> to vector<16x64xf32>
    %220 = arith.cmpf ole, %219, %4 : vector<16x64xf32>
    %221 = vector.extract_strided_slice %57 {offsets = [0, 10], sizes = [16, 1], strides = [1, 1]} : vector<16x63xf32> to vector<16x1xf32>
    %222 = vector.shape_cast %221 : vector<16x1xf32> to vector<16x1xf32>
    %223 = vector.broadcast %222 : vector<16x1xf32> to vector<16x64xf32>
    %224 = arith.select %220, %223, %209 : vector<16x64xi1>, vector<16x64xf32>
    %225 = vector.extract_strided_slice %62 {offsets = [0, 10], sizes = [16, 1], strides = [1, 1]} : vector<16x63xf32> to vector<16x1xf32>
    %226 = vector.shape_cast %225 : vector<16x1xf32> to vector<16x1xf32>
    %227 = vector.broadcast %226 : vector<16x1xf32> to vector<16x64xf32>
    %228 = arith.select %220, %227, %213 : vector<16x64xi1>, vector<16x64xf32>
    %229 = vector.extract_strided_slice %75 {offsets = [0, 10], sizes = [16, 1], strides = [1, 1]} : vector<16x63xf32> to vector<16x1xf32>
    %230 = vector.shape_cast %229 : vector<16x1xf32> to vector<16x1xf32>
    %231 = vector.broadcast %230 : vector<16x1xf32> to vector<16x64xf32>
    %232 = arith.select %220, %231, %217 : vector<16x64xi1>, vector<16x64xf32>
    %233 = vector.extract_strided_slice %57 {offsets = [0, 11], sizes = [16, 1], strides = [1, 1]} : vector<16x63xf32> to vector<16x1xf32>
    %234 = vector.broadcast %233 : vector<16x1xf32> to vector<16x64xf32>
    %235 = arith.cmpf ole, %234, %4 : vector<16x64xf32>
    %236 = vector.extract_strided_slice %57 {offsets = [0, 11], sizes = [16, 1], strides = [1, 1]} : vector<16x63xf32> to vector<16x1xf32>
    %237 = vector.shape_cast %236 : vector<16x1xf32> to vector<16x1xf32>
    %238 = vector.broadcast %237 : vector<16x1xf32> to vector<16x64xf32>
    %239 = arith.select %235, %238, %224 : vector<16x64xi1>, vector<16x64xf32>
    %240 = vector.extract_strided_slice %62 {offsets = [0, 11], sizes = [16, 1], strides = [1, 1]} : vector<16x63xf32> to vector<16x1xf32>
    %241 = vector.shape_cast %240 : vector<16x1xf32> to vector<16x1xf32>
    %242 = vector.broadcast %241 : vector<16x1xf32> to vector<16x64xf32>
    %243 = arith.select %235, %242, %228 : vector<16x64xi1>, vector<16x64xf32>
    %244 = vector.extract_strided_slice %75 {offsets = [0, 11], sizes = [16, 1], strides = [1, 1]} : vector<16x63xf32> to vector<16x1xf32>
    %245 = vector.shape_cast %244 : vector<16x1xf32> to vector<16x1xf32>
    %246 = vector.broadcast %245 : vector<16x1xf32> to vector<16x64xf32>
    %247 = arith.select %235, %246, %232 : vector<16x64xi1>, vector<16x64xf32>
    %248 = vector.extract_strided_slice %57 {offsets = [0, 12], sizes = [16, 1], strides = [1, 1]} : vector<16x63xf32> to vector<16x1xf32>
    %249 = vector.broadcast %248 : vector<16x1xf32> to vector<16x64xf32>
    %250 = arith.cmpf ole, %249, %4 : vector<16x64xf32>
    %251 = vector.extract_strided_slice %57 {offsets = [0, 12], sizes = [16, 1], strides = [1, 1]} : vector<16x63xf32> to vector<16x1xf32>
    %252 = vector.shape_cast %251 : vector<16x1xf32> to vector<16x1xf32>
    %253 = vector.broadcast %252 : vector<16x1xf32> to vector<16x64xf32>
    %254 = arith.select %250, %253, %239 : vector<16x64xi1>, vector<16x64xf32>
    %255 = vector.extract_strided_slice %62 {offsets = [0, 12], sizes = [16, 1], strides = [1, 1]} : vector<16x63xf32> to vector<16x1xf32>
    %256 = vector.shape_cast %255 : vector<16x1xf32> to vector<16x1xf32>
    %257 = vector.broadcast %256 : vector<16x1xf32> to vector<16x64xf32>
    %258 = arith.select %250, %257, %243 : vector<16x64xi1>, vector<16x64xf32>
    %259 = vector.extract_strided_slice %75 {offsets = [0, 12], sizes = [16, 1], strides = [1, 1]} : vector<16x63xf32> to vector<16x1xf32>
    %260 = vector.shape_cast %259 : vector<16x1xf32> to vector<16x1xf32>
    %261 = vector.broadcast %260 : vector<16x1xf32> to vector<16x64xf32>
    %262 = arith.select %250, %261, %247 : vector<16x64xi1>, vector<16x64xf32>
    %263 = vector.extract_strided_slice %57 {offsets = [0, 13], sizes = [16, 1], strides = [1, 1]} : vector<16x63xf32> to vector<16x1xf32>
    %264 = vector.broadcast %263 : vector<16x1xf32> to vector<16x64xf32>
    %265 = arith.cmpf ole, %264, %4 : vector<16x64xf32>
    %266 = vector.extract_strided_slice %57 {offsets = [0, 13], sizes = [16, 1], strides = [1, 1]} : vector<16x63xf32> to vector<16x1xf32>
    %267 = vector.shape_cast %266 : vector<16x1xf32> to vector<16x1xf32>
    %268 = vector.broadcast %267 : vector<16x1xf32> to vector<16x64xf32>
    %269 = arith.select %265, %268, %254 : vector<16x64xi1>, vector<16x64xf32>
    %270 = vector.extract_strided_slice %62 {offsets = [0, 13], sizes = [16, 1], strides = [1, 1]} : vector<16x63xf32> to vector<16x1xf32>
    %271 = vector.shape_cast %270 : vector<16x1xf32> to vector<16x1xf32>
    %272 = vector.broadcast %271 : vector<16x1xf32> to vector<16x64xf32>
    %273 = arith.select %265, %272, %258 : vector<16x64xi1>, vector<16x64xf32>
    %274 = vector.extract_strided_slice %75 {offsets = [0, 13], sizes = [16, 1], strides = [1, 1]} : vector<16x63xf32> to vector<16x1xf32>
    %275 = vector.shape_cast %274 : vector<16x1xf32> to vector<16x1xf32>
    %276 = vector.broadcast %275 : vector<16x1xf32> to vector<16x64xf32>
    %277 = arith.select %265, %276, %262 : vector<16x64xi1>, vector<16x64xf32>
    %278 = vector.extract_strided_slice %57 {offsets = [0, 14], sizes = [16, 1], strides = [1, 1]} : vector<16x63xf32> to vector<16x1xf32>
    %279 = vector.broadcast %278 : vector<16x1xf32> to vector<16x64xf32>
    %280 = arith.cmpf ole, %279, %4 : vector<16x64xf32>
    %281 = vector.extract_strided_slice %57 {offsets = [0, 14], sizes = [16, 1], strides = [1, 1]} : vector<16x63xf32> to vector<16x1xf32>
    %282 = vector.shape_cast %281 : vector<16x1xf32> to vector<16x1xf32>
    %283 = vector.broadcast %282 : vector<16x1xf32> to vector<16x64xf32>
    %284 = arith.select %280, %283, %269 : vector<16x64xi1>, vector<16x64xf32>
    %285 = vector.extract_strided_slice %62 {offsets = [0, 14], sizes = [16, 1], strides = [1, 1]} : vector<16x63xf32> to vector<16x1xf32>
    %286 = vector.shape_cast %285 : vector<16x1xf32> to vector<16x1xf32>
    %287 = vector.broadcast %286 : vector<16x1xf32> to vector<16x64xf32>
    %288 = arith.select %280, %287, %273 : vector<16x64xi1>, vector<16x64xf32>
    %289 = vector.extract_strided_slice %75 {offsets = [0, 14], sizes = [16, 1], strides = [1, 1]} : vector<16x63xf32> to vector<16x1xf32>
    %290 = vector.shape_cast %289 : vector<16x1xf32> to vector<16x1xf32>
    %291 = vector.broadcast %290 : vector<16x1xf32> to vector<16x64xf32>
    %292 = arith.select %280, %291, %277 : vector<16x64xi1>, vector<16x64xf32>
    %293 = vector.extract_strided_slice %57 {offsets = [0, 15], sizes = [16, 1], strides = [1, 1]} : vector<16x63xf32> to vector<16x1xf32>
    %294 = vector.broadcast %293 : vector<16x1xf32> to vector<16x64xf32>
    %295 = arith.cmpf ole, %294, %4 : vector<16x64xf32>
    %296 = vector.extract_strided_slice %57 {offsets = [0, 15], sizes = [16, 1], strides = [1, 1]} : vector<16x63xf32> to vector<16x1xf32>
    %297 = vector.shape_cast %296 : vector<16x1xf32> to vector<16x1xf32>
    %298 = vector.broadcast %297 : vector<16x1xf32> to vector<16x64xf32>
    %299 = arith.select %295, %298, %284 : vector<16x64xi1>, vector<16x64xf32>
    %300 = vector.extract_strided_slice %62 {offsets = [0, 15], sizes = [16, 1], strides = [1, 1]} : vector<16x63xf32> to vector<16x1xf32>
    %301 = vector.shape_cast %300 : vector<16x1xf32> to vector<16x1xf32>
    %302 = vector.broadcast %301 : vector<16x1xf32> to vector<16x64xf32>
    %303 = arith.select %295, %302, %288 : vector<16x64xi1>, vector<16x64xf32>
    %304 = vector.extract_strided_slice %75 {offsets = [0, 15], sizes = [16, 1], strides = [1, 1]} : vector<16x63xf32> to vector<16x1xf32>
    %305 = vector.shape_cast %304 : vector<16x1xf32> to vector<16x1xf32>
    %306 = vector.broadcast %305 : vector<16x1xf32> to vector<16x64xf32>
    %307 = arith.select %295, %306, %292 : vector<16x64xi1>, vector<16x64xf32>
    %308 = vector.extract_strided_slice %57 {offsets = [0, 16], sizes = [16, 1], strides = [1, 1]} : vector<16x63xf32> to vector<16x1xf32>
    %309 = vector.broadcast %308 : vector<16x1xf32> to vector<16x64xf32>
    %310 = arith.cmpf ole, %309, %4 : vector<16x64xf32>
    %311 = vector.extract_strided_slice %57 {offsets = [0, 16], sizes = [16, 1], strides = [1, 1]} : vector<16x63xf32> to vector<16x1xf32>
    %312 = vector.shape_cast %311 : vector<16x1xf32> to vector<16x1xf32>
    %313 = vector.broadcast %312 : vector<16x1xf32> to vector<16x64xf32>
    %314 = arith.select %310, %313, %299 : vector<16x64xi1>, vector<16x64xf32>
    %315 = vector.extract_strided_slice %62 {offsets = [0, 16], sizes = [16, 1], strides = [1, 1]} : vector<16x63xf32> to vector<16x1xf32>
    %316 = vector.shape_cast %315 : vector<16x1xf32> to vector<16x1xf32>
    %317 = vector.broadcast %316 : vector<16x1xf32> to vector<16x64xf32>
    %318 = arith.select %310, %317, %303 : vector<16x64xi1>, vector<16x64xf32>
    %319 = vector.extract_strided_slice %75 {offsets = [0, 16], sizes = [16, 1], strides = [1, 1]} : vector<16x63xf32> to vector<16x1xf32>
    %320 = vector.shape_cast %319 : vector<16x1xf32> to vector<16x1xf32>
    %321 = vector.broadcast %320 : vector<16x1xf32> to vector<16x64xf32>
    %322 = arith.select %310, %321, %307 : vector<16x64xi1>, vector<16x64xf32>
    %323 = vector.extract_strided_slice %57 {offsets = [0, 17], sizes = [16, 1], strides = [1, 1]} : vector<16x63xf32> to vector<16x1xf32>
    %324 = vector.broadcast %323 : vector<16x1xf32> to vector<16x64xf32>
    %325 = arith.cmpf ole, %324, %4 : vector<16x64xf32>
    %326 = vector.extract_strided_slice %57 {offsets = [0, 17], sizes = [16, 1], strides = [1, 1]} : vector<16x63xf32> to vector<16x1xf32>
    %327 = vector.shape_cast %326 : vector<16x1xf32> to vector<16x1xf32>
    %328 = vector.broadcast %327 : vector<16x1xf32> to vector<16x64xf32>
    %329 = arith.select %325, %328, %314 : vector<16x64xi1>, vector<16x64xf32>
    %330 = vector.extract_strided_slice %62 {offsets = [0, 17], sizes = [16, 1], strides = [1, 1]} : vector<16x63xf32> to vector<16x1xf32>
    %331 = vector.shape_cast %330 : vector<16x1xf32> to vector<16x1xf32>
    %332 = vector.broadcast %331 : vector<16x1xf32> to vector<16x64xf32>
    %333 = arith.select %325, %332, %318 : vector<16x64xi1>, vector<16x64xf32>
    %334 = vector.extract_strided_slice %75 {offsets = [0, 17], sizes = [16, 1], strides = [1, 1]} : vector<16x63xf32> to vector<16x1xf32>
    %335 = vector.shape_cast %334 : vector<16x1xf32> to vector<16x1xf32>
    %336 = vector.broadcast %335 : vector<16x1xf32> to vector<16x64xf32>
    %337 = arith.select %325, %336, %322 : vector<16x64xi1>, vector<16x64xf32>
    %338 = vector.extract_strided_slice %57 {offsets = [0, 18], sizes = [16, 1], strides = [1, 1]} : vector<16x63xf32> to vector<16x1xf32>
    %339 = vector.broadcast %338 : vector<16x1xf32> to vector<16x64xf32>
    %340 = arith.cmpf ole, %339, %4 : vector<16x64xf32>
    %341 = vector.extract_strided_slice %57 {offsets = [0, 18], sizes = [16, 1], strides = [1, 1]} : vector<16x63xf32> to vector<16x1xf32>
    %342 = vector.shape_cast %341 : vector<16x1xf32> to vector<16x1xf32>
    %343 = vector.broadcast %342 : vector<16x1xf32> to vector<16x64xf32>
    %344 = arith.select %340, %343, %329 : vector<16x64xi1>, vector<16x64xf32>
    %345 = vector.extract_strided_slice %62 {offsets = [0, 18], sizes = [16, 1], strides = [1, 1]} : vector<16x63xf32> to vector<16x1xf32>
    %346 = vector.shape_cast %345 : vector<16x1xf32> to vector<16x1xf32>
    %347 = vector.broadcast %346 : vector<16x1xf32> to vector<16x64xf32>
    %348 = arith.select %340, %347, %333 : vector<16x64xi1>, vector<16x64xf32>
    %349 = vector.extract_strided_slice %75 {offsets = [0, 18], sizes = [16, 1], strides = [1, 1]} : vector<16x63xf32> to vector<16x1xf32>
    %350 = vector.shape_cast %349 : vector<16x1xf32> to vector<16x1xf32>
    %351 = vector.broadcast %350 : vector<16x1xf32> to vector<16x64xf32>
    %352 = arith.select %340, %351, %337 : vector<16x64xi1>, vector<16x64xf32>
    %353 = vector.extract_strided_slice %57 {offsets = [0, 19], sizes = [16, 1], strides = [1, 1]} : vector<16x63xf32> to vector<16x1xf32>
    %354 = vector.broadcast %353 : vector<16x1xf32> to vector<16x64xf32>
    %355 = arith.cmpf ole, %354, %4 : vector<16x64xf32>
    %356 = vector.extract_strided_slice %57 {offsets = [0, 19], sizes = [16, 1], strides = [1, 1]} : vector<16x63xf32> to vector<16x1xf32>
    %357 = vector.shape_cast %356 : vector<16x1xf32> to vector<16x1xf32>
    %358 = vector.broadcast %357 : vector<16x1xf32> to vector<16x64xf32>
    %359 = arith.select %355, %358, %344 : vector<16x64xi1>, vector<16x64xf32>
    %360 = vector.extract_strided_slice %62 {offsets = [0, 19], sizes = [16, 1], strides = [1, 1]} : vector<16x63xf32> to vector<16x1xf32>
    %361 = vector.shape_cast %360 : vector<16x1xf32> to vector<16x1xf32>
    %362 = vector.broadcast %361 : vector<16x1xf32> to vector<16x64xf32>
    %363 = arith.select %355, %362, %348 : vector<16x64xi1>, vector<16x64xf32>
    %364 = vector.extract_strided_slice %75 {offsets = [0, 19], sizes = [16, 1], strides = [1, 1]} : vector<16x63xf32> to vector<16x1xf32>
    %365 = vector.shape_cast %364 : vector<16x1xf32> to vector<16x1xf32>
    %366 = vector.broadcast %365 : vector<16x1xf32> to vector<16x64xf32>
    %367 = arith.select %355, %366, %352 : vector<16x64xi1>, vector<16x64xf32>
    %368 = vector.extract_strided_slice %57 {offsets = [0, 20], sizes = [16, 1], strides = [1, 1]} : vector<16x63xf32> to vector<16x1xf32>
    %369 = vector.broadcast %368 : vector<16x1xf32> to vector<16x64xf32>
    %370 = arith.cmpf ole, %369, %4 : vector<16x64xf32>
    %371 = vector.extract_strided_slice %57 {offsets = [0, 20], sizes = [16, 1], strides = [1, 1]} : vector<16x63xf32> to vector<16x1xf32>
    %372 = vector.shape_cast %371 : vector<16x1xf32> to vector<16x1xf32>
    %373 = vector.broadcast %372 : vector<16x1xf32> to vector<16x64xf32>
    %374 = arith.select %370, %373, %359 : vector<16x64xi1>, vector<16x64xf32>
    %375 = vector.extract_strided_slice %62 {offsets = [0, 20], sizes = [16, 1], strides = [1, 1]} : vector<16x63xf32> to vector<16x1xf32>
    %376 = vector.shape_cast %375 : vector<16x1xf32> to vector<16x1xf32>
    %377 = vector.broadcast %376 : vector<16x1xf32> to vector<16x64xf32>
    %378 = arith.select %370, %377, %363 : vector<16x64xi1>, vector<16x64xf32>
    %379 = vector.extract_strided_slice %75 {offsets = [0, 20], sizes = [16, 1], strides = [1, 1]} : vector<16x63xf32> to vector<16x1xf32>
    %380 = vector.shape_cast %379 : vector<16x1xf32> to vector<16x1xf32>
    %381 = vector.broadcast %380 : vector<16x1xf32> to vector<16x64xf32>
    %382 = arith.select %370, %381, %367 : vector<16x64xi1>, vector<16x64xf32>
    %383 = vector.extract_strided_slice %57 {offsets = [0, 21], sizes = [16, 1], strides = [1, 1]} : vector<16x63xf32> to vector<16x1xf32>
    %384 = vector.broadcast %383 : vector<16x1xf32> to vector<16x64xf32>
    %385 = arith.cmpf ole, %384, %4 : vector<16x64xf32>
    %386 = vector.extract_strided_slice %57 {offsets = [0, 21], sizes = [16, 1], strides = [1, 1]} : vector<16x63xf32> to vector<16x1xf32>
    %387 = vector.shape_cast %386 : vector<16x1xf32> to vector<16x1xf32>
    %388 = vector.broadcast %387 : vector<16x1xf32> to vector<16x64xf32>
    %389 = arith.select %385, %388, %374 : vector<16x64xi1>, vector<16x64xf32>
    %390 = vector.extract_strided_slice %62 {offsets = [0, 21], sizes = [16, 1], strides = [1, 1]} : vector<16x63xf32> to vector<16x1xf32>
    %391 = vector.shape_cast %390 : vector<16x1xf32> to vector<16x1xf32>
    %392 = vector.broadcast %391 : vector<16x1xf32> to vector<16x64xf32>
    %393 = arith.select %385, %392, %378 : vector<16x64xi1>, vector<16x64xf32>
    %394 = vector.extract_strided_slice %75 {offsets = [0, 21], sizes = [16, 1], strides = [1, 1]} : vector<16x63xf32> to vector<16x1xf32>
    %395 = vector.shape_cast %394 : vector<16x1xf32> to vector<16x1xf32>
    %396 = vector.broadcast %395 : vector<16x1xf32> to vector<16x64xf32>
    %397 = arith.select %385, %396, %382 : vector<16x64xi1>, vector<16x64xf32>
    %398 = vector.extract_strided_slice %57 {offsets = [0, 22], sizes = [16, 1], strides = [1, 1]} : vector<16x63xf32> to vector<16x1xf32>
    %399 = vector.broadcast %398 : vector<16x1xf32> to vector<16x64xf32>
    %400 = arith.cmpf ole, %399, %4 : vector<16x64xf32>
    %401 = vector.extract_strided_slice %57 {offsets = [0, 22], sizes = [16, 1], strides = [1, 1]} : vector<16x63xf32> to vector<16x1xf32>
    %402 = vector.shape_cast %401 : vector<16x1xf32> to vector<16x1xf32>
    %403 = vector.broadcast %402 : vector<16x1xf32> to vector<16x64xf32>
    %404 = arith.select %400, %403, %389 : vector<16x64xi1>, vector<16x64xf32>
    %405 = vector.extract_strided_slice %62 {offsets = [0, 22], sizes = [16, 1], strides = [1, 1]} : vector<16x63xf32> to vector<16x1xf32>
    %406 = vector.shape_cast %405 : vector<16x1xf32> to vector<16x1xf32>
    %407 = vector.broadcast %406 : vector<16x1xf32> to vector<16x64xf32>
    %408 = arith.select %400, %407, %393 : vector<16x64xi1>, vector<16x64xf32>
    %409 = vector.extract_strided_slice %75 {offsets = [0, 22], sizes = [16, 1], strides = [1, 1]} : vector<16x63xf32> to vector<16x1xf32>
    %410 = vector.shape_cast %409 : vector<16x1xf32> to vector<16x1xf32>
    %411 = vector.broadcast %410 : vector<16x1xf32> to vector<16x64xf32>
    %412 = arith.select %400, %411, %397 : vector<16x64xi1>, vector<16x64xf32>
    %413 = vector.extract_strided_slice %57 {offsets = [0, 23], sizes = [16, 1], strides = [1, 1]} : vector<16x63xf32> to vector<16x1xf32>
    %414 = vector.broadcast %413 : vector<16x1xf32> to vector<16x64xf32>
    %415 = arith.cmpf ole, %414, %4 : vector<16x64xf32>
    %416 = vector.extract_strided_slice %57 {offsets = [0, 23], sizes = [16, 1], strides = [1, 1]} : vector<16x63xf32> to vector<16x1xf32>
    %417 = vector.shape_cast %416 : vector<16x1xf32> to vector<16x1xf32>
    %418 = vector.broadcast %417 : vector<16x1xf32> to vector<16x64xf32>
    %419 = arith.select %415, %418, %404 : vector<16x64xi1>, vector<16x64xf32>
    %420 = vector.extract_strided_slice %62 {offsets = [0, 23], sizes = [16, 1], strides = [1, 1]} : vector<16x63xf32> to vector<16x1xf32>
    %421 = vector.shape_cast %420 : vector<16x1xf32> to vector<16x1xf32>
    %422 = vector.broadcast %421 : vector<16x1xf32> to vector<16x64xf32>
    %423 = arith.select %415, %422, %408 : vector<16x64xi1>, vector<16x64xf32>
    %424 = vector.extract_strided_slice %75 {offsets = [0, 23], sizes = [16, 1], strides = [1, 1]} : vector<16x63xf32> to vector<16x1xf32>
    %425 = vector.shape_cast %424 : vector<16x1xf32> to vector<16x1xf32>
    %426 = vector.broadcast %425 : vector<16x1xf32> to vector<16x64xf32>
    %427 = arith.select %415, %426, %412 : vector<16x64xi1>, vector<16x64xf32>
    %428 = vector.extract_strided_slice %57 {offsets = [0, 24], sizes = [16, 1], strides = [1, 1]} : vector<16x63xf32> to vector<16x1xf32>
    %429 = vector.broadcast %428 : vector<16x1xf32> to vector<16x64xf32>
    %430 = arith.cmpf ole, %429, %4 : vector<16x64xf32>
    %431 = vector.extract_strided_slice %57 {offsets = [0, 24], sizes = [16, 1], strides = [1, 1]} : vector<16x63xf32> to vector<16x1xf32>
    %432 = vector.shape_cast %431 : vector<16x1xf32> to vector<16x1xf32>
    %433 = vector.broadcast %432 : vector<16x1xf32> to vector<16x64xf32>
    %434 = arith.select %430, %433, %419 : vector<16x64xi1>, vector<16x64xf32>
    %435 = vector.extract_strided_slice %62 {offsets = [0, 24], sizes = [16, 1], strides = [1, 1]} : vector<16x63xf32> to vector<16x1xf32>
    %436 = vector.shape_cast %435 : vector<16x1xf32> to vector<16x1xf32>
    %437 = vector.broadcast %436 : vector<16x1xf32> to vector<16x64xf32>
    %438 = arith.select %430, %437, %423 : vector<16x64xi1>, vector<16x64xf32>
    %439 = vector.extract_strided_slice %75 {offsets = [0, 24], sizes = [16, 1], strides = [1, 1]} : vector<16x63xf32> to vector<16x1xf32>
    %440 = vector.shape_cast %439 : vector<16x1xf32> to vector<16x1xf32>
    %441 = vector.broadcast %440 : vector<16x1xf32> to vector<16x64xf32>
    %442 = arith.select %430, %441, %427 : vector<16x64xi1>, vector<16x64xf32>
    %443 = vector.extract_strided_slice %57 {offsets = [0, 25], sizes = [16, 1], strides = [1, 1]} : vector<16x63xf32> to vector<16x1xf32>
    %444 = vector.broadcast %443 : vector<16x1xf32> to vector<16x64xf32>
    %445 = arith.cmpf ole, %444, %4 : vector<16x64xf32>
    %446 = vector.extract_strided_slice %57 {offsets = [0, 25], sizes = [16, 1], strides = [1, 1]} : vector<16x63xf32> to vector<16x1xf32>
    %447 = vector.shape_cast %446 : vector<16x1xf32> to vector<16x1xf32>
    %448 = vector.broadcast %447 : vector<16x1xf32> to vector<16x64xf32>
    %449 = arith.select %445, %448, %434 : vector<16x64xi1>, vector<16x64xf32>
    %450 = vector.extract_strided_slice %62 {offsets = [0, 25], sizes = [16, 1], strides = [1, 1]} : vector<16x63xf32> to vector<16x1xf32>
    %451 = vector.shape_cast %450 : vector<16x1xf32> to vector<16x1xf32>
    %452 = vector.broadcast %451 : vector<16x1xf32> to vector<16x64xf32>
    %453 = arith.select %445, %452, %438 : vector<16x64xi1>, vector<16x64xf32>
    %454 = vector.extract_strided_slice %75 {offsets = [0, 25], sizes = [16, 1], strides = [1, 1]} : vector<16x63xf32> to vector<16x1xf32>
    %455 = vector.shape_cast %454 : vector<16x1xf32> to vector<16x1xf32>
    %456 = vector.broadcast %455 : vector<16x1xf32> to vector<16x64xf32>
    %457 = arith.select %445, %456, %442 : vector<16x64xi1>, vector<16x64xf32>
    %458 = vector.extract_strided_slice %57 {offsets = [0, 26], sizes = [16, 1], strides = [1, 1]} : vector<16x63xf32> to vector<16x1xf32>
    %459 = vector.broadcast %458 : vector<16x1xf32> to vector<16x64xf32>
    %460 = arith.cmpf ole, %459, %4 : vector<16x64xf32>
    %461 = vector.extract_strided_slice %57 {offsets = [0, 26], sizes = [16, 1], strides = [1, 1]} : vector<16x63xf32> to vector<16x1xf32>
    %462 = vector.shape_cast %461 : vector<16x1xf32> to vector<16x1xf32>
    %463 = vector.broadcast %462 : vector<16x1xf32> to vector<16x64xf32>
    %464 = arith.select %460, %463, %449 : vector<16x64xi1>, vector<16x64xf32>
    %465 = vector.extract_strided_slice %62 {offsets = [0, 26], sizes = [16, 1], strides = [1, 1]} : vector<16x63xf32> to vector<16x1xf32>
    %466 = vector.shape_cast %465 : vector<16x1xf32> to vector<16x1xf32>
    %467 = vector.broadcast %466 : vector<16x1xf32> to vector<16x64xf32>
    %468 = arith.select %460, %467, %453 : vector<16x64xi1>, vector<16x64xf32>
    %469 = vector.extract_strided_slice %75 {offsets = [0, 26], sizes = [16, 1], strides = [1, 1]} : vector<16x63xf32> to vector<16x1xf32>
    %470 = vector.shape_cast %469 : vector<16x1xf32> to vector<16x1xf32>
    %471 = vector.broadcast %470 : vector<16x1xf32> to vector<16x64xf32>
    %472 = arith.select %460, %471, %457 : vector<16x64xi1>, vector<16x64xf32>
    %473 = vector.extract_strided_slice %57 {offsets = [0, 27], sizes = [16, 1], strides = [1, 1]} : vector<16x63xf32> to vector<16x1xf32>
    %474 = vector.broadcast %473 : vector<16x1xf32> to vector<16x64xf32>
    %475 = arith.cmpf ole, %474, %4 : vector<16x64xf32>
    %476 = vector.extract_strided_slice %57 {offsets = [0, 27], sizes = [16, 1], strides = [1, 1]} : vector<16x63xf32> to vector<16x1xf32>
    %477 = vector.shape_cast %476 : vector<16x1xf32> to vector<16x1xf32>
    %478 = vector.broadcast %477 : vector<16x1xf32> to vector<16x64xf32>
    %479 = arith.select %475, %478, %464 : vector<16x64xi1>, vector<16x64xf32>
    %480 = vector.extract_strided_slice %62 {offsets = [0, 27], sizes = [16, 1], strides = [1, 1]} : vector<16x63xf32> to vector<16x1xf32>
    %481 = vector.shape_cast %480 : vector<16x1xf32> to vector<16x1xf32>
    %482 = vector.broadcast %481 : vector<16x1xf32> to vector<16x64xf32>
    %483 = arith.select %475, %482, %468 : vector<16x64xi1>, vector<16x64xf32>
    %484 = vector.extract_strided_slice %75 {offsets = [0, 27], sizes = [16, 1], strides = [1, 1]} : vector<16x63xf32> to vector<16x1xf32>
    %485 = vector.shape_cast %484 : vector<16x1xf32> to vector<16x1xf32>
    %486 = vector.broadcast %485 : vector<16x1xf32> to vector<16x64xf32>
    %487 = arith.select %475, %486, %472 : vector<16x64xi1>, vector<16x64xf32>
    %488 = vector.extract_strided_slice %57 {offsets = [0, 28], sizes = [16, 1], strides = [1, 1]} : vector<16x63xf32> to vector<16x1xf32>
    %489 = vector.broadcast %488 : vector<16x1xf32> to vector<16x64xf32>
    %490 = arith.cmpf ole, %489, %4 : vector<16x64xf32>
    %491 = vector.extract_strided_slice %57 {offsets = [0, 28], sizes = [16, 1], strides = [1, 1]} : vector<16x63xf32> to vector<16x1xf32>
    %492 = vector.shape_cast %491 : vector<16x1xf32> to vector<16x1xf32>
    %493 = vector.broadcast %492 : vector<16x1xf32> to vector<16x64xf32>
    %494 = arith.select %490, %493, %479 : vector<16x64xi1>, vector<16x64xf32>
    %495 = vector.extract_strided_slice %62 {offsets = [0, 28], sizes = [16, 1], strides = [1, 1]} : vector<16x63xf32> to vector<16x1xf32>
    %496 = vector.shape_cast %495 : vector<16x1xf32> to vector<16x1xf32>
    %497 = vector.broadcast %496 : vector<16x1xf32> to vector<16x64xf32>
    %498 = arith.select %490, %497, %483 : vector<16x64xi1>, vector<16x64xf32>
    %499 = vector.extract_strided_slice %75 {offsets = [0, 28], sizes = [16, 1], strides = [1, 1]} : vector<16x63xf32> to vector<16x1xf32>
    %500 = vector.shape_cast %499 : vector<16x1xf32> to vector<16x1xf32>
    %501 = vector.broadcast %500 : vector<16x1xf32> to vector<16x64xf32>
    %502 = arith.select %490, %501, %487 : vector<16x64xi1>, vector<16x64xf32>
    %503 = vector.extract_strided_slice %57 {offsets = [0, 29], sizes = [16, 1], strides = [1, 1]} : vector<16x63xf32> to vector<16x1xf32>
    %504 = vector.broadcast %503 : vector<16x1xf32> to vector<16x64xf32>
    %505 = arith.cmpf ole, %504, %4 : vector<16x64xf32>
    %506 = vector.extract_strided_slice %57 {offsets = [0, 29], sizes = [16, 1], strides = [1, 1]} : vector<16x63xf32> to vector<16x1xf32>
    %507 = vector.shape_cast %506 : vector<16x1xf32> to vector<16x1xf32>
    %508 = vector.broadcast %507 : vector<16x1xf32> to vector<16x64xf32>
    %509 = arith.select %505, %508, %494 : vector<16x64xi1>, vector<16x64xf32>
    %510 = vector.extract_strided_slice %62 {offsets = [0, 29], sizes = [16, 1], strides = [1, 1]} : vector<16x63xf32> to vector<16x1xf32>
    %511 = vector.shape_cast %510 : vector<16x1xf32> to vector<16x1xf32>
    %512 = vector.broadcast %511 : vector<16x1xf32> to vector<16x64xf32>
    %513 = arith.select %505, %512, %498 : vector<16x64xi1>, vector<16x64xf32>
    %514 = vector.extract_strided_slice %75 {offsets = [0, 29], sizes = [16, 1], strides = [1, 1]} : vector<16x63xf32> to vector<16x1xf32>
    %515 = vector.shape_cast %514 : vector<16x1xf32> to vector<16x1xf32>
    %516 = vector.broadcast %515 : vector<16x1xf32> to vector<16x64xf32>
    %517 = arith.select %505, %516, %502 : vector<16x64xi1>, vector<16x64xf32>
    %518 = vector.extract_strided_slice %57 {offsets = [0, 30], sizes = [16, 1], strides = [1, 1]} : vector<16x63xf32> to vector<16x1xf32>
    %519 = vector.broadcast %518 : vector<16x1xf32> to vector<16x64xf32>
    %520 = arith.cmpf ole, %519, %4 : vector<16x64xf32>
    %521 = vector.extract_strided_slice %57 {offsets = [0, 30], sizes = [16, 1], strides = [1, 1]} : vector<16x63xf32> to vector<16x1xf32>
    %522 = vector.shape_cast %521 : vector<16x1xf32> to vector<16x1xf32>
    %523 = vector.broadcast %522 : vector<16x1xf32> to vector<16x64xf32>
    %524 = arith.select %520, %523, %509 : vector<16x64xi1>, vector<16x64xf32>
    %525 = vector.extract_strided_slice %62 {offsets = [0, 30], sizes = [16, 1], strides = [1, 1]} : vector<16x63xf32> to vector<16x1xf32>
    %526 = vector.shape_cast %525 : vector<16x1xf32> to vector<16x1xf32>
    %527 = vector.broadcast %526 : vector<16x1xf32> to vector<16x64xf32>
    %528 = arith.select %520, %527, %513 : vector<16x64xi1>, vector<16x64xf32>
    %529 = vector.extract_strided_slice %75 {offsets = [0, 30], sizes = [16, 1], strides = [1, 1]} : vector<16x63xf32> to vector<16x1xf32>
    %530 = vector.shape_cast %529 : vector<16x1xf32> to vector<16x1xf32>
    %531 = vector.broadcast %530 : vector<16x1xf32> to vector<16x64xf32>
    %532 = arith.select %520, %531, %517 : vector<16x64xi1>, vector<16x64xf32>
    %533 = vector.extract_strided_slice %57 {offsets = [0, 31], sizes = [16, 1], strides = [1, 1]} : vector<16x63xf32> to vector<16x1xf32>
    %534 = vector.broadcast %533 : vector<16x1xf32> to vector<16x64xf32>
    %535 = arith.cmpf ole, %534, %4 : vector<16x64xf32>
    %536 = vector.extract_strided_slice %57 {offsets = [0, 31], sizes = [16, 1], strides = [1, 1]} : vector<16x63xf32> to vector<16x1xf32>
    %537 = vector.shape_cast %536 : vector<16x1xf32> to vector<16x1xf32>
    %538 = vector.broadcast %537 : vector<16x1xf32> to vector<16x64xf32>
    %539 = arith.select %535, %538, %524 : vector<16x64xi1>, vector<16x64xf32>
    %540 = vector.extract_strided_slice %62 {offsets = [0, 31], sizes = [16, 1], strides = [1, 1]} : vector<16x63xf32> to vector<16x1xf32>
    %541 = vector.shape_cast %540 : vector<16x1xf32> to vector<16x1xf32>
    %542 = vector.broadcast %541 : vector<16x1xf32> to vector<16x64xf32>
    %543 = arith.select %535, %542, %528 : vector<16x64xi1>, vector<16x64xf32>
    %544 = vector.extract_strided_slice %75 {offsets = [0, 31], sizes = [16, 1], strides = [1, 1]} : vector<16x63xf32> to vector<16x1xf32>
    %545 = vector.shape_cast %544 : vector<16x1xf32> to vector<16x1xf32>
    %546 = vector.broadcast %545 : vector<16x1xf32> to vector<16x64xf32>
    %547 = arith.select %535, %546, %532 : vector<16x64xi1>, vector<16x64xf32>
    %548 = vector.extract_strided_slice %57 {offsets = [0, 32], sizes = [16, 1], strides = [1, 1]} : vector<16x63xf32> to vector<16x1xf32>
    %549 = vector.broadcast %548 : vector<16x1xf32> to vector<16x64xf32>
    %550 = arith.cmpf ole, %549, %4 : vector<16x64xf32>
    %551 = vector.extract_strided_slice %57 {offsets = [0, 32], sizes = [16, 1], strides = [1, 1]} : vector<16x63xf32> to vector<16x1xf32>
    %552 = vector.shape_cast %551 : vector<16x1xf32> to vector<16x1xf32>
    %553 = vector.broadcast %552 : vector<16x1xf32> to vector<16x64xf32>
    %554 = arith.select %550, %553, %539 : vector<16x64xi1>, vector<16x64xf32>
    %555 = vector.extract_strided_slice %62 {offsets = [0, 32], sizes = [16, 1], strides = [1, 1]} : vector<16x63xf32> to vector<16x1xf32>
    %556 = vector.shape_cast %555 : vector<16x1xf32> to vector<16x1xf32>
    %557 = vector.broadcast %556 : vector<16x1xf32> to vector<16x64xf32>
    %558 = arith.select %550, %557, %543 : vector<16x64xi1>, vector<16x64xf32>
    %559 = vector.extract_strided_slice %75 {offsets = [0, 32], sizes = [16, 1], strides = [1, 1]} : vector<16x63xf32> to vector<16x1xf32>
    %560 = vector.shape_cast %559 : vector<16x1xf32> to vector<16x1xf32>
    %561 = vector.broadcast %560 : vector<16x1xf32> to vector<16x64xf32>
    %562 = arith.select %550, %561, %547 : vector<16x64xi1>, vector<16x64xf32>
    %563 = vector.extract_strided_slice %57 {offsets = [0, 33], sizes = [16, 1], strides = [1, 1]} : vector<16x63xf32> to vector<16x1xf32>
    %564 = vector.broadcast %563 : vector<16x1xf32> to vector<16x64xf32>
    %565 = arith.cmpf ole, %564, %4 : vector<16x64xf32>
    %566 = vector.extract_strided_slice %57 {offsets = [0, 33], sizes = [16, 1], strides = [1, 1]} : vector<16x63xf32> to vector<16x1xf32>
    %567 = vector.shape_cast %566 : vector<16x1xf32> to vector<16x1xf32>
    %568 = vector.broadcast %567 : vector<16x1xf32> to vector<16x64xf32>
    %569 = arith.select %565, %568, %554 : vector<16x64xi1>, vector<16x64xf32>
    %570 = vector.extract_strided_slice %62 {offsets = [0, 33], sizes = [16, 1], strides = [1, 1]} : vector<16x63xf32> to vector<16x1xf32>
    %571 = vector.shape_cast %570 : vector<16x1xf32> to vector<16x1xf32>
    %572 = vector.broadcast %571 : vector<16x1xf32> to vector<16x64xf32>
    %573 = arith.select %565, %572, %558 : vector<16x64xi1>, vector<16x64xf32>
    %574 = vector.extract_strided_slice %75 {offsets = [0, 33], sizes = [16, 1], strides = [1, 1]} : vector<16x63xf32> to vector<16x1xf32>
    %575 = vector.shape_cast %574 : vector<16x1xf32> to vector<16x1xf32>
    %576 = vector.broadcast %575 : vector<16x1xf32> to vector<16x64xf32>
    %577 = arith.select %565, %576, %562 : vector<16x64xi1>, vector<16x64xf32>
    %578 = vector.extract_strided_slice %57 {offsets = [0, 34], sizes = [16, 1], strides = [1, 1]} : vector<16x63xf32> to vector<16x1xf32>
    %579 = vector.broadcast %578 : vector<16x1xf32> to vector<16x64xf32>
    %580 = arith.cmpf ole, %579, %4 : vector<16x64xf32>
    %581 = vector.extract_strided_slice %57 {offsets = [0, 34], sizes = [16, 1], strides = [1, 1]} : vector<16x63xf32> to vector<16x1xf32>
    %582 = vector.shape_cast %581 : vector<16x1xf32> to vector<16x1xf32>
    %583 = vector.broadcast %582 : vector<16x1xf32> to vector<16x64xf32>
    %584 = arith.select %580, %583, %569 : vector<16x64xi1>, vector<16x64xf32>
    %585 = vector.extract_strided_slice %62 {offsets = [0, 34], sizes = [16, 1], strides = [1, 1]} : vector<16x63xf32> to vector<16x1xf32>
    %586 = vector.shape_cast %585 : vector<16x1xf32> to vector<16x1xf32>
    %587 = vector.broadcast %586 : vector<16x1xf32> to vector<16x64xf32>
    %588 = arith.select %580, %587, %573 : vector<16x64xi1>, vector<16x64xf32>
    %589 = vector.extract_strided_slice %75 {offsets = [0, 34], sizes = [16, 1], strides = [1, 1]} : vector<16x63xf32> to vector<16x1xf32>
    %590 = vector.shape_cast %589 : vector<16x1xf32> to vector<16x1xf32>
    %591 = vector.broadcast %590 : vector<16x1xf32> to vector<16x64xf32>
    %592 = arith.select %580, %591, %577 : vector<16x64xi1>, vector<16x64xf32>
    %593 = vector.extract_strided_slice %57 {offsets = [0, 35], sizes = [16, 1], strides = [1, 1]} : vector<16x63xf32> to vector<16x1xf32>
    %594 = vector.broadcast %593 : vector<16x1xf32> to vector<16x64xf32>
    %595 = arith.cmpf ole, %594, %4 : vector<16x64xf32>
    %596 = vector.extract_strided_slice %57 {offsets = [0, 35], sizes = [16, 1], strides = [1, 1]} : vector<16x63xf32> to vector<16x1xf32>
    %597 = vector.shape_cast %596 : vector<16x1xf32> to vector<16x1xf32>
    %598 = vector.broadcast %597 : vector<16x1xf32> to vector<16x64xf32>
    %599 = arith.select %595, %598, %584 : vector<16x64xi1>, vector<16x64xf32>
    %600 = vector.extract_strided_slice %62 {offsets = [0, 35], sizes = [16, 1], strides = [1, 1]} : vector<16x63xf32> to vector<16x1xf32>
    %601 = vector.shape_cast %600 : vector<16x1xf32> to vector<16x1xf32>
    %602 = vector.broadcast %601 : vector<16x1xf32> to vector<16x64xf32>
    %603 = arith.select %595, %602, %588 : vector<16x64xi1>, vector<16x64xf32>
    %604 = vector.extract_strided_slice %75 {offsets = [0, 35], sizes = [16, 1], strides = [1, 1]} : vector<16x63xf32> to vector<16x1xf32>
    %605 = vector.shape_cast %604 : vector<16x1xf32> to vector<16x1xf32>
    %606 = vector.broadcast %605 : vector<16x1xf32> to vector<16x64xf32>
    %607 = arith.select %595, %606, %592 : vector<16x64xi1>, vector<16x64xf32>
    %608 = vector.extract_strided_slice %57 {offsets = [0, 36], sizes = [16, 1], strides = [1, 1]} : vector<16x63xf32> to vector<16x1xf32>
    %609 = vector.broadcast %608 : vector<16x1xf32> to vector<16x64xf32>
    %610 = arith.cmpf ole, %609, %4 : vector<16x64xf32>
    %611 = vector.extract_strided_slice %57 {offsets = [0, 36], sizes = [16, 1], strides = [1, 1]} : vector<16x63xf32> to vector<16x1xf32>
    %612 = vector.shape_cast %611 : vector<16x1xf32> to vector<16x1xf32>
    %613 = vector.broadcast %612 : vector<16x1xf32> to vector<16x64xf32>
    %614 = arith.select %610, %613, %599 : vector<16x64xi1>, vector<16x64xf32>
    %615 = vector.extract_strided_slice %62 {offsets = [0, 36], sizes = [16, 1], strides = [1, 1]} : vector<16x63xf32> to vector<16x1xf32>
    %616 = vector.shape_cast %615 : vector<16x1xf32> to vector<16x1xf32>
    %617 = vector.broadcast %616 : vector<16x1xf32> to vector<16x64xf32>
    %618 = arith.select %610, %617, %603 : vector<16x64xi1>, vector<16x64xf32>
    %619 = vector.extract_strided_slice %75 {offsets = [0, 36], sizes = [16, 1], strides = [1, 1]} : vector<16x63xf32> to vector<16x1xf32>
    %620 = vector.shape_cast %619 : vector<16x1xf32> to vector<16x1xf32>
    %621 = vector.broadcast %620 : vector<16x1xf32> to vector<16x64xf32>
    %622 = arith.select %610, %621, %607 : vector<16x64xi1>, vector<16x64xf32>
    %623 = vector.extract_strided_slice %57 {offsets = [0, 37], sizes = [16, 1], strides = [1, 1]} : vector<16x63xf32> to vector<16x1xf32>
    %624 = vector.broadcast %623 : vector<16x1xf32> to vector<16x64xf32>
    %625 = arith.cmpf ole, %624, %4 : vector<16x64xf32>
    %626 = vector.extract_strided_slice %57 {offsets = [0, 37], sizes = [16, 1], strides = [1, 1]} : vector<16x63xf32> to vector<16x1xf32>
    %627 = vector.shape_cast %626 : vector<16x1xf32> to vector<16x1xf32>
    %628 = vector.broadcast %627 : vector<16x1xf32> to vector<16x64xf32>
    %629 = arith.select %625, %628, %614 : vector<16x64xi1>, vector<16x64xf32>
    %630 = vector.extract_strided_slice %62 {offsets = [0, 37], sizes = [16, 1], strides = [1, 1]} : vector<16x63xf32> to vector<16x1xf32>
    %631 = vector.shape_cast %630 : vector<16x1xf32> to vector<16x1xf32>
    %632 = vector.broadcast %631 : vector<16x1xf32> to vector<16x64xf32>
    %633 = arith.select %625, %632, %618 : vector<16x64xi1>, vector<16x64xf32>
    %634 = vector.extract_strided_slice %75 {offsets = [0, 37], sizes = [16, 1], strides = [1, 1]} : vector<16x63xf32> to vector<16x1xf32>
    %635 = vector.shape_cast %634 : vector<16x1xf32> to vector<16x1xf32>
    %636 = vector.broadcast %635 : vector<16x1xf32> to vector<16x64xf32>
    %637 = arith.select %625, %636, %622 : vector<16x64xi1>, vector<16x64xf32>
    %638 = vector.extract_strided_slice %57 {offsets = [0, 38], sizes = [16, 1], strides = [1, 1]} : vector<16x63xf32> to vector<16x1xf32>
    %639 = vector.broadcast %638 : vector<16x1xf32> to vector<16x64xf32>
    %640 = arith.cmpf ole, %639, %4 : vector<16x64xf32>
    %641 = vector.extract_strided_slice %57 {offsets = [0, 38], sizes = [16, 1], strides = [1, 1]} : vector<16x63xf32> to vector<16x1xf32>
    %642 = vector.shape_cast %641 : vector<16x1xf32> to vector<16x1xf32>
    %643 = vector.broadcast %642 : vector<16x1xf32> to vector<16x64xf32>
    %644 = arith.select %640, %643, %629 : vector<16x64xi1>, vector<16x64xf32>
    %645 = vector.extract_strided_slice %62 {offsets = [0, 38], sizes = [16, 1], strides = [1, 1]} : vector<16x63xf32> to vector<16x1xf32>
    %646 = vector.shape_cast %645 : vector<16x1xf32> to vector<16x1xf32>
    %647 = vector.broadcast %646 : vector<16x1xf32> to vector<16x64xf32>
    %648 = arith.select %640, %647, %633 : vector<16x64xi1>, vector<16x64xf32>
    %649 = vector.extract_strided_slice %75 {offsets = [0, 38], sizes = [16, 1], strides = [1, 1]} : vector<16x63xf32> to vector<16x1xf32>
    %650 = vector.shape_cast %649 : vector<16x1xf32> to vector<16x1xf32>
    %651 = vector.broadcast %650 : vector<16x1xf32> to vector<16x64xf32>
    %652 = arith.select %640, %651, %637 : vector<16x64xi1>, vector<16x64xf32>
    %653 = vector.extract_strided_slice %57 {offsets = [0, 39], sizes = [16, 1], strides = [1, 1]} : vector<16x63xf32> to vector<16x1xf32>
    %654 = vector.broadcast %653 : vector<16x1xf32> to vector<16x64xf32>
    %655 = arith.cmpf ole, %654, %4 : vector<16x64xf32>
    %656 = vector.extract_strided_slice %57 {offsets = [0, 39], sizes = [16, 1], strides = [1, 1]} : vector<16x63xf32> to vector<16x1xf32>
    %657 = vector.shape_cast %656 : vector<16x1xf32> to vector<16x1xf32>
    %658 = vector.broadcast %657 : vector<16x1xf32> to vector<16x64xf32>
    %659 = arith.select %655, %658, %644 : vector<16x64xi1>, vector<16x64xf32>
    %660 = vector.extract_strided_slice %62 {offsets = [0, 39], sizes = [16, 1], strides = [1, 1]} : vector<16x63xf32> to vector<16x1xf32>
    %661 = vector.shape_cast %660 : vector<16x1xf32> to vector<16x1xf32>
    %662 = vector.broadcast %661 : vector<16x1xf32> to vector<16x64xf32>
    %663 = arith.select %655, %662, %648 : vector<16x64xi1>, vector<16x64xf32>
    %664 = vector.extract_strided_slice %75 {offsets = [0, 39], sizes = [16, 1], strides = [1, 1]} : vector<16x63xf32> to vector<16x1xf32>
    %665 = vector.shape_cast %664 : vector<16x1xf32> to vector<16x1xf32>
    %666 = vector.broadcast %665 : vector<16x1xf32> to vector<16x64xf32>
    %667 = arith.select %655, %666, %652 : vector<16x64xi1>, vector<16x64xf32>
    %668 = vector.extract_strided_slice %57 {offsets = [0, 40], sizes = [16, 1], strides = [1, 1]} : vector<16x63xf32> to vector<16x1xf32>
    %669 = vector.broadcast %668 : vector<16x1xf32> to vector<16x64xf32>
    %670 = arith.cmpf ole, %669, %4 : vector<16x64xf32>
    %671 = vector.extract_strided_slice %57 {offsets = [0, 40], sizes = [16, 1], strides = [1, 1]} : vector<16x63xf32> to vector<16x1xf32>
    %672 = vector.shape_cast %671 : vector<16x1xf32> to vector<16x1xf32>
    %673 = vector.broadcast %672 : vector<16x1xf32> to vector<16x64xf32>
    %674 = arith.select %670, %673, %659 : vector<16x64xi1>, vector<16x64xf32>
    %675 = vector.extract_strided_slice %62 {offsets = [0, 40], sizes = [16, 1], strides = [1, 1]} : vector<16x63xf32> to vector<16x1xf32>
    %676 = vector.shape_cast %675 : vector<16x1xf32> to vector<16x1xf32>
    %677 = vector.broadcast %676 : vector<16x1xf32> to vector<16x64xf32>
    %678 = arith.select %670, %677, %663 : vector<16x64xi1>, vector<16x64xf32>
    %679 = vector.extract_strided_slice %75 {offsets = [0, 40], sizes = [16, 1], strides = [1, 1]} : vector<16x63xf32> to vector<16x1xf32>
    %680 = vector.shape_cast %679 : vector<16x1xf32> to vector<16x1xf32>
    %681 = vector.broadcast %680 : vector<16x1xf32> to vector<16x64xf32>
    %682 = arith.select %670, %681, %667 : vector<16x64xi1>, vector<16x64xf32>
    %683 = vector.extract_strided_slice %57 {offsets = [0, 41], sizes = [16, 1], strides = [1, 1]} : vector<16x63xf32> to vector<16x1xf32>
    %684 = vector.broadcast %683 : vector<16x1xf32> to vector<16x64xf32>
    %685 = arith.cmpf ole, %684, %4 : vector<16x64xf32>
    %686 = vector.extract_strided_slice %57 {offsets = [0, 41], sizes = [16, 1], strides = [1, 1]} : vector<16x63xf32> to vector<16x1xf32>
    %687 = vector.shape_cast %686 : vector<16x1xf32> to vector<16x1xf32>
    %688 = vector.broadcast %687 : vector<16x1xf32> to vector<16x64xf32>
    %689 = arith.select %685, %688, %674 : vector<16x64xi1>, vector<16x64xf32>
    %690 = vector.extract_strided_slice %62 {offsets = [0, 41], sizes = [16, 1], strides = [1, 1]} : vector<16x63xf32> to vector<16x1xf32>
    %691 = vector.shape_cast %690 : vector<16x1xf32> to vector<16x1xf32>
    %692 = vector.broadcast %691 : vector<16x1xf32> to vector<16x64xf32>
    %693 = arith.select %685, %692, %678 : vector<16x64xi1>, vector<16x64xf32>
    %694 = vector.extract_strided_slice %75 {offsets = [0, 41], sizes = [16, 1], strides = [1, 1]} : vector<16x63xf32> to vector<16x1xf32>
    %695 = vector.shape_cast %694 : vector<16x1xf32> to vector<16x1xf32>
    %696 = vector.broadcast %695 : vector<16x1xf32> to vector<16x64xf32>
    %697 = arith.select %685, %696, %682 : vector<16x64xi1>, vector<16x64xf32>
    %698 = vector.extract_strided_slice %57 {offsets = [0, 42], sizes = [16, 1], strides = [1, 1]} : vector<16x63xf32> to vector<16x1xf32>
    %699 = vector.broadcast %698 : vector<16x1xf32> to vector<16x64xf32>
    %700 = arith.cmpf ole, %699, %4 : vector<16x64xf32>
    %701 = vector.extract_strided_slice %57 {offsets = [0, 42], sizes = [16, 1], strides = [1, 1]} : vector<16x63xf32> to vector<16x1xf32>
    %702 = vector.shape_cast %701 : vector<16x1xf32> to vector<16x1xf32>
    %703 = vector.broadcast %702 : vector<16x1xf32> to vector<16x64xf32>
    %704 = arith.select %700, %703, %689 : vector<16x64xi1>, vector<16x64xf32>
    %705 = vector.extract_strided_slice %62 {offsets = [0, 42], sizes = [16, 1], strides = [1, 1]} : vector<16x63xf32> to vector<16x1xf32>
    %706 = vector.shape_cast %705 : vector<16x1xf32> to vector<16x1xf32>
    %707 = vector.broadcast %706 : vector<16x1xf32> to vector<16x64xf32>
    %708 = arith.select %700, %707, %693 : vector<16x64xi1>, vector<16x64xf32>
    %709 = vector.extract_strided_slice %75 {offsets = [0, 42], sizes = [16, 1], strides = [1, 1]} : vector<16x63xf32> to vector<16x1xf32>
    %710 = vector.shape_cast %709 : vector<16x1xf32> to vector<16x1xf32>
    %711 = vector.broadcast %710 : vector<16x1xf32> to vector<16x64xf32>
    %712 = arith.select %700, %711, %697 : vector<16x64xi1>, vector<16x64xf32>
    %713 = vector.extract_strided_slice %57 {offsets = [0, 43], sizes = [16, 1], strides = [1, 1]} : vector<16x63xf32> to vector<16x1xf32>
    %714 = vector.broadcast %713 : vector<16x1xf32> to vector<16x64xf32>
    %715 = arith.cmpf ole, %714, %4 : vector<16x64xf32>
    %716 = vector.extract_strided_slice %57 {offsets = [0, 43], sizes = [16, 1], strides = [1, 1]} : vector<16x63xf32> to vector<16x1xf32>
    %717 = vector.shape_cast %716 : vector<16x1xf32> to vector<16x1xf32>
    %718 = vector.broadcast %717 : vector<16x1xf32> to vector<16x64xf32>
    %719 = arith.select %715, %718, %704 : vector<16x64xi1>, vector<16x64xf32>
    %720 = vector.extract_strided_slice %62 {offsets = [0, 43], sizes = [16, 1], strides = [1, 1]} : vector<16x63xf32> to vector<16x1xf32>
    %721 = vector.shape_cast %720 : vector<16x1xf32> to vector<16x1xf32>
    %722 = vector.broadcast %721 : vector<16x1xf32> to vector<16x64xf32>
    %723 = arith.select %715, %722, %708 : vector<16x64xi1>, vector<16x64xf32>
    %724 = vector.extract_strided_slice %75 {offsets = [0, 43], sizes = [16, 1], strides = [1, 1]} : vector<16x63xf32> to vector<16x1xf32>
    %725 = vector.shape_cast %724 : vector<16x1xf32> to vector<16x1xf32>
    %726 = vector.broadcast %725 : vector<16x1xf32> to vector<16x64xf32>
    %727 = arith.select %715, %726, %712 : vector<16x64xi1>, vector<16x64xf32>
    %728 = vector.extract_strided_slice %57 {offsets = [0, 44], sizes = [16, 1], strides = [1, 1]} : vector<16x63xf32> to vector<16x1xf32>
    %729 = vector.broadcast %728 : vector<16x1xf32> to vector<16x64xf32>
    %730 = arith.cmpf ole, %729, %4 : vector<16x64xf32>
    %731 = vector.extract_strided_slice %57 {offsets = [0, 44], sizes = [16, 1], strides = [1, 1]} : vector<16x63xf32> to vector<16x1xf32>
    %732 = vector.shape_cast %731 : vector<16x1xf32> to vector<16x1xf32>
    %733 = vector.broadcast %732 : vector<16x1xf32> to vector<16x64xf32>
    %734 = arith.select %730, %733, %719 : vector<16x64xi1>, vector<16x64xf32>
    %735 = vector.extract_strided_slice %62 {offsets = [0, 44], sizes = [16, 1], strides = [1, 1]} : vector<16x63xf32> to vector<16x1xf32>
    %736 = vector.shape_cast %735 : vector<16x1xf32> to vector<16x1xf32>
    %737 = vector.broadcast %736 : vector<16x1xf32> to vector<16x64xf32>
    %738 = arith.select %730, %737, %723 : vector<16x64xi1>, vector<16x64xf32>
    %739 = vector.extract_strided_slice %75 {offsets = [0, 44], sizes = [16, 1], strides = [1, 1]} : vector<16x63xf32> to vector<16x1xf32>
    %740 = vector.shape_cast %739 : vector<16x1xf32> to vector<16x1xf32>
    %741 = vector.broadcast %740 : vector<16x1xf32> to vector<16x64xf32>
    %742 = arith.select %730, %741, %727 : vector<16x64xi1>, vector<16x64xf32>
    %743 = vector.extract_strided_slice %57 {offsets = [0, 45], sizes = [16, 1], strides = [1, 1]} : vector<16x63xf32> to vector<16x1xf32>
    %744 = vector.broadcast %743 : vector<16x1xf32> to vector<16x64xf32>
    %745 = arith.cmpf ole, %744, %4 : vector<16x64xf32>
    %746 = vector.extract_strided_slice %57 {offsets = [0, 45], sizes = [16, 1], strides = [1, 1]} : vector<16x63xf32> to vector<16x1xf32>
    %747 = vector.shape_cast %746 : vector<16x1xf32> to vector<16x1xf32>
    %748 = vector.broadcast %747 : vector<16x1xf32> to vector<16x64xf32>
    %749 = arith.select %745, %748, %734 : vector<16x64xi1>, vector<16x64xf32>
    %750 = vector.extract_strided_slice %62 {offsets = [0, 45], sizes = [16, 1], strides = [1, 1]} : vector<16x63xf32> to vector<16x1xf32>
    %751 = vector.shape_cast %750 : vector<16x1xf32> to vector<16x1xf32>
    %752 = vector.broadcast %751 : vector<16x1xf32> to vector<16x64xf32>
    %753 = arith.select %745, %752, %738 : vector<16x64xi1>, vector<16x64xf32>
    %754 = vector.extract_strided_slice %75 {offsets = [0, 45], sizes = [16, 1], strides = [1, 1]} : vector<16x63xf32> to vector<16x1xf32>
    %755 = vector.shape_cast %754 : vector<16x1xf32> to vector<16x1xf32>
    %756 = vector.broadcast %755 : vector<16x1xf32> to vector<16x64xf32>
    %757 = arith.select %745, %756, %742 : vector<16x64xi1>, vector<16x64xf32>
    %758 = vector.extract_strided_slice %57 {offsets = [0, 46], sizes = [16, 1], strides = [1, 1]} : vector<16x63xf32> to vector<16x1xf32>
    %759 = vector.broadcast %758 : vector<16x1xf32> to vector<16x64xf32>
    %760 = arith.cmpf ole, %759, %4 : vector<16x64xf32>
    %761 = vector.extract_strided_slice %57 {offsets = [0, 46], sizes = [16, 1], strides = [1, 1]} : vector<16x63xf32> to vector<16x1xf32>
    %762 = vector.shape_cast %761 : vector<16x1xf32> to vector<16x1xf32>
    %763 = vector.broadcast %762 : vector<16x1xf32> to vector<16x64xf32>
    %764 = arith.select %760, %763, %749 : vector<16x64xi1>, vector<16x64xf32>
    %765 = vector.extract_strided_slice %62 {offsets = [0, 46], sizes = [16, 1], strides = [1, 1]} : vector<16x63xf32> to vector<16x1xf32>
    %766 = vector.shape_cast %765 : vector<16x1xf32> to vector<16x1xf32>
    %767 = vector.broadcast %766 : vector<16x1xf32> to vector<16x64xf32>
    %768 = arith.select %760, %767, %753 : vector<16x64xi1>, vector<16x64xf32>
    %769 = vector.extract_strided_slice %75 {offsets = [0, 46], sizes = [16, 1], strides = [1, 1]} : vector<16x63xf32> to vector<16x1xf32>
    %770 = vector.shape_cast %769 : vector<16x1xf32> to vector<16x1xf32>
    %771 = vector.broadcast %770 : vector<16x1xf32> to vector<16x64xf32>
    %772 = arith.select %760, %771, %757 : vector<16x64xi1>, vector<16x64xf32>
    %773 = vector.extract_strided_slice %57 {offsets = [0, 47], sizes = [16, 1], strides = [1, 1]} : vector<16x63xf32> to vector<16x1xf32>
    %774 = vector.broadcast %773 : vector<16x1xf32> to vector<16x64xf32>
    %775 = arith.cmpf ole, %774, %4 : vector<16x64xf32>
    %776 = vector.extract_strided_slice %57 {offsets = [0, 47], sizes = [16, 1], strides = [1, 1]} : vector<16x63xf32> to vector<16x1xf32>
    %777 = vector.shape_cast %776 : vector<16x1xf32> to vector<16x1xf32>
    %778 = vector.broadcast %777 : vector<16x1xf32> to vector<16x64xf32>
    %779 = arith.select %775, %778, %764 : vector<16x64xi1>, vector<16x64xf32>
    %780 = vector.extract_strided_slice %62 {offsets = [0, 47], sizes = [16, 1], strides = [1, 1]} : vector<16x63xf32> to vector<16x1xf32>
    %781 = vector.shape_cast %780 : vector<16x1xf32> to vector<16x1xf32>
    %782 = vector.broadcast %781 : vector<16x1xf32> to vector<16x64xf32>
    %783 = arith.select %775, %782, %768 : vector<16x64xi1>, vector<16x64xf32>
    %784 = vector.extract_strided_slice %75 {offsets = [0, 47], sizes = [16, 1], strides = [1, 1]} : vector<16x63xf32> to vector<16x1xf32>
    %785 = vector.shape_cast %784 : vector<16x1xf32> to vector<16x1xf32>
    %786 = vector.broadcast %785 : vector<16x1xf32> to vector<16x64xf32>
    %787 = arith.select %775, %786, %772 : vector<16x64xi1>, vector<16x64xf32>
    %788 = vector.extract_strided_slice %57 {offsets = [0, 48], sizes = [16, 1], strides = [1, 1]} : vector<16x63xf32> to vector<16x1xf32>
    %789 = vector.broadcast %788 : vector<16x1xf32> to vector<16x64xf32>
    %790 = arith.cmpf ole, %789, %4 : vector<16x64xf32>
    %791 = vector.extract_strided_slice %57 {offsets = [0, 48], sizes = [16, 1], strides = [1, 1]} : vector<16x63xf32> to vector<16x1xf32>
    %792 = vector.shape_cast %791 : vector<16x1xf32> to vector<16x1xf32>
    %793 = vector.broadcast %792 : vector<16x1xf32> to vector<16x64xf32>
    %794 = arith.select %790, %793, %779 : vector<16x64xi1>, vector<16x64xf32>
    %795 = vector.extract_strided_slice %62 {offsets = [0, 48], sizes = [16, 1], strides = [1, 1]} : vector<16x63xf32> to vector<16x1xf32>
    %796 = vector.shape_cast %795 : vector<16x1xf32> to vector<16x1xf32>
    %797 = vector.broadcast %796 : vector<16x1xf32> to vector<16x64xf32>
    %798 = arith.select %790, %797, %783 : vector<16x64xi1>, vector<16x64xf32>
    %799 = vector.extract_strided_slice %75 {offsets = [0, 48], sizes = [16, 1], strides = [1, 1]} : vector<16x63xf32> to vector<16x1xf32>
    %800 = vector.shape_cast %799 : vector<16x1xf32> to vector<16x1xf32>
    %801 = vector.broadcast %800 : vector<16x1xf32> to vector<16x64xf32>
    %802 = arith.select %790, %801, %787 : vector<16x64xi1>, vector<16x64xf32>
    %803 = vector.extract_strided_slice %57 {offsets = [0, 49], sizes = [16, 1], strides = [1, 1]} : vector<16x63xf32> to vector<16x1xf32>
    %804 = vector.broadcast %803 : vector<16x1xf32> to vector<16x64xf32>
    %805 = arith.cmpf ole, %804, %4 : vector<16x64xf32>
    %806 = vector.extract_strided_slice %57 {offsets = [0, 49], sizes = [16, 1], strides = [1, 1]} : vector<16x63xf32> to vector<16x1xf32>
    %807 = vector.shape_cast %806 : vector<16x1xf32> to vector<16x1xf32>
    %808 = vector.broadcast %807 : vector<16x1xf32> to vector<16x64xf32>
    %809 = arith.select %805, %808, %794 : vector<16x64xi1>, vector<16x64xf32>
    %810 = vector.extract_strided_slice %62 {offsets = [0, 49], sizes = [16, 1], strides = [1, 1]} : vector<16x63xf32> to vector<16x1xf32>
    %811 = vector.shape_cast %810 : vector<16x1xf32> to vector<16x1xf32>
    %812 = vector.broadcast %811 : vector<16x1xf32> to vector<16x64xf32>
    %813 = arith.select %805, %812, %798 : vector<16x64xi1>, vector<16x64xf32>
    %814 = vector.extract_strided_slice %75 {offsets = [0, 49], sizes = [16, 1], strides = [1, 1]} : vector<16x63xf32> to vector<16x1xf32>
    %815 = vector.shape_cast %814 : vector<16x1xf32> to vector<16x1xf32>
    %816 = vector.broadcast %815 : vector<16x1xf32> to vector<16x64xf32>
    %817 = arith.select %805, %816, %802 : vector<16x64xi1>, vector<16x64xf32>
    %818 = vector.extract_strided_slice %57 {offsets = [0, 50], sizes = [16, 1], strides = [1, 1]} : vector<16x63xf32> to vector<16x1xf32>
    %819 = vector.broadcast %818 : vector<16x1xf32> to vector<16x64xf32>
    %820 = arith.cmpf ole, %819, %4 : vector<16x64xf32>
    %821 = vector.extract_strided_slice %57 {offsets = [0, 50], sizes = [16, 1], strides = [1, 1]} : vector<16x63xf32> to vector<16x1xf32>
    %822 = vector.shape_cast %821 : vector<16x1xf32> to vector<16x1xf32>
    %823 = vector.broadcast %822 : vector<16x1xf32> to vector<16x64xf32>
    %824 = arith.select %820, %823, %809 : vector<16x64xi1>, vector<16x64xf32>
    %825 = vector.extract_strided_slice %62 {offsets = [0, 50], sizes = [16, 1], strides = [1, 1]} : vector<16x63xf32> to vector<16x1xf32>
    %826 = vector.shape_cast %825 : vector<16x1xf32> to vector<16x1xf32>
    %827 = vector.broadcast %826 : vector<16x1xf32> to vector<16x64xf32>
    %828 = arith.select %820, %827, %813 : vector<16x64xi1>, vector<16x64xf32>
    %829 = vector.extract_strided_slice %75 {offsets = [0, 50], sizes = [16, 1], strides = [1, 1]} : vector<16x63xf32> to vector<16x1xf32>
    %830 = vector.shape_cast %829 : vector<16x1xf32> to vector<16x1xf32>
    %831 = vector.broadcast %830 : vector<16x1xf32> to vector<16x64xf32>
    %832 = arith.select %820, %831, %817 : vector<16x64xi1>, vector<16x64xf32>
    %833 = vector.extract_strided_slice %57 {offsets = [0, 51], sizes = [16, 1], strides = [1, 1]} : vector<16x63xf32> to vector<16x1xf32>
    %834 = vector.broadcast %833 : vector<16x1xf32> to vector<16x64xf32>
    %835 = arith.cmpf ole, %834, %4 : vector<16x64xf32>
    %836 = vector.extract_strided_slice %57 {offsets = [0, 51], sizes = [16, 1], strides = [1, 1]} : vector<16x63xf32> to vector<16x1xf32>
    %837 = vector.shape_cast %836 : vector<16x1xf32> to vector<16x1xf32>
    %838 = vector.broadcast %837 : vector<16x1xf32> to vector<16x64xf32>
    %839 = arith.select %835, %838, %824 : vector<16x64xi1>, vector<16x64xf32>
    %840 = vector.extract_strided_slice %62 {offsets = [0, 51], sizes = [16, 1], strides = [1, 1]} : vector<16x63xf32> to vector<16x1xf32>
    %841 = vector.shape_cast %840 : vector<16x1xf32> to vector<16x1xf32>
    %842 = vector.broadcast %841 : vector<16x1xf32> to vector<16x64xf32>
    %843 = arith.select %835, %842, %828 : vector<16x64xi1>, vector<16x64xf32>
    %844 = vector.extract_strided_slice %75 {offsets = [0, 51], sizes = [16, 1], strides = [1, 1]} : vector<16x63xf32> to vector<16x1xf32>
    %845 = vector.shape_cast %844 : vector<16x1xf32> to vector<16x1xf32>
    %846 = vector.broadcast %845 : vector<16x1xf32> to vector<16x64xf32>
    %847 = arith.select %835, %846, %832 : vector<16x64xi1>, vector<16x64xf32>
    %848 = vector.extract_strided_slice %57 {offsets = [0, 52], sizes = [16, 1], strides = [1, 1]} : vector<16x63xf32> to vector<16x1xf32>
    %849 = vector.broadcast %848 : vector<16x1xf32> to vector<16x64xf32>
    %850 = arith.cmpf ole, %849, %4 : vector<16x64xf32>
    %851 = vector.extract_strided_slice %57 {offsets = [0, 52], sizes = [16, 1], strides = [1, 1]} : vector<16x63xf32> to vector<16x1xf32>
    %852 = vector.shape_cast %851 : vector<16x1xf32> to vector<16x1xf32>
    %853 = vector.broadcast %852 : vector<16x1xf32> to vector<16x64xf32>
    %854 = arith.select %850, %853, %839 : vector<16x64xi1>, vector<16x64xf32>
    %855 = vector.extract_strided_slice %62 {offsets = [0, 52], sizes = [16, 1], strides = [1, 1]} : vector<16x63xf32> to vector<16x1xf32>
    %856 = vector.shape_cast %855 : vector<16x1xf32> to vector<16x1xf32>
    %857 = vector.broadcast %856 : vector<16x1xf32> to vector<16x64xf32>
    %858 = arith.select %850, %857, %843 : vector<16x64xi1>, vector<16x64xf32>
    %859 = vector.extract_strided_slice %75 {offsets = [0, 52], sizes = [16, 1], strides = [1, 1]} : vector<16x63xf32> to vector<16x1xf32>
    %860 = vector.shape_cast %859 : vector<16x1xf32> to vector<16x1xf32>
    %861 = vector.broadcast %860 : vector<16x1xf32> to vector<16x64xf32>
    %862 = arith.select %850, %861, %847 : vector<16x64xi1>, vector<16x64xf32>
    %863 = vector.extract_strided_slice %57 {offsets = [0, 53], sizes = [16, 1], strides = [1, 1]} : vector<16x63xf32> to vector<16x1xf32>
    %864 = vector.broadcast %863 : vector<16x1xf32> to vector<16x64xf32>
    %865 = arith.cmpf ole, %864, %4 : vector<16x64xf32>
    %866 = vector.extract_strided_slice %57 {offsets = [0, 53], sizes = [16, 1], strides = [1, 1]} : vector<16x63xf32> to vector<16x1xf32>
    %867 = vector.shape_cast %866 : vector<16x1xf32> to vector<16x1xf32>
    %868 = vector.broadcast %867 : vector<16x1xf32> to vector<16x64xf32>
    %869 = arith.select %865, %868, %854 : vector<16x64xi1>, vector<16x64xf32>
    %870 = vector.extract_strided_slice %62 {offsets = [0, 53], sizes = [16, 1], strides = [1, 1]} : vector<16x63xf32> to vector<16x1xf32>
    %871 = vector.shape_cast %870 : vector<16x1xf32> to vector<16x1xf32>
    %872 = vector.broadcast %871 : vector<16x1xf32> to vector<16x64xf32>
    %873 = arith.select %865, %872, %858 : vector<16x64xi1>, vector<16x64xf32>
    %874 = vector.extract_strided_slice %75 {offsets = [0, 53], sizes = [16, 1], strides = [1, 1]} : vector<16x63xf32> to vector<16x1xf32>
    %875 = vector.shape_cast %874 : vector<16x1xf32> to vector<16x1xf32>
    %876 = vector.broadcast %875 : vector<16x1xf32> to vector<16x64xf32>
    %877 = arith.select %865, %876, %862 : vector<16x64xi1>, vector<16x64xf32>
    %878 = vector.extract_strided_slice %57 {offsets = [0, 54], sizes = [16, 1], strides = [1, 1]} : vector<16x63xf32> to vector<16x1xf32>
    %879 = vector.broadcast %878 : vector<16x1xf32> to vector<16x64xf32>
    %880 = arith.cmpf ole, %879, %4 : vector<16x64xf32>
    %881 = vector.extract_strided_slice %57 {offsets = [0, 54], sizes = [16, 1], strides = [1, 1]} : vector<16x63xf32> to vector<16x1xf32>
    %882 = vector.shape_cast %881 : vector<16x1xf32> to vector<16x1xf32>
    %883 = vector.broadcast %882 : vector<16x1xf32> to vector<16x64xf32>
    %884 = arith.select %880, %883, %869 : vector<16x64xi1>, vector<16x64xf32>
    %885 = vector.extract_strided_slice %62 {offsets = [0, 54], sizes = [16, 1], strides = [1, 1]} : vector<16x63xf32> to vector<16x1xf32>
    %886 = vector.shape_cast %885 : vector<16x1xf32> to vector<16x1xf32>
    %887 = vector.broadcast %886 : vector<16x1xf32> to vector<16x64xf32>
    %888 = arith.select %880, %887, %873 : vector<16x64xi1>, vector<16x64xf32>
    %889 = vector.extract_strided_slice %75 {offsets = [0, 54], sizes = [16, 1], strides = [1, 1]} : vector<16x63xf32> to vector<16x1xf32>
    %890 = vector.shape_cast %889 : vector<16x1xf32> to vector<16x1xf32>
    %891 = vector.broadcast %890 : vector<16x1xf32> to vector<16x64xf32>
    %892 = arith.select %880, %891, %877 : vector<16x64xi1>, vector<16x64xf32>
    %893 = vector.extract_strided_slice %57 {offsets = [0, 55], sizes = [16, 1], strides = [1, 1]} : vector<16x63xf32> to vector<16x1xf32>
    %894 = vector.broadcast %893 : vector<16x1xf32> to vector<16x64xf32>
    %895 = arith.cmpf ole, %894, %4 : vector<16x64xf32>
    %896 = vector.extract_strided_slice %57 {offsets = [0, 55], sizes = [16, 1], strides = [1, 1]} : vector<16x63xf32> to vector<16x1xf32>
    %897 = vector.shape_cast %896 : vector<16x1xf32> to vector<16x1xf32>
    %898 = vector.broadcast %897 : vector<16x1xf32> to vector<16x64xf32>
    %899 = arith.select %895, %898, %884 : vector<16x64xi1>, vector<16x64xf32>
    %900 = vector.extract_strided_slice %62 {offsets = [0, 55], sizes = [16, 1], strides = [1, 1]} : vector<16x63xf32> to vector<16x1xf32>
    %901 = vector.shape_cast %900 : vector<16x1xf32> to vector<16x1xf32>
    %902 = vector.broadcast %901 : vector<16x1xf32> to vector<16x64xf32>
    %903 = arith.select %895, %902, %888 : vector<16x64xi1>, vector<16x64xf32>
    %904 = vector.extract_strided_slice %75 {offsets = [0, 55], sizes = [16, 1], strides = [1, 1]} : vector<16x63xf32> to vector<16x1xf32>
    %905 = vector.shape_cast %904 : vector<16x1xf32> to vector<16x1xf32>
    %906 = vector.broadcast %905 : vector<16x1xf32> to vector<16x64xf32>
    %907 = arith.select %895, %906, %892 : vector<16x64xi1>, vector<16x64xf32>
    %908 = vector.extract_strided_slice %57 {offsets = [0, 56], sizes = [16, 1], strides = [1, 1]} : vector<16x63xf32> to vector<16x1xf32>
    %909 = vector.broadcast %908 : vector<16x1xf32> to vector<16x64xf32>
    %910 = arith.cmpf ole, %909, %4 : vector<16x64xf32>
    %911 = vector.extract_strided_slice %57 {offsets = [0, 56], sizes = [16, 1], strides = [1, 1]} : vector<16x63xf32> to vector<16x1xf32>
    %912 = vector.shape_cast %911 : vector<16x1xf32> to vector<16x1xf32>
    %913 = vector.broadcast %912 : vector<16x1xf32> to vector<16x64xf32>
    %914 = arith.select %910, %913, %899 : vector<16x64xi1>, vector<16x64xf32>
    %915 = vector.extract_strided_slice %62 {offsets = [0, 56], sizes = [16, 1], strides = [1, 1]} : vector<16x63xf32> to vector<16x1xf32>
    %916 = vector.shape_cast %915 : vector<16x1xf32> to vector<16x1xf32>
    %917 = vector.broadcast %916 : vector<16x1xf32> to vector<16x64xf32>
    %918 = arith.select %910, %917, %903 : vector<16x64xi1>, vector<16x64xf32>
    %919 = vector.extract_strided_slice %75 {offsets = [0, 56], sizes = [16, 1], strides = [1, 1]} : vector<16x63xf32> to vector<16x1xf32>
    %920 = vector.shape_cast %919 : vector<16x1xf32> to vector<16x1xf32>
    %921 = vector.broadcast %920 : vector<16x1xf32> to vector<16x64xf32>
    %922 = arith.select %910, %921, %907 : vector<16x64xi1>, vector<16x64xf32>
    %923 = vector.extract_strided_slice %57 {offsets = [0, 57], sizes = [16, 1], strides = [1, 1]} : vector<16x63xf32> to vector<16x1xf32>
    %924 = vector.broadcast %923 : vector<16x1xf32> to vector<16x64xf32>
    %925 = arith.cmpf ole, %924, %4 : vector<16x64xf32>
    %926 = vector.extract_strided_slice %57 {offsets = [0, 57], sizes = [16, 1], strides = [1, 1]} : vector<16x63xf32> to vector<16x1xf32>
    %927 = vector.shape_cast %926 : vector<16x1xf32> to vector<16x1xf32>
    %928 = vector.broadcast %927 : vector<16x1xf32> to vector<16x64xf32>
    %929 = arith.select %925, %928, %914 : vector<16x64xi1>, vector<16x64xf32>
    %930 = vector.extract_strided_slice %62 {offsets = [0, 57], sizes = [16, 1], strides = [1, 1]} : vector<16x63xf32> to vector<16x1xf32>
    %931 = vector.shape_cast %930 : vector<16x1xf32> to vector<16x1xf32>
    %932 = vector.broadcast %931 : vector<16x1xf32> to vector<16x64xf32>
    %933 = arith.select %925, %932, %918 : vector<16x64xi1>, vector<16x64xf32>
    %934 = vector.extract_strided_slice %75 {offsets = [0, 57], sizes = [16, 1], strides = [1, 1]} : vector<16x63xf32> to vector<16x1xf32>
    %935 = vector.shape_cast %934 : vector<16x1xf32> to vector<16x1xf32>
    %936 = vector.broadcast %935 : vector<16x1xf32> to vector<16x64xf32>
    %937 = arith.select %925, %936, %922 : vector<16x64xi1>, vector<16x64xf32>
    %938 = vector.extract_strided_slice %57 {offsets = [0, 58], sizes = [16, 1], strides = [1, 1]} : vector<16x63xf32> to vector<16x1xf32>
    %939 = vector.broadcast %938 : vector<16x1xf32> to vector<16x64xf32>
    %940 = arith.cmpf ole, %939, %4 : vector<16x64xf32>
    %941 = vector.extract_strided_slice %57 {offsets = [0, 58], sizes = [16, 1], strides = [1, 1]} : vector<16x63xf32> to vector<16x1xf32>
    %942 = vector.shape_cast %941 : vector<16x1xf32> to vector<16x1xf32>
    %943 = vector.broadcast %942 : vector<16x1xf32> to vector<16x64xf32>
    %944 = arith.select %940, %943, %929 : vector<16x64xi1>, vector<16x64xf32>
    %945 = vector.extract_strided_slice %62 {offsets = [0, 58], sizes = [16, 1], strides = [1, 1]} : vector<16x63xf32> to vector<16x1xf32>
    %946 = vector.shape_cast %945 : vector<16x1xf32> to vector<16x1xf32>
    %947 = vector.broadcast %946 : vector<16x1xf32> to vector<16x64xf32>
    %948 = arith.select %940, %947, %933 : vector<16x64xi1>, vector<16x64xf32>
    %949 = vector.extract_strided_slice %75 {offsets = [0, 58], sizes = [16, 1], strides = [1, 1]} : vector<16x63xf32> to vector<16x1xf32>
    %950 = vector.shape_cast %949 : vector<16x1xf32> to vector<16x1xf32>
    %951 = vector.broadcast %950 : vector<16x1xf32> to vector<16x64xf32>
    %952 = arith.select %940, %951, %937 : vector<16x64xi1>, vector<16x64xf32>
    %953 = vector.extract_strided_slice %57 {offsets = [0, 59], sizes = [16, 1], strides = [1, 1]} : vector<16x63xf32> to vector<16x1xf32>
    %954 = vector.broadcast %953 : vector<16x1xf32> to vector<16x64xf32>
    %955 = arith.cmpf ole, %954, %4 : vector<16x64xf32>
    %956 = vector.extract_strided_slice %57 {offsets = [0, 59], sizes = [16, 1], strides = [1, 1]} : vector<16x63xf32> to vector<16x1xf32>
    %957 = vector.shape_cast %956 : vector<16x1xf32> to vector<16x1xf32>
    %958 = vector.broadcast %957 : vector<16x1xf32> to vector<16x64xf32>
    %959 = arith.select %955, %958, %944 : vector<16x64xi1>, vector<16x64xf32>
    %960 = vector.extract_strided_slice %62 {offsets = [0, 59], sizes = [16, 1], strides = [1, 1]} : vector<16x63xf32> to vector<16x1xf32>
    %961 = vector.shape_cast %960 : vector<16x1xf32> to vector<16x1xf32>
    %962 = vector.broadcast %961 : vector<16x1xf32> to vector<16x64xf32>
    %963 = arith.select %955, %962, %948 : vector<16x64xi1>, vector<16x64xf32>
    %964 = vector.extract_strided_slice %75 {offsets = [0, 59], sizes = [16, 1], strides = [1, 1]} : vector<16x63xf32> to vector<16x1xf32>
    %965 = vector.shape_cast %964 : vector<16x1xf32> to vector<16x1xf32>
    %966 = vector.broadcast %965 : vector<16x1xf32> to vector<16x64xf32>
    %967 = arith.select %955, %966, %952 : vector<16x64xi1>, vector<16x64xf32>
    %968 = vector.extract_strided_slice %57 {offsets = [0, 60], sizes = [16, 1], strides = [1, 1]} : vector<16x63xf32> to vector<16x1xf32>
    %969 = vector.broadcast %968 : vector<16x1xf32> to vector<16x64xf32>
    %970 = arith.cmpf ole, %969, %4 : vector<16x64xf32>
    %971 = vector.extract_strided_slice %57 {offsets = [0, 60], sizes = [16, 1], strides = [1, 1]} : vector<16x63xf32> to vector<16x1xf32>
    %972 = vector.shape_cast %971 : vector<16x1xf32> to vector<16x1xf32>
    %973 = vector.broadcast %972 : vector<16x1xf32> to vector<16x64xf32>
    %974 = arith.select %970, %973, %959 : vector<16x64xi1>, vector<16x64xf32>
    %975 = vector.extract_strided_slice %62 {offsets = [0, 60], sizes = [16, 1], strides = [1, 1]} : vector<16x63xf32> to vector<16x1xf32>
    %976 = vector.shape_cast %975 : vector<16x1xf32> to vector<16x1xf32>
    %977 = vector.broadcast %976 : vector<16x1xf32> to vector<16x64xf32>
    %978 = arith.select %970, %977, %963 : vector<16x64xi1>, vector<16x64xf32>
    %979 = vector.extract_strided_slice %75 {offsets = [0, 60], sizes = [16, 1], strides = [1, 1]} : vector<16x63xf32> to vector<16x1xf32>
    %980 = vector.shape_cast %979 : vector<16x1xf32> to vector<16x1xf32>
    %981 = vector.broadcast %980 : vector<16x1xf32> to vector<16x64xf32>
    %982 = arith.select %970, %981, %967 : vector<16x64xi1>, vector<16x64xf32>
    %983 = vector.extract_strided_slice %57 {offsets = [0, 61], sizes = [16, 1], strides = [1, 1]} : vector<16x63xf32> to vector<16x1xf32>
    %984 = vector.broadcast %983 : vector<16x1xf32> to vector<16x64xf32>
    %985 = arith.cmpf ole, %984, %4 : vector<16x64xf32>
    %986 = vector.extract_strided_slice %57 {offsets = [0, 61], sizes = [16, 1], strides = [1, 1]} : vector<16x63xf32> to vector<16x1xf32>
    %987 = vector.shape_cast %986 : vector<16x1xf32> to vector<16x1xf32>
    %988 = vector.broadcast %987 : vector<16x1xf32> to vector<16x64xf32>
    %989 = arith.select %985, %988, %974 : vector<16x64xi1>, vector<16x64xf32>
    %990 = vector.extract_strided_slice %62 {offsets = [0, 61], sizes = [16, 1], strides = [1, 1]} : vector<16x63xf32> to vector<16x1xf32>
    %991 = vector.shape_cast %990 : vector<16x1xf32> to vector<16x1xf32>
    %992 = vector.broadcast %991 : vector<16x1xf32> to vector<16x64xf32>
    %993 = arith.select %985, %992, %978 : vector<16x64xi1>, vector<16x64xf32>
    %994 = vector.extract_strided_slice %75 {offsets = [0, 61], sizes = [16, 1], strides = [1, 1]} : vector<16x63xf32> to vector<16x1xf32>
    %995 = vector.shape_cast %994 : vector<16x1xf32> to vector<16x1xf32>
    %996 = vector.broadcast %995 : vector<16x1xf32> to vector<16x64xf32>
    %997 = arith.select %985, %996, %982 : vector<16x64xi1>, vector<16x64xf32>
    %998 = vector.extract_strided_slice %57 {offsets = [0, 62], sizes = [16, 1], strides = [1, 1]} : vector<16x63xf32> to vector<16x1xf32>
    %999 = vector.broadcast %998 : vector<16x1xf32> to vector<16x64xf32>
    %1000 = arith.cmpf ole, %999, %4 : vector<16x64xf32>
    %1001 = vector.extract_strided_slice %57 {offsets = [0, 62], sizes = [16, 1], strides = [1, 1]} : vector<16x63xf32> to vector<16x1xf32>
    %1002 = vector.shape_cast %1001 : vector<16x1xf32> to vector<16x1xf32>
    %1003 = vector.broadcast %1002 : vector<16x1xf32> to vector<16x64xf32>
    %1004 = arith.select %1000, %1003, %989 : vector<16x64xi1>, vector<16x64xf32>
    %1005 = vector.extract_strided_slice %62 {offsets = [0, 62], sizes = [16, 1], strides = [1, 1]} : vector<16x63xf32> to vector<16x1xf32>
    %1006 = vector.shape_cast %1005 : vector<16x1xf32> to vector<16x1xf32>
    %1007 = vector.broadcast %1006 : vector<16x1xf32> to vector<16x64xf32>
    %1008 = arith.select %1000, %1007, %993 : vector<16x64xi1>, vector<16x64xf32>
    %1009 = vector.extract_strided_slice %75 {offsets = [0, 62], sizes = [16, 1], strides = [1, 1]} : vector<16x63xf32> to vector<16x1xf32>
    %1010 = vector.shape_cast %1009 : vector<16x1xf32> to vector<16x1xf32>
    %1011 = vector.broadcast %1010 : vector<16x1xf32> to vector<16x64xf32>
    %1012 = arith.select %1000, %1011, %997 : vector<16x64xi1>, vector<16x64xf32>
    %1013 = arith.subf %4, %1004 : vector<16x64xf32>
    %1014 = arith.mulf %1013, %1012 : vector<16x64xf32>
    %1015 = arith.addf %1008, %1014 : vector<16x64xf32>
    %1016 = tpu.concatenate %0, %1015 in 1 : vector<16x64xf32>, vector<16x64xf32> -> vector<16x128xf32>
    %1017 = tpu.iota {dimensions = array<i32: 1>} : vector<16x128xi32>
    %c64_i32 = arith.constant 64 : i32
    %1018 = tpu.dynamic_rotate %1016 by %c64_i32 dim 1 : vector<16x128xf32>, i32 -> vector<16x128xf32>
    %c64_i32_32 = arith.constant 64 : i32
    %1019 = tpu.dynamic_rotate %1016 by %c64_i32_32 dim 1 : vector<16x128xf32>, i32 -> vector<16x128xf32>
    %c64_i32_33 = arith.constant 64 : i32
    %1020 = vector.broadcast %c64_i32_33 : i32 to vector<16x128xi32>
    %1021 = arith.andi %1017, %1020 : vector<16x128xi32>
    %c0_i32 = arith.constant 0 : i32
    %1022 = vector.broadcast %c0_i32 : i32 to vector<16x128xi32>
    %1023 = arith.cmpi eq, %1021, %1022 : vector<16x128xi32>
    %1024 = arith.minimumf %1016, %1018 : vector<16x128xf32>
    %1025 = arith.maximumf %1016, %1019 : vector<16x128xf32>
    %1026 = arith.select %1023, %1024, %1025 : vector<16x128xi1>, vector<16x128xf32>
    %c96_i32 = arith.constant 96 : i32
    %1027 = tpu.dynamic_rotate %1026 by %c96_i32 dim 1 : vector<16x128xf32>, i32 -> vector<16x128xf32>
    %c32_i32_34 = arith.constant 32 : i32
    %1028 = tpu.dynamic_rotate %1026 by %c32_i32_34 dim 1 : vector<16x128xf32>, i32 -> vector<16x128xf32>
    %c32_i32_35 = arith.constant 32 : i32
    %1029 = vector.broadcast %c32_i32_35 : i32 to vector<16x128xi32>
    %1030 = arith.andi %1017, %1029 : vector<16x128xi32>
    %c0_i32_36 = arith.constant 0 : i32
    %1031 = vector.broadcast %c0_i32_36 : i32 to vector<16x128xi32>
    %1032 = arith.cmpi eq, %1030, %1031 : vector<16x128xi32>
    %1033 = arith.minimumf %1026, %1027 : vector<16x128xf32>
    %1034 = arith.maximumf %1026, %1028 : vector<16x128xf32>
    %1035 = arith.select %1032, %1033, %1034 : vector<16x128xi1>, vector<16x128xf32>
    %c112_i32 = arith.constant 112 : i32
    %1036 = tpu.dynamic_rotate %1035 by %c112_i32 dim 1 : vector<16x128xf32>, i32 -> vector<16x128xf32>
    %c16_i32_37 = arith.constant 16 : i32
    %1037 = tpu.dynamic_rotate %1035 by %c16_i32_37 dim 1 : vector<16x128xf32>, i32 -> vector<16x128xf32>
    %c16_i32_38 = arith.constant 16 : i32
    %1038 = vector.broadcast %c16_i32_38 : i32 to vector<16x128xi32>
    %1039 = arith.andi %1017, %1038 : vector<16x128xi32>
    %c0_i32_39 = arith.constant 0 : i32
    %1040 = vector.broadcast %c0_i32_39 : i32 to vector<16x128xi32>
    %1041 = arith.cmpi eq, %1039, %1040 : vector<16x128xi32>
    %1042 = arith.minimumf %1035, %1036 : vector<16x128xf32>
    %1043 = arith.maximumf %1035, %1037 : vector<16x128xf32>
    %1044 = arith.select %1041, %1042, %1043 : vector<16x128xi1>, vector<16x128xf32>
    %c120_i32 = arith.constant 120 : i32
    %1045 = tpu.dynamic_rotate %1044 by %c120_i32 dim 1 : vector<16x128xf32>, i32 -> vector<16x128xf32>
    %c8_i32_40 = arith.constant 8 : i32
    %1046 = tpu.dynamic_rotate %1044 by %c8_i32_40 dim 1 : vector<16x128xf32>, i32 -> vector<16x128xf32>
    %c8_i32_41 = arith.constant 8 : i32
    %1047 = vector.broadcast %c8_i32_41 : i32 to vector<16x128xi32>
    %1048 = arith.andi %1017, %1047 : vector<16x128xi32>
    %c0_i32_42 = arith.constant 0 : i32
    %1049 = vector.broadcast %c0_i32_42 : i32 to vector<16x128xi32>
    %1050 = arith.cmpi eq, %1048, %1049 : vector<16x128xi32>
    %1051 = arith.minimumf %1044, %1045 : vector<16x128xf32>
    %1052 = arith.maximumf %1044, %1046 : vector<16x128xf32>
    %1053 = arith.select %1050, %1051, %1052 : vector<16x128xi1>, vector<16x128xf32>
    %c124_i32 = arith.constant 124 : i32
    %1054 = tpu.dynamic_rotate %1053 by %c124_i32 dim 1 : vector<16x128xf32>, i32 -> vector<16x128xf32>
    %c4_i32_43 = arith.constant 4 : i32
    %1055 = tpu.dynamic_rotate %1053 by %c4_i32_43 dim 1 : vector<16x128xf32>, i32 -> vector<16x128xf32>
    %c4_i32_44 = arith.constant 4 : i32
    %1056 = vector.broadcast %c4_i32_44 : i32 to vector<16x128xi32>
    %1057 = arith.andi %1017, %1056 : vector<16x128xi32>
    %c0_i32_45 = arith.constant 0 : i32
    %1058 = vector.broadcast %c0_i32_45 : i32 to vector<16x128xi32>
    %1059 = arith.cmpi eq, %1057, %1058 : vector<16x128xi32>
    %1060 = arith.minimumf %1053, %1054 : vector<16x128xf32>
    %1061 = arith.maximumf %1053, %1055 : vector<16x128xf32>
    %1062 = arith.select %1059, %1060, %1061 : vector<16x128xi1>, vector<16x128xf32>
    %c126_i32 = arith.constant 126 : i32
    %1063 = tpu.dynamic_rotate %1062 by %c126_i32 dim 1 : vector<16x128xf32>, i32 -> vector<16x128xf32>
    %c2_i32_46 = arith.constant 2 : i32
    %1064 = tpu.dynamic_rotate %1062 by %c2_i32_46 dim 1 : vector<16x128xf32>, i32 -> vector<16x128xf32>
    %c2_i32_47 = arith.constant 2 : i32
    %1065 = vector.broadcast %c2_i32_47 : i32 to vector<16x128xi32>
    %1066 = arith.andi %1017, %1065 : vector<16x128xi32>
    %c0_i32_48 = arith.constant 0 : i32
    %1067 = vector.broadcast %c0_i32_48 : i32 to vector<16x128xi32>
    %1068 = arith.cmpi eq, %1066, %1067 : vector<16x128xi32>
    %1069 = arith.minimumf %1062, %1063 : vector<16x128xf32>
    %1070 = arith.maximumf %1062, %1064 : vector<16x128xf32>
    %1071 = arith.select %1068, %1069, %1070 : vector<16x128xi1>, vector<16x128xf32>
    %c127_i32 = arith.constant 127 : i32
    %1072 = tpu.dynamic_rotate %1071 by %c127_i32 dim 1 : vector<16x128xf32>, i32 -> vector<16x128xf32>
    %c1_i32_49 = arith.constant 1 : i32
    %1073 = tpu.dynamic_rotate %1071 by %c1_i32_49 dim 1 : vector<16x128xf32>, i32 -> vector<16x128xf32>
    %c1_i32_50 = arith.constant 1 : i32
    %1074 = vector.broadcast %c1_i32_50 : i32 to vector<16x128xi32>
    %1075 = arith.andi %1017, %1074 : vector<16x128xi32>
    %c0_i32_51 = arith.constant 0 : i32
    %1076 = vector.broadcast %c0_i32_51 : i32 to vector<16x128xi32>
    %1077 = arith.cmpi eq, %1075, %1076 : vector<16x128xi32>
    %1078 = arith.minimumf %1071, %1072 : vector<16x128xf32>
    %1079 = arith.maximumf %1071, %1073 : vector<16x128xf32>
    %1080 = arith.select %1077, %1078, %1079 : vector<16x128xi1>, vector<16x128xf32>
    %c0_52 = arith.constant 0 : index
    %c0_53 = arith.constant 0 : index
    %c0_54 = arith.constant 0 : index
    %1081 = vector.load %arg8[%c0_52, %c0_53, %c0_54] : memref<1x16x128xf32, #tpu.memory_space<vmem>>, vector<1x16x128xf32>
    %1082 = vector.shape_cast %1081 : vector<1x16x128xf32> to vector<16x128xf32>
    %1083 = vector.shape_cast %1080 : vector<16x128xf32> to vector<1x16x128xf32>
    tpu.vector_store %arg8[%c0_52, %c0_53, %c0_54], %1083 {strides = array<i32>} : memref<1x16x128xf32, #tpu.memory_space<vmem>>, vector<1x16x128xf32>,
    %1084 = vector.extract_strided_slice %8 {offsets = [0, 0], sizes = [16, 1], strides = [1, 1]} : vector<16x3xf32> to vector<16x1xf32>
    %1085 = vector.extract_strided_slice %6 {offsets = [0, 0], sizes = [16, 1], strides = [1, 1]} : vector<16x3xf32> to vector<16x1xf32>
    %1086 = vector.broadcast %1085 : vector<16x1xf32> to vector<16x128xf32>
    %1087 = arith.mulf %1086, %1080 : vector<16x128xf32>
    %1088 = vector.broadcast %1084 : vector<16x1xf32> to vector<16x128xf32>
    %1089 = arith.addf %1088, %1087 : vector<16x128xf32>
    %c0_55 = arith.constant 0 : index
    %c0_56 = arith.constant 0 : index
    %c0_57 = arith.constant 0 : index
    %c0_58 = arith.constant 0 : index
    %1090 = vector.load %arg7[%c0_55, %c0_56, %c0_57, %c0_58] : memref<1x3x16x128xf32, #tpu.memory_space<vmem>>, vector<1x1x16x128xf32>
    %1091 = vector.shape_cast %1090 : vector<1x1x16x128xf32> to vector<16x128xf32>
    %1092 = vector.shape_cast %1089 : vector<16x128xf32> to vector<1x1x16x128xf32>
    tpu.vector_store %arg7[%c0_55, %c0_56, %c0_57, %c0_58], %1092 {strides = array<i32>} : memref<1x3x16x128xf32, #tpu.memory_space<vmem>>, vector<1x1x16x128xf32>,
    %1093 = vector.extract_strided_slice %8 {offsets = [0, 1], sizes = [16, 1], strides = [1, 1]} : vector<16x3xf32> to vector<16x1xf32>
    %1094 = vector.extract_strided_slice %6 {offsets = [0, 1], sizes = [16, 1], strides = [1, 1]} : vector<16x3xf32> to vector<16x1xf32>
    %1095 = vector.broadcast %1094 : vector<16x1xf32> to vector<16x128xf32>
    %1096 = arith.mulf %1095, %1080 : vector<16x128xf32>
    %1097 = vector.broadcast %1093 : vector<16x1xf32> to vector<16x128xf32>
    %1098 = arith.addf %1097, %1096 : vector<16x128xf32>
    %c0_59 = arith.constant 0 : index
    %c1 = arith.constant 1 : index
    %c0_60 = arith.constant 0 : index
    %c0_61 = arith.constant 0 : index
    %1099 = vector.load %arg7[%c0_59, %c1, %c0_60, %c0_61] : memref<1x3x16x128xf32, #tpu.memory_space<vmem>>, vector<1x1x16x128xf32>
    %1100 = vector.shape_cast %1099 : vector<1x1x16x128xf32> to vector<16x128xf32>
    %1101 = vector.shape_cast %1098 : vector<16x128xf32> to vector<1x1x16x128xf32>
    tpu.vector_store %arg7[%c0_59, %c1, %c0_60, %c0_61], %1101 {strides = array<i32>} : memref<1x3x16x128xf32, #tpu.memory_space<vmem>>, vector<1x1x16x128xf32>,
    %1102 = vector.extract_strided_slice %8 {offsets = [0, 2], sizes = [16, 1], strides = [1, 1]} : vector<16x3xf32> to vector<16x1xf32>
    %1103 = vector.extract_strided_slice %6 {offsets = [0, 2], sizes = [16, 1], strides = [1, 1]} : vector<16x3xf32> to vector<16x1xf32>
    %1104 = vector.broadcast %1103 : vector<16x1xf32> to vector<16x128xf32>
    %1105 = arith.mulf %1104, %1080 : vector<16x128xf32>
    %1106 = vector.broadcast %1102 : vector<16x1xf32> to vector<16x128xf32>
    %1107 = arith.addf %1106, %1105 : vector<16x128xf32>
    %c0_62 = arith.constant 0 : index
    %c2 = arith.constant 2 : index
    %c0_63 = arith.constant 0 : index
    %c0_64 = arith.constant 0 : index
    %1108 = vector.load %arg7[%c0_62, %c2, %c0_63, %c0_64] : memref<1x3x16x128xf32, #tpu.memory_space<vmem>>, vector<1x1x16x128xf32>
    %1109 = vector.shape_cast %1108 : vector<1x1x16x128xf32> to vector<16x128xf32>
    %1110 = vector.shape_cast %1107 : vector<16x128xf32> to vector<1x1x16x128xf32>
    tpu.vector_store %arg7[%c0_62, %c2, %c0_63, %c0_64], %1110 {strides = array<i32>} : memref<1x3x16x128xf32, #tpu.memory_space<vmem>>, vector<1x1x16x128xf32>,
    return
  }
  func.func @transform_0(%arg0: i32, %arg1: i32) -> (i32, i32) {
    %c0_i32 = arith.constant 0 : i32
    %c0_i32_0 = arith.constant 0 : i32
    return %arg0, %c0_i32 : i32, i32
  }
  func.func @transform_1(%arg0: i32, %arg1: i32) -> (i32, i32, i32) {
    %c0_i32 = arith.constant 0 : i32
    %c0_i32_0 = arith.constant 0 : i32
    return %arg1, %arg0, %c0_i32 : i32, i32, i32
  }
  func.func @transform_2(%arg0: i32, %arg1: i32) -> (i32, i32, i32) {
    %c0_i32 = arith.constant 0 : i32
    %c0_i32_0 = arith.constant 0 : i32
    return %arg1, %arg0, %c0_i32 : i32, i32, i32
  }
  func.func @transform_3(%arg0: i32, %arg1: i32) -> (i32, i32, i32) {
    %c0_i32 = arith.constant 0 : i32
    %c0_i32_0 = arith.constant 0 : i32
    return %arg1, %arg0, %c0_i32 : i32, i32, i32
  }
  func.func @transform_4(%arg0: i32, %arg1: i32) -> (i32, i32, i32) {
    %c0_i32 = arith.constant 0 : i32
    %c0_i32_0 = arith.constant 0 : i32
    return %arg1, %arg0, %c0_i32 : i32, i32, i32
  }
  func.func @transform_5(%arg0: i32, %arg1: i32) -> (i32, i32, i32, i32) {
    %c0_i32 = arith.constant 0 : i32
    %c0_i32_0 = arith.constant 0 : i32
    %c0_i32_1 = arith.constant 0 : i32
    return %arg1, %c0_i32, %arg0, %c0_i32_0 : i32, i32, i32, i32
  }
  func.func @transform_6(%arg0: i32, %arg1: i32) -> (i32, i32, i32) {
    %c0_i32 = arith.constant 0 : i32
    %c0_i32_0 = arith.constant 0 : i32
    return %arg1, %arg0, %c0_i32 : i32, i32, i32
  }
}

</mosaic_0001>

<llo_original>
// kernel: tpu_custom_call.1
$region0: #{tpu_custom_call.1}
  #allocation0 [shape = 'u32[]', space=smem, size = 0x4, offset = 0x4, fixed_abs, tag = 'smem constant byte address 0x4 - core index']
  #allocation1 [shape = 'u32[144,128]{1,0:T(1,128)}', space=vmem, size = 0x12000, scoped, tag = 'internal scratch']
  %s0 = inlined_call_operand.hbm [shape: f32[16,64], index: 0, kind: input, shape index: {}]
  %s1 = inlined_call_operand.vmem [shape: f32[2,16,64], index: 1, kind: input, shape index: {}]
  %s2 = inlined_call_operand.vmem [shape: f32[2,16,64], index: 2, kind: input, shape index: {}]
  %s3 = inlined_call_operand.vmem [shape: f32[2,16,3], index: 3, kind: input, shape index: {}]
  %s4 = inlined_call_operand.vmem [shape: f32[2,16,3], index: 4, kind: input, shape index: {}]
  %s5 = inlined_call_operand.hbm [shape: f32[2,3,16,128], index: 5, kind: output, shape index: {0}]
  %s6 = inlined_call_operand.hbm [shape: f32[2,16,128], index: 6, kind: output, shape index: {1}]
  %7 = xla_tuple %s5, %s6
  %s8 = sld [smem:[#allocation0]]
  $region65: #{tpu_custom_call.1} parent=0
    _
  %s10 = ssub.s32 1, %s8
  %s11 = scalar_select 0, %s10, %s8
  $region1: #{tpu_custom_call.1} parent=0
    #allocation2 [shape = 'u8[8192]{0}', space=vmem, size = 0x2000, scoped, tag = 'input window, operand 0, single buffered']
    #allocation3 [shape = 's32[2]{0}', space=sflag, size = 0x8, scoped, tag = 'scoped memory for tpu_custom_call.1']
    #allocation4 [shape = 's32[2]{0}', space=sflag, size = 0x8, scoped, tag = 'scoped memory for tpu_custom_call.1']
    #allocation5 [shape = 'u8[49152]{0}', space=vmem, size = 0xc000, scoped, tag = 'output window, operand 0']
    #allocation6 [shape = 'u8[16384]{0}', space=vmem, size = 0x4000, scoped, tag = 'output window, operand 1']
    #allocation7 [shape = 's32[2]{0}', space=sflag, size = 0x8, scoped, tag = 'scoped memory for tpu_custom_call.1']
    %12 = vsyncpa [#allocation3], 0
    %13 = vsyncpa [#allocation4], 0
    %s14 = scalar_lea.sflag [#allocation4], 1
    %15 = vsyncpa %s14, 0
    %16 = vsyncpa [#allocation7], 0
    %s17 = scalar_lea.sflag [#allocation7], 1
    %18 = vsyncpa %s17, 0
    loop: start=0, step=1, limit=4
    $region2: #{tpu_custom_call.1} parent=1 // loop_pre_header
      _
    $region3: #{tpu_custom_call.1} parent=1 // loop_header
      %s20 = sphi 0, %s24
      %p21 = scmp.ge.s32.totalorder %s20, 4
      %s27 = sphi 0, %s39
      %s28 = sphi 0, %s35
      %s29 = sphi 0, %s27
      %s30 = sphi 0, %s28
      %s31 = sphi 0, %s29
      %s32 = sphi 0, %s30
      %s42 = sphi 0, %s44
      %s45 = sphi 0, %s42
      %s46 = sphi 0, %s45
      %s62 = sphi 0, %s46
      %s70 = sphi 0, %s72
      %s73 = sphi 0, %s70
      %s74 = sphi 0, %s73
      %s90 = sphi 0, %s74
      %s98 = sphi 0, %s100
      %s101 = sphi 0, %s98
      %s102 = sphi 0, %s101
      %s118 = sphi 0, %s102
      %s126 = sphi 0, %s128
      %s129 = sphi 0, %s126
      %s130 = sphi 0, %s129
      %s146 = sphi 0, %s130
      %s154 = sphi 0, %s156
      %s157 = sphi 0, %s154
      %s158 = sphi 0, %s157
      %s174 = sphi 0, %s158
      %s182 = sphi 0, %s184
      %s185 = sphi 0, %s182
      %s186 = sphi 0, %s185
      %s202 = sphi 0, %s186
      %s210 = sphi 0, %s212
      %s213 = sphi 0, %s210
      %s214 = sphi 0, %s213
      %s230 = sphi 0, %s214
    $region4: #{tpu_custom_call.1} parent=1 // loop_header_branch
      %23 = sbr.rel (%p21) target = $region8
    $region5: #{tpu_custom_call.1} parent=1 // loop_body
      %s25 = ssub.s32 %s20, 1
      %s26 = ssub.s32 %s20, 2
      %s33 = sadd.s32 1, %s28
      %p34 = scmp.ge.s32.totalorder %s33, 2
      %s35 = scalar_select %p34, 0, %s33
      %s36 = sadd.s32 1, %s27
      %s37 = scalar_select %p34, %s36, %s27
      %p38 = scmp.ge.s32.totalorder %s37, 1
      %s39 = scalar_select %p38, 0, %s37
      %s40 = ssub.s32 %s27, %s39
      %p41 = scmp.eq.s32.totalorder %s40, 0
      %s43 = sadd.s32 %s42, 1
      %s44 = scalar_select %p41, %s42, %s43
      %p47 = pneg %p41
      %p48 = scmp.eq.s32.totalorder %s20, 1
      %p49 = por %p47, %p48
      %p50 = scmp.ne.s32.totalorder %s42, %s45
      %p51 = scmp.eq.s32.totalorder %s20, 0
      %p52 = por %p50, %p51
      %p53 = scmp.ne.s32.totalorder %s42, %s45
      %p54 = scmp.eq.s32.totalorder %s25, 1
      %p55 = por %p53, %p54
      %p56 = scmp.ne.s32.totalorder %s45, %s46
      %p57 = scmp.eq.s32.totalorder %s25, 0
      %p58 = por %p56, %p57
      %p59 = scmp.ne.s32.totalorder %s45, %s46
      %p60 = scmp.eq.s32.totalorder %s26, 1
      %p61 = por %p59, %p60
      %p63 = scmp.ne.s32.totalorder %s46, %s62
      %p64 = scmp.eq.s32.totalorder %s26, 0
      %p65 = por %p63, %p64
      %s66 = ssub.s32 %s28, %s35
      %s67 = ssub.s32 %s27, %s39
      %s68 = sor.u32 %s66, %s67
      %p69 = scmp.eq.s32.totalorder %s68, 0
      %s71 = sadd.s32 %s70, 1
      %s72 = scalar_select %p69, %s70, %s71
      %p75 = pneg %p69
      %p76 = scmp.eq.s32.totalorder %s20, 1
      %p77 = por %p75, %p76
      %p78 = scmp.ne.s32.totalorder %s70, %s73
      %p79 = scmp.eq.s32.totalorder %s20, 0
      %p80 = por %p78, %p79
      %p81 = scmp.ne.s32.totalorder %s70, %s73
      %p82 = scmp.eq.s32.totalorder %s25, 1
      %p83 = por %p81, %p82
      %p84 = scmp.ne.s32.totalorder %s73, %s74
      %p85 = scmp.eq.s32.totalorder %s25, 0
      %p86 = por %p84, %p85
      %p87 = scmp.ne.s32.totalorder %s73, %s74
      %p88 = scmp.eq.s32.totalorder %s26, 1
      %p89 = por %p87, %p88
      %p91 = scmp.ne.s32.totalorder %s74, %s90
      %p92 = scmp.eq.s32.totalorder %s26, 0
      %p93 = por %p91, %p92
      %s94 = ssub.s32 %s28, %s35
      %s95 = ssub.s32 %s27, %s39
      %s96 = sor.u32 %s94, %s95
      %p97 = scmp.eq.s32.totalorder %s96, 0
      %s99 = sadd.s32 %s98, 1
      %s100 = scalar_select %p97, %s98, %s99
      %p103 = pneg %p97
      %p104 = scmp.eq.s32.totalorder %s20, 1
      %p105 = por %p103, %p104
      %p106 = scmp.ne.s32.totalorder %s98, %s101
      %p107 = scmp.eq.s32.totalorder %s20, 0
      %p108 = por %p106, %p107
      %p109 = scmp.ne.s32.totalorder %s98, %s101
      %p110 = scmp.eq.s32.totalorder %s25, 1
      %p111 = por %p109, %p110
      %p112 = scmp.ne.s32.totalorder %s101, %s102
      %p113 = scmp.eq.s32.totalorder %s25, 0
      %p114 = por %p112, %p113
      %p115 = scmp.ne.s32.totalorder %s101, %s102
      %p116 = scmp.eq.s32.totalorder %s26, 1
      %p117 = por %p115, %p116
      %p119 = scmp.ne.s32.totalorder %s102, %s118
      %p120 = scmp.eq.s32.totalorder %s26, 0
      %p121 = por %p119, %p120
      %s122 = ssub.s32 %s28, %s35
      %s123 = ssub.s32 %s27, %s39
      %s124 = sor.u32 %s122, %s123
      %p125 = scmp.eq.s32.totalorder %s124, 0
      %s127 = sadd.s32 %s126, 1
      %s128 = scalar_select %p125, %s126, %s127
      %p131 = pneg %p125
      %p132 = scmp.eq.s32.totalorder %s20, 1
      %p133 = por %p131, %p132
      %p134 = scmp.ne.s32.totalorder %s126, %s129
      %p135 = scmp.eq.s32.totalorder %s20, 0
      %p136 = por %p134, %p135
      %p137 = scmp.ne.s32.totalorder %s126, %s129
      %p138 = scmp.eq.s32.totalorder %s25, 1
      %p139 = por %p137, %p138
      %p140 = scmp.ne.s32.totalorder %s129, %s130
      %p141 = scmp.eq.s32.totalorder %s25, 0
      %p142 = por %p140, %p141
      %p143 = scmp.ne.s32.totalorder %s129, %s130
      %p144 = scmp.eq.s32.totalorder %s26, 1
      %p145 = por %p143, %p144
      %p147 = scmp.ne.s32.totalorder %s130, %s146
      %p148 = scmp.eq.s32.totalorder %s26, 0
      %p149 = por %p147, %p148
      %s150 = ssub.s32 %s28, %s35
      %s151 = ssub.s32 %s27, %s39
      %s152 = sor.u32 %s150, %s151
      %p153 = scmp.eq.s32.totalorder %s152, 0
      %s155 = sadd.s32 %s154, 1
      %s156 = scalar_select %p153, %s154, %s155
      %p159 = pneg %p153
      %p160 = scmp.eq.s32.totalorder %s20, 1
      %p161 = por %p159, %p160
      %p162 = scmp.ne.s32.totalorder %s154, %s157
      %p163 = scmp.eq.s32.totalorder %s20, 0
      %p164 = por %p162, %p163
      %p165 = scmp.ne.s32.totalorder %s154, %s157
      %p166 = scmp.eq.s32.totalorder %s25, 1
      %p167 = por %p165, %p166
      %p168 = scmp.ne.s32.totalorder %s157, %s158
      %p169 = scmp.eq.s32.totalorder %s25, 0
      %p170 = por %p168, %p169
      %p171 = scmp.ne.s32.totalorder %s157, %s158
      %p172 = scmp.eq.s32.totalorder %s26, 1
      %p173 = por %p171, %p172
      %p175 = scmp.ne.s32.totalorder %s158, %s174
      %p176 = scmp.eq.s32.totalorder %s26, 0
      %p177 = por %p175, %p176
      %s178 = ssub.s32 %s28, %s35
      %s179 = ssub.s32 %s27, %s39
      %s180 = sor.u32 %s178, %s179
      %p181 = scmp.eq.s32.totalorder %s180, 0
      %s183 = sadd.s32 %s182, 1
      %s184 = scalar_select %p181, %s182, %s183
      %p187 = pneg %p181
      %p188 = scmp.eq.s32.totalorder %s20, 1
      %p189 = por %p187, %p188
      %p190 = scmp.ne.s32.totalorder %s182, %s185
      %p191 = scmp.eq.s32.totalorder %s20, 0
      %p192 = por %p190, %p191
      %p193 = scmp.ne.s32.totalorder %s182, %s185
      %p194 = scmp.eq.s32.totalorder %s25, 1
      %p195 = por %p193, %p194
      %p196 = scmp.ne.s32.totalorder %s185, %s186
      %p197 = scmp.eq.s32.totalorder %s25, 0
      %p198 = por %p196, %p197
      %p199 = scmp.ne.s32.totalorder %s185, %s186
      %p200 = scmp.eq.s32.totalorder %s26, 1
      %p201 = por %p199, %p200
      %p203 = scmp.ne.s32.totalorder %s186, %s202
      %p204 = scmp.eq.s32.totalorder %s26, 0
      %p205 = por %p203, %p204
      %s206 = ssub.s32 %s28, %s35
      %s207 = ssub.s32 %s27, %s39
      %s208 = sor.u32 %s206, %s207
      %p209 = scmp.eq.s32.totalorder %s208, 0
      %s211 = sadd.s32 %s210, 1
      %s212 = scalar_select %p209, %s210, %s211
      %p215 = pneg %p209
      %p216 = scmp.eq.s32.totalorder %s20, 1
      %p217 = por %p215, %p216
      %p218 = scmp.ne.s32.totalorder %s210, %s213
      %p219 = scmp.eq.s32.totalorder %s20, 0
      %p220 = por %p218, %p219
      %p221 = scmp.ne.s32.totalorder %s210, %s213
      %p222 = scmp.eq.s32.totalorder %s25, 1
      %p223 = por %p221, %p222
      %p224 = scmp.ne.s32.totalorder %s213, %s214
      %p225 = scmp.eq.s32.totalorder %s25, 0
      %p226 = por %p224, %p225
      %p227 = scmp.ne.s32.totalorder %s213, %s214
      %p228 = scmp.eq.s32.totalorder %s26, 1
      %p229 = por %p227, %p228
      %p231 = scmp.ne.s32.totalorder %s214, %s230
      %p232 = scmp.eq.s32.totalorder %s26, 0
      %p233 = por %p231, %p232
      %p234 = scmp.le.s32.totalorder 1, %s20
      %p235 = scmp.lt.s32.totalorder %s20, 3
      %p236 = pnand %p234, %p235
      %p237 = pneg %p236
      // Predicated region
      $region9: #{tpu_custom_call.1} parent=5 // pred_check
        _
      $region10: #{tpu_custom_call.1} parent=5 // pred_check_branch
        %239 = sbr.rel (%p236) target = $region12
      $region11: #{tpu_custom_call.1} parent=5 // pred_region
        %s240 = ssub.s32 %s20, 1
        // Predicated region
        $region13: #{tpu_custom_call.1} parent=11 // pred_check
          %p241 = pneg %p58
        $region14: #{tpu_custom_call.1} parent=11 // pred_check_branch
          %243 = sbr.rel (%p241) target = $region16
        $region15: #{tpu_custom_call.1} parent=11 // pred_region
          %s244 = smul.u32 2, %s29
          %s246 = ssub.s32 256, 256
          %247 = vsyncadd [#allocation3], %s246
          %s248 = smul.addr %s244, 128
          %s249 = scalar_lea.hbm %s0, %s248
          %s250 = sshll.u32 [#allocation2], 4
          %s251 = int_to_ptr.vmem [resolvable:$true] %s250
          %256 = dma.hbm_to_vmem [thread:$0]  %s249, 256, %s251, [#allocation3], 128, 128, 8
        $region16: #{tpu_custom_call.1} parent=11 // pred_fallthru
          _
      $region12: #{tpu_custom_call.1} parent=5 // pred_fallthru
        _
      %p257 = scmp.lt.s32.totalorder %s20, 2
      // Predicated region
      $region17: #{tpu_custom_call.1} parent=5 // pred_check
        %p258 = pneg %p257
      $region18: #{tpu_custom_call.1} parent=5 // pred_check_branch
        %260 = sbr.rel (%p258) target = $region20
      $region19: #{tpu_custom_call.1} parent=5 // pred_region
        // Predicated region
        $region21: #{tpu_custom_call.1} parent=19 // pred_check
          %p261 = pneg %p80
        $region22: #{tpu_custom_call.1} parent=19 // pred_check_branch
          %263 = sbr.rel (%p261) target = $region24
        $region23: #{tpu_custom_call.1} parent=19 // pred_region
          %s264 = smul.u32 2, %s27
          %p265 = scmp.lt.s32.totalorder %s28, 1
          %s266 = scalar_select %p265, %s28, 1
          %p267 = scmp.lt.s32.totalorder %s264, 1
          %s268 = scalar_select %p267, %s264, 1
          %s269 = smul.addr %s266, 2
          %s270 = sadd.s32 %s268, %s269
          %s271 = smul.addr %s270, 8
          %s272 = scalar_lea.vmem %s1, %s271
          %s273 = smul.u32 2, %s27
        $region24: #{tpu_custom_call.1} parent=19 // pred_fallthru
          _
        // Predicated region
        $region25: #{tpu_custom_call.1} parent=19 // pred_check
          %p274 = pneg %p108
        $region26: #{tpu_custom_call.1} parent=19 // pred_check_branch
          %276 = sbr.rel (%p274) target = $region28
        $region27: #{tpu_custom_call.1} parent=19 // pred_region
          %s277 = smul.u32 2, %s27
          %p278 = scmp.lt.s32.totalorder %s28, 1
          %s279 = scalar_select %p278, %s28, 1
          %p280 = scmp.lt.s32.totalorder %s277, 1
          %s281 = scalar_select %p280, %s277, 1
          %s282 = smul.addr %s279, 2
          %s283 = sadd.s32 %s281, %s282
          %s284 = smul.addr %s283, 8
          %s285 = scalar_lea.vmem %s2, %s284
          %s286 = smul.u32 2, %s27
        $region28: #{tpu_custom_call.1} parent=19 // pred_fallthru
          _
        // Predicated region
        $region29: #{tpu_custom_call.1} parent=19 // pred_check
          %p287 = pneg %p136
        $region30: #{tpu_custom_call.1} parent=19 // pred_check_branch
          %289 = sbr.rel (%p287) target = $region32
        $region31: #{tpu_custom_call.1} parent=19 // pred_region
          %s290 = smul.u32 2, %s27
          %p291 = scmp.lt.s32.totalorder %s28, 1
          %s292 = scalar_select %p291, %s28, 1
          %p293 = scmp.lt.s32.totalorder %s290, 1
          %s294 = scalar_select %p293, %s290, 1
          %s295 = smul.addr %s292, 2
          %s296 = sadd.s32 %s294, %s295
          %s297 = smul.addr %s296, 8
          %s298 = scalar_lea.vmem %s3, %s297
          %s299 = smul.u32 2, %s27
        $region32: #{tpu_custom_call.1} parent=19 // pred_fallthru
          _
        // Predicated region
        $region33: #{tpu_custom_call.1} parent=19 // pred_check
          %p300 = pneg %p164
        $region34: #{tpu_custom_call.1} parent=19 // pred_check_branch
          %302 = sbr.rel (%p300) target = $region36
        $region35: #{tpu_custom_call.1} parent=19 // pred_region
          %s303 = smul.u32 2, %s27
          %p304 = scmp.lt.s32.totalorder %s28, 1
          %s305 = scalar_select %p304, %s28, 1
          %p306 = scmp.lt.s32.totalorder %s303, 1
          %s307 = scalar_select %p306, %s303, 1
          %s308 = smul.addr %s305, 2
          %s309 = sadd.s32 %s307, %s308
          %s310 = smul.addr %s309, 8
          %s311 = scalar_lea.vmem %s4, %s310
          %s312 = smul.u32 2, %s27
        $region36: #{tpu_custom_call.1} parent=19 // pred_fallthru
          _
      $region20: #{tpu_custom_call.1} parent=5 // pred_fallthru
        _
      %p313 = scmp.le.s32.totalorder 1, %s20
      %p314 = scmp.lt.s32.totalorder %s20, 3
      %p315 = pnand %p313, %p314
      %p316 = pneg %p315
      // Predicated region
      $region37: #{tpu_custom_call.1} parent=5 // pred_check
        _
      $region38: #{tpu_custom_call.1} parent=5 // pred_check_branch
        %318 = sbr.rel (%p315) target = $region40
      $region39: #{tpu_custom_call.1} parent=5 // pred_region
        %s319 = ssub.s32 %s20, 1
        // Predicated region
        $region41: #{tpu_custom_call.1} parent=39 // pred_check
          %p320 = pneg %p58
        $region42: #{tpu_custom_call.1} parent=39 // pred_check_branch
          %322 = sbr.rel (%p320) target = $region44
        $region43: #{tpu_custom_call.1} parent=39 // pred_region
          %323 = dma.done [#allocation3], 256
        $region44: #{tpu_custom_call.1} parent=39 // pred_fallthru
          _
        %p324 = pneg %p58
        %p325 = pneg %p55
        %s326 = smul.u32 2, %s29
        %p327 = scmp.lt.s32.totalorder %s30, 1
        %s328 = scalar_select %p327, %s30, 1
        %p329 = scmp.lt.s32.totalorder %s326, 1
        %s330 = scalar_select %p329, %s326, 1
        %s331 = smul.addr %s328, 2
        %s332 = sadd.s32 %s330, %s331
        %s333 = smul.addr %s332, 8
        %s334 = scalar_lea.vmem %s1, %s333
        %p335 = pneg %p86
        %p336 = pneg %p83
        %s337 = smul.u32 2, %s29
        %p338 = scmp.lt.s32.totalorder %s30, 1
        %s339 = scalar_select %p338, %s30, 1
        %p340 = scmp.lt.s32.totalorder %s337, 1
        %s341 = scalar_select %p340, %s337, 1
        %s342 = smul.addr %s339, 2
        %s343 = sadd.s32 %s341, %s342
        %s344 = smul.addr %s343, 8
        %s345 = scalar_lea.vmem %s2, %s344
        %p346 = pneg %p114
        %p347 = pneg %p111
        %s348 = smul.u32 2, %s29
        %p349 = scmp.lt.s32.totalorder %s30, 1
        %s350 = scalar_select %p349, %s30, 1
        %p351 = scmp.lt.s32.totalorder %s348, 1
        %s352 = scalar_select %p351, %s348, 1
        %s353 = smul.addr %s350, 2
        %s354 = sadd.s32 %s352, %s353
        %s355 = smul.addr %s354, 8
        %s356 = scalar_lea.vmem %s3, %s355
        %p357 = pneg %p142
        %p358 = pneg %p139
        %s359 = smul.u32 2, %s29
        %p360 = scmp.lt.s32.totalorder %s30, 1
        %s361 = scalar_select %p360, %s30, 1
        %p362 = scmp.lt.s32.totalorder %s359, 1
        %s363 = scalar_select %p362, %s359, 1
        %s364 = smul.addr %s361, 2
        %s365 = sadd.s32 %s363, %s364
        %s366 = smul.addr %s365, 8
        %s367 = scalar_lea.vmem %s4, %s366
        %p368 = pneg %p170
        %p369 = pneg %p167
        %p370 = pneg %p198
        %p371 = pneg %p195
        %s372 = sand.u32 %s185, 1
        %s373 = scalar_lea.sflag [#allocation4], %s372
        %s374 = sand.u32 %s185, 1
        %s375 = smul.addr %s374, 48
        %s376 = scalar_lea.vmem [#allocation5], %s375
        %p377 = pneg %p226
        %p378 = pneg %p223
        %s379 = sand.u32 %s213, 1
        %s380 = scalar_lea.sflag [#allocation7], %s379
        %s381 = sand.u32 %s213, 1
        %s382 = smul.addr %s381, 16
        %s383 = scalar_lea.vmem [#allocation6], %s382
        %s384 = smul.u32 2, %s29
        %s385 = smul.u32 2, %s29
        %p386 = scmp.lt.s32.totalorder %s30, 1
        %s387 = scalar_select %p386, %s30, 1
        %p388 = scmp.lt.s32.totalorder %s385, 1
        %s389 = scalar_select %p388, %s385, 1
        %s390 = smul.addr %s387, 2
        %s391 = sadd.s32 %s389, %s390
        %s392 = smul.addr %s391, 8
        %s393 = scalar_lea.vmem %s1, %s392
        %s394 = smul.u32 2, %s29
        %s395 = smul.u32 2, %s29
        %p396 = scmp.lt.s32.totalorder %s30, 1
        %s397 = scalar_select %p396, %s30, 1
        %p398 = scmp.lt.s32.totalorder %s395, 1
        %s399 = scalar_select %p398, %s395, 1
        %s400 = smul.addr %s397, 2
        %s401 = sadd.s32 %s399, %s400
        %s402 = smul.addr %s401, 8
        %s403 = scalar_lea.vmem %s2, %s402
        %s404 = smul.u32 2, %s29
        %s405 = smul.u32 2, %s29
        %p406 = scmp.lt.s32.totalorder %s30, 1
        %s407 = scalar_select %p406, %s30, 1
        %p408 = scmp.lt.s32.totalorder %s405, 1
        %s409 = scalar_select %p408, %s405, 1
        %s410 = smul.addr %s407, 2
        %s411 = sadd.s32 %s409, %s410
        %s412 = smul.addr %s411, 8
        %s413 = scalar_lea.vmem %s3, %s412
        %s414 = smul.u32 2, %s29
        %s415 = smul.u32 2, %s29
        %p416 = scmp.lt.s32.totalorder %s30, 1
        %s417 = scalar_select %p416, %s30, 1
        %p418 = scmp.lt.s32.totalorder %s415, 1
        %s419 = scalar_select %p418, %s415, 1
        %s420 = smul.addr %s417, 2
        %s421 = sadd.s32 %s419, %s420
        %s422 = smul.addr %s421, 8
        %s423 = scalar_lea.vmem %s4, %s422
        %s424 = smul.u32 2, %s29
        %s425 = smul.u32 2, %s29
        %s426 = smul.u32 2, %s29
        %v427 = vld [vmem:[#allocation2] sm:$0xff]
        %v428 = vld [vmem:[#allocation2 + $0x8] sm:$0xff]
        %v429 = vld [vmem:[%s393] sm:$0xff]
        %v430 = vld [vmem:[%s393 + $0x8] sm:$0xff]
        %v431 = vld [vmem:[%s403] sm:$0xff]
        %v432 = vld [vmem:[%s403 + $0x8] sm:$0xff]
        %v433 = vld [vmem:[%s413] sm:$0xff]
        %v434 = vld [vmem:[%s413 + $0x8] sm:$0xff]
        %v435 = vld [vmem:[%s423] sm:$0xff]
        %v436 = vld [vmem:[%s423 + $0x8] sm:$0xff]
        %v437 = vadd.f32 %v429, 1e-05
        %v438 = vadd.f32 %v430, 1e-05
        %441 = vrot.lane.b32.xlu0 %v437, 127
        %v442 = vpop.permute.xlu0 %441
        %443 = vrot.lane.b32.xlu0 %v438, 127
        %v444 = vpop.permute.xlu0 %443
        %vm447 = vcmask 506880
        %v448 = vsel %vm447, %v442, 0.0
        %449 = vadd.xlane.f32.xlu0 %v448
        %v450 = vpop.xlane.xlu0 %449
        %v451 = vsel %vm447, %v444, 0.0
        %452 = vadd.xlane.f32.xlu0 %v451
        %v453 = vpop.xlane.xlu0 %452
        %v454 = vrcp.pop %v450
        %v455 = vmul.f32 %v437, %v454
        %v456 = vrcp.pop %v453
        %v457 = vmul.f32 %v438, %v456
        %460 = vrot.lane.b32.xlu0 %v455, 127
        %v461 = vpop.permute.xlu0 %460
        %462 = vrot.lane.b32.xlu0 %v457, 127
        %v463 = vpop.permute.xlu0 %462
        %v466 = vsel %vm447, %v461, 0.0
        %v467 = vsel %vm447, %v463, 0.0
        %v468 = vlaneseq
        %v469 = vand.u32 %v468, 127
        %vm470 = vcmp.ge.s32.totalorder %v469, 1
        %471 = vrot.lane.b32.xlu0 %v466, 1
        %v472 = vpop.permute.xlu0 %471
        %473 = vrot.lane.b32.xlu0 %v467, 1
        %v474 = vpop.permute.xlu0 %473
        %v475 = vsel %vm470, %v472, 0.0
        %v476 = vsel %vm470, %v474, 0.0
        %v477 = vadd.f32 %v466, %v475
        %v478 = vadd.f32 %v467, %v476
        %vm479 = vcmp.ge.s32.totalorder %v469, 2
        %480 = vrot.lane.b32.xlu0 %v477, 2
        %v481 = vpop.permute.xlu0 %480
        %482 = vrot.lane.b32.xlu0 %v478, 2
        %v483 = vpop.permute.xlu0 %482
        %v484 = vsel %vm479, %v481, 0.0
        %v485 = vsel %vm479, %v483, 0.0
        %v486 = vadd.f32 %v477, %v484
        %v487 = vadd.f32 %v478, %v485
        %vm488 = vcmp.ge.s32.totalorder %v469, 4
        %489 = vrot.lane.b32.xlu0 %v486, 4
        %v490 = vpop.permute.xlu0 %489
        %491 = vrot.lane.b32.xlu0 %v487, 4
        %v492 = vpop.permute.xlu0 %491
        %v493 = vsel %vm488, %v490, 0.0
        %v494 = vsel %vm488, %v492, 0.0
        %v495 = vadd.f32 %v486, %v493
        %v496 = vadd.f32 %v487, %v494
        %vm497 = vcmp.ge.s32.totalorder %v469, 8
        %498 = vrot.lane.b32.xlu0 %v495, 8
        %v499 = vpop.permute.xlu0 %498
        %500 = vrot.lane.b32.xlu0 %v496, 8
        %v501 = vpop.permute.xlu0 %500
        %v502 = vsel %vm497, %v499, 0.0
        %v503 = vsel %vm497, %v501, 0.0
        %v504 = vadd.f32 %v495, %v502
        %v505 = vadd.f32 %v496, %v503
        %vm506 = vcmp.ge.s32.totalorder %v469, 16
        %507 = vrot.lane.b32.xlu0 %v504, 16
        %v508 = vpop.permute.xlu0 %507
        %509 = vrot.lane.b32.xlu0 %v505, 16
        %v510 = vpop.permute.xlu0 %509
        %v511 = vsel %vm506, %v508, 0.0
        %v512 = vsel %vm506, %v510, 0.0
        %v513 = vadd.f32 %v504, %v511
        %v514 = vadd.f32 %v505, %v512
        %vm515 = vcmp.ge.s32.totalorder %v469, 32
        %516 = vrot.lane.b32.xlu0 %v513, 32
        %v517 = vpop.permute.xlu0 %516
        %518 = vrot.lane.b32.xlu0 %v514, 32
        %v519 = vpop.permute.xlu0 %518
        %v520 = vsel %vm515, %v517, 0.0
        %v521 = vsel %vm515, %v519, 0.0
        %v522 = vadd.f32 %v513, %v520
        %v523 = vadd.f32 %v514, %v521
        %526 = vrot.lane.b32.xlu0 %v522, 1
        %v527 = vpop.permute.xlu0 %526
        %528 = vrot.lane.b32.xlu0 %v523, 1
        %v529 = vpop.permute.xlu0 %528
        %vm532 = vcmask 7168
        %v533 = vsel %vm532, 0.0, %v527
        %v534 = vsel %vm532, 0.0, %v529
        %537 = vrot.lane.b32.xlu0 %v427, 1
        %v538 = vpop.permute.xlu0 %537
        %539 = vrot.lane.b32.xlu0 %v428, 1
        %v540 = vpop.permute.xlu0 %539
        %v543 = vadd.f32 %v427, %v538
        %v544 = vadd.f32 %v428, %v540
        %v545 = vmul.f32 %v543, 0.5
        %v546 = vmul.f32 %v544, 0.5
        %549 = vrot.lane.b32.xlu0 %v533, 127
        %v550 = vpop.permute.xlu0 %549
        %551 = vrot.lane.b32.xlu0 %v534, 127
        %v552 = vpop.permute.xlu0 %551
        %v555 = vsel %vm447, %v550, %v533
        %v556 = vsel %vm447, %v552, %v534
        %559 = vrot.lane.b32.xlu0 %v545, 126
        %v560 = vpop.permute.xlu0 %559
        %561 = vrot.lane.b32.xlu0 %v546, 126
        %v562 = vpop.permute.xlu0 %561
        %565 = vrot.lane.b32.xlu0 %v545, 127
        %v566 = vpop.permute.xlu0 %565
        %567 = vrot.lane.b32.xlu0 %v546, 127
        %v568 = vpop.permute.xlu0 %567
        %v571 = vsel %vm447, %v560, %v566
        %v572 = vsel %vm447, %v562, %v568
        %v573 = vsub.f32 %v555, %v533
        %v574 = vsub.f32 %v556, %v534
        %v575 = vsub.f32 %v571, %v566
        %v576 = vsub.f32 %v572, %v568
        %vm577 = vcmp.lt.f32.partialorder %v573, 1e-05
        %vm578 = vcmp.lt.f32.partialorder %v574, 1e-05
        %v579 = vsel %vm577, 1.0, %v573
        %v580 = vsel %vm578, 1.0, %v574
        %v581 = vrcp.pop %v579
        %v582 = vmul.f32 %v575, %v581
        %v583 = vrcp.pop %v580
        %v584 = vmul.f32 %v576, %v583
        %585 = vset.pattern.permute.xlu0 1
        %586 = vperm.xlu0 %585, %v545
        %v587 = vpop.permute.xlu0 %586
        %589 = vset.pattern.permute.xlu0 1
        %590 = vperm.xlu0 %589, %v546
        %v591 = vpop.permute.xlu0 %590
        %594 = vset.pattern.permute.xlu0 0
        %595 = vperm.xlu0 %594, %v582
        %v596 = vpop.permute.xlu0 %595
        %599 = vset.pattern.permute.xlu0 0
        %600 = vperm.xlu0 %599, %v584
        %v601 = vpop.permute.xlu0 %600
        %603 = vset.pattern.permute.xlu0 1
        %604 = vperm.xlu0 %603, %v533
        %v605 = vpop.permute.xlu0 %604
        %607 = vset.pattern.permute.xlu0 1
        %608 = vperm.xlu0 %607, %v534
        %v609 = vpop.permute.xlu0 %608
        %vm611 = vcmp.le.f32.partialorder %v605, %v431
        %vm612 = vcmp.le.f32.partialorder %v609, %v432
        %v613 = vsel %vm611, %v605, 0.0
        %v614 = vsel %vm612, %v609, 0.0
        %615 = vset.pattern.permute.xlu0 2
        %616 = vperm.xlu0 %615, %v545
        %v617 = vpop.permute.xlu0 %616
        %619 = vset.pattern.permute.xlu0 2
        %620 = vperm.xlu0 %619, %v546
        %v621 = vpop.permute.xlu0 %620
        %v623 = vsel %vm611, %v617, %v587
        %v624 = vsel %vm612, %v621, %v591
        %625 = vset.pattern.permute.xlu0 1
        %626 = vperm.xlu0 %625, %v582
        %v627 = vpop.permute.xlu0 %626
        %629 = vset.pattern.permute.xlu0 1
        %630 = vperm.xlu0 %629, %v584
        %v631 = vpop.permute.xlu0 %630
        %v633 = vsel %vm611, %v627, %v596
        %v634 = vsel %vm612, %v631, %v601
        %635 = vset.pattern.permute.xlu0 2
        %636 = vperm.xlu0 %635, %v533
        %v637 = vpop.permute.xlu0 %636
        %639 = vset.pattern.permute.xlu0 2
        %640 = vperm.xlu0 %639, %v534
        %v641 = vpop.permute.xlu0 %640
        %vm643 = vcmp.le.f32.partialorder %v637, %v431
        %vm644 = vcmp.le.f32.partialorder %v641, %v432
        %v645 = vsel %vm643, %v637, %v613
        %v646 = vsel %vm644, %v641, %v614
        %647 = vset.pattern.permute.xlu0 3
        %648 = vperm.xlu0 %647, %v545
        %v649 = vpop.permute.xlu0 %648
        %651 = vset.pattern.permute.xlu0 3
        %652 = vperm.xlu0 %651, %v546
        %v653 = vpop.permute.xlu0 %652
        %v655 = vsel %vm643, %v649, %v623
        %v656 = vsel %vm644, %v653, %v624
        %657 = vset.pattern.permute.xlu0 2
        %658 = vperm.xlu0 %657, %v582
        %v659 = vpop.permute.xlu0 %658
        %661 = vset.pattern.permute.xlu0 2
        %662 = vperm.xlu0 %661, %v584
        %v663 = vpop.permute.xlu0 %662
        %v665 = vsel %vm643, %v659, %v633
        %v666 = vsel %vm644, %v663, %v634
        %667 = vset.pattern.permute.xlu0 3
        %668 = vperm.xlu0 %667, %v533
        %v669 = vpop.permute.xlu0 %668
        %671 = vset.pattern.permute.xlu0 3
        %672 = vperm.xlu0 %671, %v534
        %v673 = vpop.permute.xlu0 %672
        %vm675 = vcmp.le.f32.partialorder %v669, %v431
        %vm676 = vcmp.le.f32.partialorder %v673, %v432
        %v677 = vsel %vm675, %v669, %v645
        %v678 = vsel %vm676, %v673, %v646
        %679 = vset.pattern.permute.xlu0 4
        %680 = vperm.xlu0 %679, %v545
        %v681 = vpop.permute.xlu0 %680
        %683 = vset.pattern.permute.xlu0 4
        %684 = vperm.xlu0 %683, %v546
        %v685 = vpop.permute.xlu0 %684
        %v687 = vsel %vm675, %v681, %v655
        %v688 = vsel %vm676, %v685, %v656
        %689 = vset.pattern.permute.xlu0 3
        %690 = vperm.xlu0 %689, %v582
        %v691 = vpop.permute.xlu0 %690
        %693 = vset.pattern.permute.xlu0 3
        %694 = vperm.xlu0 %693, %v584
        %v695 = vpop.permute.xlu0 %694
        %v697 = vsel %vm675, %v691, %v665
        %v698 = vsel %vm676, %v695, %v666
        %699 = vset.pattern.permute.xlu0 4
        %700 = vperm.xlu0 %699, %v533
        %v701 = vpop.permute.xlu0 %700
        %703 = vset.pattern.permute.xlu0 4
        %704 = vperm.xlu0 %703, %v534
        %v705 = vpop.permute.xlu0 %704
        %vm707 = vcmp.le.f32.partialorder %v701, %v431
        %vm708 = vcmp.le.f32.partialorder %v705, %v432
        %v709 = vsel %vm707, %v701, %v677
        %v710 = vsel %vm708, %v705, %v678
        %711 = vset.pattern.permute.xlu0 5
        %712 = vperm.xlu0 %711, %v545
        %v713 = vpop.permute.xlu0 %712
        %715 = vset.pattern.permute.xlu0 5
        %716 = vperm.xlu0 %715, %v546
        %v717 = vpop.permute.xlu0 %716
        %v719 = vsel %vm707, %v713, %v687
        %v720 = vsel %vm708, %v717, %v688
        %721 = vset.pattern.permute.xlu0 4
        %722 = vperm.xlu0 %721, %v582
        %v723 = vpop.permute.xlu0 %722
        %725 = vset.pattern.permute.xlu0 4
        %726 = vperm.xlu0 %725, %v584
        %v727 = vpop.permute.xlu0 %726
        %v729 = vsel %vm707, %v723, %v697
        %v730 = vsel %vm708, %v727, %v698
        %731 = vset.pattern.permute.xlu0 5
        %732 = vperm.xlu0 %731, %v533
        %v733 = vpop.permute.xlu0 %732
        %735 = vset.pattern.permute.xlu0 5
        %736 = vperm.xlu0 %735, %v534
        %v737 = vpop.permute.xlu0 %736
        %vm739 = vcmp.le.f32.partialorder %v733, %v431
        %vm740 = vcmp.le.f32.partialorder %v737, %v432
        %v741 = vsel %vm739, %v733, %v709
        %v742 = vsel %vm740, %v737, %v710
        %743 = vset.pattern.permute.xlu0 6
        %744 = vperm.xlu0 %743, %v545
        %v745 = vpop.permute.xlu0 %744
        %747 = vset.pattern.permute.xlu0 6
        %748 = vperm.xlu0 %747, %v546
        %v749 = vpop.permute.xlu0 %748
        %v751 = vsel %vm739, %v745, %v719
        %v752 = vsel %vm740, %v749, %v720
        %753 = vset.pattern.permute.xlu0 5
        %754 = vperm.xlu0 %753, %v582
        %v755 = vpop.permute.xlu0 %754
        %757 = vset.pattern.permute.xlu0 5
        %758 = vperm.xlu0 %757, %v584
        %v759 = vpop.permute.xlu0 %758
        %v761 = vsel %vm739, %v755, %v729
        %v762 = vsel %vm740, %v759, %v730
        %763 = vset.pattern.permute.xlu0 6
        %764 = vperm.xlu0 %763, %v533
        %v765 = vpop.permute.xlu0 %764
        %767 = vset.pattern.permute.xlu0 6
        %768 = vperm.xlu0 %767, %v534
        %v769 = vpop.permute.xlu0 %768
        %vm771 = vcmp.le.f32.partialorder %v765, %v431
        %vm772 = vcmp.le.f32.partialorder %v769, %v432
        %v773 = vsel %vm771, %v765, %v741
        %v774 = vsel %vm772, %v769, %v742
        %775 = vset.pattern.permute.xlu0 7
        %776 = vperm.xlu0 %775, %v545
        %v777 = vpop.permute.xlu0 %776
        %779 = vset.pattern.permute.xlu0 7
        %780 = vperm.xlu0 %779, %v546
        %v781 = vpop.permute.xlu0 %780
        %v783 = vsel %vm771, %v777, %v751
        %v784 = vsel %vm772, %v781, %v752
        %785 = vset.pattern.permute.xlu0 6
        %786 = vperm.xlu0 %785, %v582
        %v787 = vpop.permute.xlu0 %786
        %789 = vset.pattern.permute.xlu0 6
        %790 = vperm.xlu0 %789, %v584
        %v791 = vpop.permute.xlu0 %790
        %v793 = vsel %vm771, %v787, %v761
        %v794 = vsel %vm772, %v791, %v762
        %795 = vset.pattern.permute.xlu0 7
        %796 = vperm.xlu0 %795, %v533
        %v797 = vpop.permute.xlu0 %796
        %799 = vset.pattern.permute.xlu0 7
        %800 = vperm.xlu0 %799, %v534
        %v801 = vpop.permute.xlu0 %800
        %vm803 = vcmp.le.f32.partialorder %v797, %v431
        %vm804 = vcmp.le.f32.partialorder %v801, %v432
        %v805 = vsel %vm803, %v797, %v773
        %v806 = vsel %vm804, %v801, %v774
        %807 = vset.pattern.permute.xlu0 8
        %808 = vperm.xlu0 %807, %v545
        %v809 = vpop.permute.xlu0 %808
        %811 = vset.pattern.permute.xlu0 8
        %812 = vperm.xlu0 %811, %v546
        %v813 = vpop.permute.xlu0 %812
        %v815 = vsel %vm803, %v809, %v783
        %v816 = vsel %vm804, %v813, %v784
        %817 = vset.pattern.permute.xlu0 7
        %818 = vperm.xlu0 %817, %v582
        %v819 = vpop.permute.xlu0 %818
        %821 = vset.pattern.permute.xlu0 7
        %822 = vperm.xlu0 %821, %v584
        %v823 = vpop.permute.xlu0 %822
        %v825 = vsel %vm803, %v819, %v793
        %v826 = vsel %vm804, %v823, %v794
        %827 = vset.pattern.permute.xlu0 8
        %828 = vperm.xlu0 %827, %v533
        %v829 = vpop.permute.xlu0 %828
        %831 = vset.pattern.permute.xlu0 8
        %832 = vperm.xlu0 %831, %v534
        %v833 = vpop.permute.xlu0 %832
        %vm835 = vcmp.le.f32.partialorder %v829, %v431
        %vm836 = vcmp.le.f32.partialorder %v833, %v432
        %v837 = vsel %vm835, %v829, %v805
        %v838 = vsel %vm836, %v833, %v806
        %839 = vset.pattern.permute.xlu0 9
        %840 = vperm.xlu0 %839, %v545
        %v841 = vpop.permute.xlu0 %840
        %843 = vset.pattern.permute.xlu0 9
        %844 = vperm.xlu0 %843, %v546
        %v845 = vpop.permute.xlu0 %844
        %v847 = vsel %vm835, %v841, %v815
        %v848 = vsel %vm836, %v845, %v816
        %849 = vset.pattern.permute.xlu0 8
        %850 = vperm.xlu0 %849, %v582
        %v851 = vpop.permute.xlu0 %850
        %853 = vset.pattern.permute.xlu0 8
        %854 = vperm.xlu0 %853, %v584
        %v855 = vpop.permute.xlu0 %854
        %v857 = vsel %vm835, %v851, %v825
        %v858 = vsel %vm836, %v855, %v826
        %859 = vset.pattern.permute.xlu0 9
        %860 = vperm.xlu0 %859, %v533
        %v861 = vpop.permute.xlu0 %860
        %863 = vset.pattern.permute.xlu0 9
        %864 = vperm.xlu0 %863, %v534
        %v865 = vpop.permute.xlu0 %864
        %vm867 = vcmp.le.f32.partialorder %v861, %v431
        %vm868 = vcmp.le.f32.partialorder %v865, %v432
        %v869 = vsel %vm867, %v861, %v837
        %v870 = vsel %vm868, %v865, %v838
        %871 = vset.pattern.permute.xlu0 10
        %872 = vperm.xlu0 %871, %v545
        %v873 = vpop.permute.xlu0 %872
        %875 = vset.pattern.permute.xlu0 10
        %876 = vperm.xlu0 %875, %v546
        %v877 = vpop.permute.xlu0 %876
        %v879 = vsel %vm867, %v873, %v847
        %v880 = vsel %vm868, %v877, %v848
        %881 = vset.pattern.permute.xlu0 9
        %882 = vperm.xlu0 %881, %v582
        %v883 = vpop.permute.xlu0 %882
        %885 = vset.pattern.permute.xlu0 9
        %886 = vperm.xlu0 %885, %v584
        %v887 = vpop.permute.xlu0 %886
        %v889 = vsel %vm867, %v883, %v857
        %v890 = vsel %vm868, %v887, %v858
        %891 = vset.pattern.permute.xlu0 10
        %892 = vperm.xlu0 %891, %v533
        %v893 = vpop.permute.xlu0 %892
        %895 = vset.pattern.permute.xlu0 10
        %896 = vperm.xlu0 %895, %v534
        %v897 = vpop.permute.xlu0 %896
        %vm899 = vcmp.le.f32.partialorder %v893, %v431
        %vm900 = vcmp.le.f32.partialorder %v897, %v432
        %v901 = vsel %vm899, %v893, %v869
        %v902 = vsel %vm900, %v897, %v870
        %903 = vset.pattern.permute.xlu0 11
        %904 = vperm.xlu0 %903, %v545
        %v905 = vpop.permute.xlu0 %904
        %907 = vset.pattern.permute.xlu0 11
        %908 = vperm.xlu0 %907, %v546
        %v909 = vpop.permute.xlu0 %908
        %v911 = vsel %vm899, %v905, %v879
        %v912 = vsel %vm900, %v909, %v880
        %913 = vset.pattern.permute.xlu0 10
        %914 = vperm.xlu0 %913, %v582
        %v915 = vpop.permute.xlu0 %914
        %917 = vset.pattern.permute.xlu0 10
        %918 = vperm.xlu0 %917, %v584
        %v919 = vpop.permute.xlu0 %918
        %v921 = vsel %vm899, %v915, %v889
        %v922 = vsel %vm900, %v919, %v890
        %923 = vset.pattern.permute.xlu0 11
        %924 = vperm.xlu0 %923, %v533
        %v925 = vpop.permute.xlu0 %924
        %927 = vset.pattern.permute.xlu0 11
        %928 = vperm.xlu0 %927, %v534
        %v929 = vpop.permute.xlu0 %928
        %vm931 = vcmp.le.f32.partialorder %v925, %v431
        %vm932 = vcmp.le.f32.partialorder %v929, %v432
        %v933 = vsel %vm931, %v925, %v901
        %v934 = vsel %vm932, %v929, %v902
        %935 = vset.pattern.permute.xlu0 12
        %936 = vperm.xlu0 %935, %v545
        %v937 = vpop.permute.xlu0 %936
        %939 = vset.pattern.permute.xlu0 12
        %940 = vperm.xlu0 %939, %v546
        %v941 = vpop.permute.xlu0 %940
        %v943 = vsel %vm931, %v937, %v911
        %v944 = vsel %vm932, %v941, %v912
        %945 = vset.pattern.permute.xlu0 11
        %946 = vperm.xlu0 %945, %v582
        %v947 = vpop.permute.xlu0 %946
        %949 = vset.pattern.permute.xlu0 11
        %950 = vperm.xlu0 %949, %v584
        %v951 = vpop.permute.xlu0 %950
        %v953 = vsel %vm931, %v947, %v921
        %v954 = vsel %vm932, %v951, %v922
        %955 = vset.pattern.permute.xlu0 12
        %956 = vperm.xlu0 %955, %v533
        %v957 = vpop.permute.xlu0 %956
        %959 = vset.pattern.permute.xlu0 12
        %960 = vperm.xlu0 %959, %v534
        %v961 = vpop.permute.xlu0 %960
        %vm963 = vcmp.le.f32.partialorder %v957, %v431
        %vm964 = vcmp.le.f32.partialorder %v961, %v432
        %v965 = vsel %vm963, %v957, %v933
        %v966 = vsel %vm964, %v961, %v934
        %967 = vset.pattern.permute.xlu0 13
        %968 = vperm.xlu0 %967, %v545
        %v969 = vpop.permute.xlu0 %968
        %971 = vset.pattern.permute.xlu0 13
        %972 = vperm.xlu0 %971, %v546
        %v973 = vpop.permute.xlu0 %972
        %v975 = vsel %vm963, %v969, %v943
        %v976 = vsel %vm964, %v973, %v944
        %977 = vset.pattern.permute.xlu0 12
        %978 = vperm.xlu0 %977, %v582
        %v979 = vpop.permute.xlu0 %978
        %981 = vset.pattern.permute.xlu0 12
        %982 = vperm.xlu0 %981, %v584
        %v983 = vpop.permute.xlu0 %982
        %v985 = vsel %vm963, %v979, %v953
        %v986 = vsel %vm964, %v983, %v954
        %987 = vset.pattern.permute.xlu0 13
        %988 = vperm.xlu0 %987, %v533
        %v989 = vpop.permute.xlu0 %988
        %991 = vset.pattern.permute.xlu0 13
        %992 = vperm.xlu0 %991, %v534
        %v993 = vpop.permute.xlu0 %992
        %vm995 = vcmp.le.f32.partialorder %v989, %v431
        %vm996 = vcmp.le.f32.partialorder %v993, %v432
        %v997 = vsel %vm995, %v989, %v965
        %v998 = vsel %vm996, %v993, %v966
        %999 = vset.pattern.permute.xlu0 14
        %1000 = vperm.xlu0 %999, %v545
        %v1001 = vpop.permute.xlu0 %1000
        %1003 = vset.pattern.permute.xlu0 14
        %1004 = vperm.xlu0 %1003, %v546
        %v1005 = vpop.permute.xlu0 %1004
        %v1007 = vsel %vm995, %v1001, %v975
        %v1008 = vsel %vm996, %v1005, %v976
        %1009 = vset.pattern.permute.xlu0 13
        %1010 = vperm.xlu0 %1009, %v582
        %v1011 = vpop.permute.xlu0 %1010
        %1013 = vset.pattern.permute.xlu0 13
        %1014 = vperm.xlu0 %1013, %v584
        %v1015 = vpop.permute.xlu0 %1014
        %v1017 = vsel %vm995, %v1011, %v985
        %v1018 = vsel %vm996, %v1015, %v986
        %1019 = vset.pattern.permute.xlu0 14
        %1020 = vperm.xlu0 %1019, %v533
        %v1021 = vpop.permute.xlu0 %1020
        %1023 = vset.pattern.permute.xlu0 14
        %1024 = vperm.xlu0 %1023, %v534
        %v1025 = vpop.permute.xlu0 %1024
        %vm1027 = vcmp.le.f32.partialorder %v1021, %v431
        %vm1028 = vcmp.le.f32.partialorder %v1025, %v432
        %v1029 = vsel %vm1027, %v1021, %v997
        %v1030 = vsel %vm1028, %v1025, %v998
        %1031 = vset.pattern.permute.xlu0 15
        %1032 = vperm.xlu0 %1031, %v545
        %v1033 = vpop.permute.xlu0 %1032
        %1035 = vset.pattern.permute.xlu0 15
        %1036 = vperm.xlu0 %1035, %v546
        %v1037 = vpop.permute.xlu0 %1036
        %v1039 = vsel %vm1027, %v1033, %v1007
        %v1040 = vsel %vm1028, %v1037, %v1008
        %1041 = vset.pattern.permute.xlu0 14
        %1042 = vperm.xlu0 %1041, %v582
        %v1043 = vpop.permute.xlu0 %1042
        %1045 = vset.pattern.permute.xlu0 14
        %1046 = vperm.xlu0 %1045, %v584
        %v1047 = vpop.permute.xlu0 %1046
        %v1049 = vsel %vm1027, %v1043, %v1017
        %v1050 = vsel %vm1028, %v1047, %v1018
        %1051 = vset.pattern.permute.xlu0 15
        %1052 = vperm.xlu0 %1051, %v533
        %v1053 = vpop.permute.xlu0 %1052
        %1055 = vset.pattern.permute.xlu0 15
        %1056 = vperm.xlu0 %1055, %v534
        %v1057 = vpop.permute.xlu0 %1056
        %vm1059 = vcmp.le.f32.partialorder %v1053, %v431
        %vm1060 = vcmp.le.f32.partialorder %v1057, %v432
        %v1061 = vsel %vm1059, %v1053, %v1029
        %v1062 = vsel %vm1060, %v1057, %v1030
        %1063 = vset.pattern.permute.xlu0 16
        %1064 = vperm.xlu0 %1063, %v545
        %v1065 = vpop.permute.xlu0 %1064
        %1067 = vset.pattern.permute.xlu0 16
        %1068 = vperm.xlu0 %1067, %v546
        %v1069 = vpop.permute.xlu0 %1068
        %v1071 = vsel %vm1059, %v1065, %v1039
        %v1072 = vsel %vm1060, %v1069, %v1040
        %1073 = vset.pattern.permute.xlu0 15
        %1074 = vperm.xlu0 %1073, %v582
        %v1075 = vpop.permute.xlu0 %1074
        %1077 = vset.pattern.permute.xlu0 15
        %1078 = vperm.xlu0 %1077, %v584
        %v1079 = vpop.permute.xlu0 %1078
        %v1081 = vsel %vm1059, %v1075, %v1049
        %v1082 = vsel %vm1060, %v1079, %v1050
        %1083 = vset.pattern.permute.xlu0 16
        %1084 = vperm.xlu0 %1083, %v533
        %v1085 = vpop.permute.xlu0 %1084
        %1087 = vset.pattern.permute.xlu0 16
        %1088 = vperm.xlu0 %1087, %v534
        %v1089 = vpop.permute.xlu0 %1088
        %vm1091 = vcmp.le.f32.partialorder %v1085, %v431
        %vm1092 = vcmp.le.f32.partialorder %v1089, %v432
        %v1093 = vsel %vm1091, %v1085, %v1061
        %v1094 = vsel %vm1092, %v1089, %v1062
        %1095 = vset.pattern.permute.xlu0 17
        %1096 = vperm.xlu0 %1095, %v545
        %v1097 = vpop.permute.xlu0 %1096
        %1099 = vset.pattern.permute.xlu0 17
        %1100 = vperm.xlu0 %1099, %v546
        %v1101 = vpop.permute.xlu0 %1100
        %v1103 = vsel %vm1091, %v1097, %v1071
        %v1104 = vsel %vm1092, %v1101, %v1072
        %1105 = vset.pattern.permute.xlu0 16
        %1106 = vperm.xlu0 %1105, %v582
        %v1107 = vpop.permute.xlu0 %1106
        %1109 = vset.pattern.permute.xlu0 16
        %1110 = vperm.xlu0 %1109, %v584
        %v1111 = vpop.permute.xlu0 %1110
        %v1113 = vsel %vm1091, %v1107, %v1081
        %v1114 = vsel %vm1092, %v1111, %v1082
        %1115 = vset.pattern.permute.xlu0 17
        %1116 = vperm.xlu0 %1115, %v533
        %v1117 = vpop.permute.xlu0 %1116
        %1119 = vset.pattern.permute.xlu0 17
        %1120 = vperm.xlu0 %1119, %v534
        %v1121 = vpop.permute.xlu0 %1120
        %vm1123 = vcmp.le.f32.partialorder %v1117, %v431
        %vm1124 = vcmp.le.f32.partialorder %v1121, %v432
        %v1125 = vsel %vm1123, %v1117, %v1093
        %v1126 = vsel %vm1124, %v1121, %v1094
        %1127 = vset.pattern.permute.xlu0 18
        %1128 = vperm.xlu0 %1127, %v545
        %v1129 = vpop.permute.xlu0 %1128
        %1131 = vset.pattern.permute.xlu0 18
        %1132 = vperm.xlu0 %1131, %v546
        %v1133 = vpop.permute.xlu0 %1132
        %v1135 = vsel %vm1123, %v1129, %v1103
        %v1136 = vsel %vm1124, %v1133, %v1104
        %1137 = vset.pattern.permute.xlu0 17
        %1138 = vperm.xlu0 %1137, %v582
        %v1139 = vpop.permute.xlu0 %1138
        %1141 = vset.pattern.permute.xlu0 17
        %1142 = vperm.xlu0 %1141, %v584
        %v1143 = vpop.permute.xlu0 %1142
        %v1145 = vsel %vm1123, %v1139, %v1113
        %v1146 = vsel %vm1124, %v1143, %v1114
        %1147 = vset.pattern.permute.xlu0 18
        %1148 = vperm.xlu0 %1147, %v533
        %v1149 = vpop.permute.xlu0 %1148
        %1151 = vset.pattern.permute.xlu0 18
        %1152 = vperm.xlu0 %1151, %v534
        %v1153 = vpop.permute.xlu0 %1152
        %vm1155 = vcmp.le.f32.partialorder %v1149, %v431
        %vm1156 = vcmp.le.f32.partialorder %v1153, %v432
        %v1157 = vsel %vm1155, %v1149, %v1125
        %v1158 = vsel %vm1156, %v1153, %v1126
        %1159 = vset.pattern.permute.xlu0 19
        %1160 = vperm.xlu0 %1159, %v545
        %v1161 = vpop.permute.xlu0 %1160
        %1163 = vset.pattern.permute.xlu0 19
        %1164 = vperm.xlu0 %1163, %v546
        %v1165 = vpop.permute.xlu0 %1164
        %v1167 = vsel %vm1155, %v1161, %v1135
        %v1168 = vsel %vm1156, %v1165, %v1136
        %1169 = vset.pattern.permute.xlu0 18
        %1170 = vperm.xlu0 %1169, %v582
        %v1171 = vpop.permute.xlu0 %1170
        %1173 = vset.pattern.permute.xlu0 18
        %1174 = vperm.xlu0 %1173, %v584
        %v1175 = vpop.permute.xlu0 %1174
        %v1177 = vsel %vm1155, %v1171, %v1145
        %v1178 = vsel %vm1156, %v1175, %v1146
        %1179 = vset.pattern.permute.xlu0 19
        %1180 = vperm.xlu0 %1179, %v533
        %v1181 = vpop.permute.xlu0 %1180
        %1183 = vset.pattern.permute.xlu0 19
        %1184 = vperm.xlu0 %1183, %v534
        %v1185 = vpop.permute.xlu0 %1184
        %vm1187 = vcmp.le.f32.partialorder %v1181, %v431
        %vm1188 = vcmp.le.f32.partialorder %v1185, %v432
        %v1189 = vsel %vm1187, %v1181, %v1157
        %v1190 = vsel %vm1188, %v1185, %v1158
        %1191 = vset.pattern.permute.xlu0 20
        %1192 = vperm.xlu0 %1191, %v545
        %v1193 = vpop.permute.xlu0 %1192
        %1195 = vset.pattern.permute.xlu0 20
        %1196 = vperm.xlu0 %1195, %v546
        %v1197 = vpop.permute.xlu0 %1196
        %v1199 = vsel %vm1187, %v1193, %v1167
        %v1200 = vsel %vm1188, %v1197, %v1168
        %1201 = vset.pattern.permute.xlu0 19
        %1202 = vperm.xlu0 %1201, %v582
        %v1203 = vpop.permute.xlu0 %1202
        %1205 = vset.pattern.permute.xlu0 19
        %1206 = vperm.xlu0 %1205, %v584
        %v1207 = vpop.permute.xlu0 %1206
        %v1209 = vsel %vm1187, %v1203, %v1177
        %v1210 = vsel %vm1188, %v1207, %v1178
        %1211 = vset.pattern.permute.xlu0 20
        %1212 = vperm.xlu0 %1211, %v533
        %v1213 = vpop.permute.xlu0 %1212
        %1215 = vset.pattern.permute.xlu0 20
        %1216 = vperm.xlu0 %1215, %v534
        %v1217 = vpop.permute.xlu0 %1216
        %vm1219 = vcmp.le.f32.partialorder %v1213, %v431
        %vm1220 = vcmp.le.f32.partialorder %v1217, %v432
        %v1221 = vsel %vm1219, %v1213, %v1189
        %v1222 = vsel %vm1220, %v1217, %v1190
        %1223 = vset.pattern.permute.xlu0 21
        %1224 = vperm.xlu0 %1223, %v545
        %v1225 = vpop.permute.xlu0 %1224
        %1227 = vset.pattern.permute.xlu0 21
        %1228 = vperm.xlu0 %1227, %v546
        %v1229 = vpop.permute.xlu0 %1228
        %v1231 = vsel %vm1219, %v1225, %v1199
        %v1232 = vsel %vm1220, %v1229, %v1200
        %1233 = vset.pattern.permute.xlu0 20
        %1234 = vperm.xlu0 %1233, %v582
        %v1235 = vpop.permute.xlu0 %1234
        %1237 = vset.pattern.permute.xlu0 20
        %1238 = vperm.xlu0 %1237, %v584
        %v1239 = vpop.permute.xlu0 %1238
        %v1241 = vsel %vm1219, %v1235, %v1209
        %v1242 = vsel %vm1220, %v1239, %v1210
        %1243 = vset.pattern.permute.xlu0 21
        %1244 = vperm.xlu0 %1243, %v533
        %v1245 = vpop.permute.xlu0 %1244
        %1247 = vset.pattern.permute.xlu0 21
        %1248 = vperm.xlu0 %1247, %v534
        %v1249 = vpop.permute.xlu0 %1248
        %vm1251 = vcmp.le.f32.partialorder %v1245, %v431
        %vm1252 = vcmp.le.f32.partialorder %v1249, %v432
        %v1253 = vsel %vm1251, %v1245, %v1221
        %v1254 = vsel %vm1252, %v1249, %v1222
        %1255 = vset.pattern.permute.xlu0 22
        %1256 = vperm.xlu0 %1255, %v545
        %v1257 = vpop.permute.xlu0 %1256
        %1259 = vset.pattern.permute.xlu0 22
        %1260 = vperm.xlu0 %1259, %v546
        %v1261 = vpop.permute.xlu0 %1260
        %v1263 = vsel %vm1251, %v1257, %v1231
        %v1264 = vsel %vm1252, %v1261, %v1232
        %1265 = vset.pattern.permute.xlu0 21
        %1266 = vperm.xlu0 %1265, %v582
        %v1267 = vpop.permute.xlu0 %1266
        %1269 = vset.pattern.permute.xlu0 21
        %1270 = vperm.xlu0 %1269, %v584
        %v1271 = vpop.permute.xlu0 %1270
        %v1273 = vsel %vm1251, %v1267, %v1241
        %v1274 = vsel %vm1252, %v1271, %v1242
        %1275 = vset.pattern.permute.xlu0 22
        %1276 = vperm.xlu0 %1275, %v533
        %v1277 = vpop.permute.xlu0 %1276
        %1279 = vset.pattern.permute.xlu0 22
        %1280 = vperm.xlu0 %1279, %v534
        %v1281 = vpop.permute.xlu0 %1280
        %vm1283 = vcmp.le.f32.partialorder %v1277, %v431
        %vm1284 = vcmp.le.f32.partialorder %v1281, %v432
        %v1285 = vsel %vm1283, %v1277, %v1253
        %v1286 = vsel %vm1284, %v1281, %v1254
        %1287 = vset.pattern.permute.xlu0 23
        %1288 = vperm.xlu0 %1287, %v545
        %v1289 = vpop.permute.xlu0 %1288
        %1291 = vset.pattern.permute.xlu0 23
        %1292 = vperm.xlu0 %1291, %v546
        %v1293 = vpop.permute.xlu0 %1292
        %v1295 = vsel %vm1283, %v1289, %v1263
        %v1296 = vsel %vm1284, %v1293, %v1264
        %1297 = vset.pattern.permute.xlu0 22
        %1298 = vperm.xlu0 %1297, %v582
        %v1299 = vpop.permute.xlu0 %1298
        %1301 = vset.pattern.permute.xlu0 22
        %1302 = vperm.xlu0 %1301, %v584
        %v1303 = vpop.permute.xlu0 %1302
        %v1305 = vsel %vm1283, %v1299, %v1273
        %v1306 = vsel %vm1284, %v1303, %v1274
        %1307 = vset.pattern.permute.xlu0 23
        %1308 = vperm.xlu0 %1307, %v533
        %v1309 = vpop.permute.xlu0 %1308
        %1311 = vset.pattern.permute.xlu0 23
        %1312 = vperm.xlu0 %1311, %v534
        %v1313 = vpop.permute.xlu0 %1312
        %vm1315 = vcmp.le.f32.partialorder %v1309, %v431
        %vm1316 = vcmp.le.f32.partialorder %v1313, %v432
        %v1317 = vsel %vm1315, %v1309, %v1285
        %v1318 = vsel %vm1316, %v1313, %v1286
        %1319 = vset.pattern.permute.xlu0 24
        %1320 = vperm.xlu0 %1319, %v545
        %v1321 = vpop.permute.xlu0 %1320
        %1323 = vset.pattern.permute.xlu0 24
        %1324 = vperm.xlu0 %1323, %v546
        %v1325 = vpop.permute.xlu0 %1324
        %v1327 = vsel %vm1315, %v1321, %v1295
        %v1328 = vsel %vm1316, %v1325, %v1296
        %1329 = vset.pattern.permute.xlu0 23
        %1330 = vperm.xlu0 %1329, %v582
        %v1331 = vpop.permute.xlu0 %1330
        %1333 = vset.pattern.permute.xlu0 23
        %1334 = vperm.xlu0 %1333, %v584
        %v1335 = vpop.permute.xlu0 %1334
        %v1337 = vsel %vm1315, %v1331, %v1305
        %v1338 = vsel %vm1316, %v1335, %v1306
        %1339 = vset.pattern.permute.xlu0 24
        %1340 = vperm.xlu0 %1339, %v533
        %v1341 = vpop.permute.xlu0 %1340
        %1343 = vset.pattern.permute.xlu0 24
        %1344 = vperm.xlu0 %1343, %v534
        %v1345 = vpop.permute.xlu0 %1344
        %vm1347 = vcmp.le.f32.partialorder %v1341, %v431
        %vm1348 = vcmp.le.f32.partialorder %v1345, %v432
        %v1349 = vsel %vm1347, %v1341, %v1317
        %v1350 = vsel %vm1348, %v1345, %v1318
        %1351 = vset.pattern.permute.xlu0 25
        %1352 = vperm.xlu0 %1351, %v545
        %v1353 = vpop.permute.xlu0 %1352
        %1355 = vset.pattern.permute.xlu0 25
        %1356 = vperm.xlu0 %1355, %v546
        %v1357 = vpop.permute.xlu0 %1356
        %v1359 = vsel %vm1347, %v1353, %v1327
        %v1360 = vsel %vm1348, %v1357, %v1328
        %1361 = vset.pattern.permute.xlu0 24
        %1362 = vperm.xlu0 %1361, %v582
        %v1363 = vpop.permute.xlu0 %1362
        %1365 = vset.pattern.permute.xlu0 24
        %1366 = vperm.xlu0 %1365, %v584
        %v1367 = vpop.permute.xlu0 %1366
        %v1369 = vsel %vm1347, %v1363, %v1337
        %v1370 = vsel %vm1348, %v1367, %v1338
        %1371 = vset.pattern.permute.xlu0 25
        %1372 = vperm.xlu0 %1371, %v533
        %v1373 = vpop.permute.xlu0 %1372
        %1375 = vset.pattern.permute.xlu0 25
        %1376 = vperm.xlu0 %1375, %v534
        %v1377 = vpop.permute.xlu0 %1376
        %vm1379 = vcmp.le.f32.partialorder %v1373, %v431
        %vm1380 = vcmp.le.f32.partialorder %v1377, %v432
        %v1381 = vsel %vm1379, %v1373, %v1349
        %v1382 = vsel %vm1380, %v1377, %v1350
        %1383 = vset.pattern.permute.xlu0 26
        %1384 = vperm.xlu0 %1383, %v545
        %v1385 = vpop.permute.xlu0 %1384
        %1387 = vset.pattern.permute.xlu0 26
        %1388 = vperm.xlu0 %1387, %v546
        %v1389 = vpop.permute.xlu0 %1388
        %v1391 = vsel %vm1379, %v1385, %v1359
        %v1392 = vsel %vm1380, %v1389, %v1360
        %1393 = vset.pattern.permute.xlu0 25
        %1394 = vperm.xlu0 %1393, %v582
        %v1395 = vpop.permute.xlu0 %1394
        %1397 = vset.pattern.permute.xlu0 25
        %1398 = vperm.xlu0 %1397, %v584
        %v1399 = vpop.permute.xlu0 %1398
        %v1401 = vsel %vm1379, %v1395, %v1369
        %v1402 = vsel %vm1380, %v1399, %v1370
        %1403 = vset.pattern.permute.xlu0 26
        %1404 = vperm.xlu0 %1403, %v533
        %v1405 = vpop.permute.xlu0 %1404
        %1407 = vset.pattern.permute.xlu0 26
        %1408 = vperm.xlu0 %1407, %v534
        %v1409 = vpop.permute.xlu0 %1408
        %vm1411 = vcmp.le.f32.partialorder %v1405, %v431
        %vm1412 = vcmp.le.f32.partialorder %v1409, %v432
        %v1413 = vsel %vm1411, %v1405, %v1381
        %v1414 = vsel %vm1412, %v1409, %v1382
        %1415 = vset.pattern.permute.xlu0 27
        %1416 = vperm.xlu0 %1415, %v545
        %v1417 = vpop.permute.xlu0 %1416
        %1419 = vset.pattern.permute.xlu0 27
        %1420 = vperm.xlu0 %1419, %v546
        %v1421 = vpop.permute.xlu0 %1420
        %v1423 = vsel %vm1411, %v1417, %v1391
        %v1424 = vsel %vm1412, %v1421, %v1392
        %1425 = vset.pattern.permute.xlu0 26
        %1426 = vperm.xlu0 %1425, %v582
        %v1427 = vpop.permute.xlu0 %1426
        %1429 = vset.pattern.permute.xlu0 26
        %1430 = vperm.xlu0 %1429, %v584
        %v1431 = vpop.permute.xlu0 %1430
        %v1433 = vsel %vm1411, %v1427, %v1401
        %v1434 = vsel %vm1412, %v1431, %v1402
        %1435 = vset.pattern.permute.xlu0 27
        %1436 = vperm.xlu0 %1435, %v533
        %v1437 = vpop.permute.xlu0 %1436
        %1439 = vset.pattern.permute.xlu0 27
        %1440 = vperm.xlu0 %1439, %v534
        %v1441 = vpop.permute.xlu0 %1440
        %vm1443 = vcmp.le.f32.partialorder %v1437, %v431
        %vm1444 = vcmp.le.f32.partialorder %v1441, %v432
        %v1445 = vsel %vm1443, %v1437, %v1413
        %v1446 = vsel %vm1444, %v1441, %v1414
        %1447 = vset.pattern.permute.xlu0 28
        %1448 = vperm.xlu0 %1447, %v545
        %v1449 = vpop.permute.xlu0 %1448
        %1451 = vset.pattern.permute.xlu0 28
        %1452 = vperm.xlu0 %1451, %v546
        %v1453 = vpop.permute.xlu0 %1452
        %v1455 = vsel %vm1443, %v1449, %v1423
        %v1456 = vsel %vm1444, %v1453, %v1424
        %1457 = vset.pattern.permute.xlu0 27
        %1458 = vperm.xlu0 %1457, %v582
        %v1459 = vpop.permute.xlu0 %1458
        %1461 = vset.pattern.permute.xlu0 27
        %1462 = vperm.xlu0 %1461, %v584
        %v1463 = vpop.permute.xlu0 %1462
        %v1465 = vsel %vm1443, %v1459, %v1433
        %v1466 = vsel %vm1444, %v1463, %v1434
        %1467 = vset.pattern.permute.xlu0 28
        %1468 = vperm.xlu0 %1467, %v533
        %v1469 = vpop.permute.xlu0 %1468
        %1471 = vset.pattern.permute.xlu0 28
        %1472 = vperm.xlu0 %1471, %v534
        %v1473 = vpop.permute.xlu0 %1472
        %vm1475 = vcmp.le.f32.partialorder %v1469, %v431
        %vm1476 = vcmp.le.f32.partialorder %v1473, %v432
        %v1477 = vsel %vm1475, %v1469, %v1445
        %v1478 = vsel %vm1476, %v1473, %v1446
        %1479 = vset.pattern.permute.xlu0 29
        %1480 = vperm.xlu0 %1479, %v545
        %v1481 = vpop.permute.xlu0 %1480
        %1483 = vset.pattern.permute.xlu0 29
        %1484 = vperm.xlu0 %1483, %v546
        %v1485 = vpop.permute.xlu0 %1484
        %v1487 = vsel %vm1475, %v1481, %v1455
        %v1488 = vsel %vm1476, %v1485, %v1456
        %1489 = vset.pattern.permute.xlu0 28
        %1490 = vperm.xlu0 %1489, %v582
        %v1491 = vpop.permute.xlu0 %1490
        %1493 = vset.pattern.permute.xlu0 28
        %1494 = vperm.xlu0 %1493, %v584
        %v1495 = vpop.permute.xlu0 %1494
        %v1497 = vsel %vm1475, %v1491, %v1465
        %v1498 = vsel %vm1476, %v1495, %v1466
        %1499 = vset.pattern.permute.xlu0 29
        %1500 = vperm.xlu0 %1499, %v533
        %v1501 = vpop.permute.xlu0 %1500
        %1503 = vset.pattern.permute.xlu0 29
        %1504 = vperm.xlu0 %1503, %v534
        %v1505 = vpop.permute.xlu0 %1504
        %vm1507 = vcmp.le.f32.partialorder %v1501, %v431
        %vm1508 = vcmp.le.f32.partialorder %v1505, %v432
        %v1509 = vsel %vm1507, %v1501, %v1477
        %v1510 = vsel %vm1508, %v1505, %v1478
        %1511 = vset.pattern.permute.xlu0 30
        %1512 = vperm.xlu0 %1511, %v545
        %v1513 = vpop.permute.xlu0 %1512
        %1515 = vset.pattern.permute.xlu0 30
        %1516 = vperm.xlu0 %1515, %v546
        %v1517 = vpop.permute.xlu0 %1516
        %v1519 = vsel %vm1507, %v1513, %v1487
        %v1520 = vsel %vm1508, %v1517, %v1488
        %1521 = vset.pattern.permute.xlu0 29
        %1522 = vperm.xlu0 %1521, %v582
        %v1523 = vpop.permute.xlu0 %1522
        %1525 = vset.pattern.permute.xlu0 29
        %1526 = vperm.xlu0 %1525, %v584
        %v1527 = vpop.permute.xlu0 %1526
        %v1529 = vsel %vm1507, %v1523, %v1497
        %v1530 = vsel %vm1508, %v1527, %v1498
        %1531 = vset.pattern.permute.xlu0 30
        %1532 = vperm.xlu0 %1531, %v533
        %v1533 = vpop.permute.xlu0 %1532
        %1535 = vset.pattern.permute.xlu0 30
        %1536 = vperm.xlu0 %1535, %v534
        %v1537 = vpop.permute.xlu0 %1536
        %vm1539 = vcmp.le.f32.partialorder %v1533, %v431
        %vm1540 = vcmp.le.f32.partialorder %v1537, %v432
        %v1541 = vsel %vm1539, %v1533, %v1509
        %v1542 = vsel %vm1540, %v1537, %v1510
        %1543 = vset.pattern.permute.xlu0 31
        %1544 = vperm.xlu0 %1543, %v545
        %v1545 = vpop.permute.xlu0 %1544
        %1547 = vset.pattern.permute.xlu0 31
        %1548 = vperm.xlu0 %1547, %v546
        %v1549 = vpop.permute.xlu0 %1548
        %v1551 = vsel %vm1539, %v1545, %v1519
        %v1552 = vsel %vm1540, %v1549, %v1520
        %1553 = vset.pattern.permute.xlu0 30
        %1554 = vperm.xlu0 %1553, %v582
        %v1555 = vpop.permute.xlu0 %1554
        %1557 = vset.pattern.permute.xlu0 30
        %1558 = vperm.xlu0 %1557, %v584
        %v1559 = vpop.permute.xlu0 %1558
        %v1561 = vsel %vm1539, %v1555, %v1529
        %v1562 = vsel %vm1540, %v1559, %v1530
        %1563 = vset.pattern.permute.xlu0 31
        %1564 = vperm.xlu0 %1563, %v533
        %v1565 = vpop.permute.xlu0 %1564
        %1567 = vset.pattern.permute.xlu0 31
        %1568 = vperm.xlu0 %1567, %v534
        %v1569 = vpop.permute.xlu0 %1568
        %vm1571 = vcmp.le.f32.partialorder %v1565, %v431
        %vm1572 = vcmp.le.f32.partialorder %v1569, %v432
        %v1573 = vsel %vm1571, %v1565, %v1541
        %v1574 = vsel %vm1572, %v1569, %v1542
        %1575 = vset.pattern.permute.xlu0 32
        %1576 = vperm.xlu0 %1575, %v545
        %v1577 = vpop.permute.xlu0 %1576
        %1579 = vset.pattern.permute.xlu0 32
        %1580 = vperm.xlu0 %1579, %v546
        %v1581 = vpop.permute.xlu0 %1580
        %v1583 = vsel %vm1571, %v1577, %v1551
        %v1584 = vsel %vm1572, %v1581, %v1552
        %1585 = vset.pattern.permute.xlu0 31
        %1586 = vperm.xlu0 %1585, %v582
        %v1587 = vpop.permute.xlu0 %1586
        %1589 = vset.pattern.permute.xlu0 31
        %1590 = vperm.xlu0 %1589, %v584
        %v1591 = vpop.permute.xlu0 %1590
        %v1593 = vsel %vm1571, %v1587, %v1561
        %v1594 = vsel %vm1572, %v1591, %v1562
        %1595 = vset.pattern.permute.xlu0 32
        %1596 = vperm.xlu0 %1595, %v533
        %v1597 = vpop.permute.xlu0 %1596
        %1599 = vset.pattern.permute.xlu0 32
        %1600 = vperm.xlu0 %1599, %v534
        %v1601 = vpop.permute.xlu0 %1600
        %vm1603 = vcmp.le.f32.partialorder %v1597, %v431
        %vm1604 = vcmp.le.f32.partialorder %v1601, %v432
        %v1605 = vsel %vm1603, %v1597, %v1573
        %v1606 = vsel %vm1604, %v1601, %v1574
        %1607 = vset.pattern.permute.xlu0 33
        %1608 = vperm.xlu0 %1607, %v545
        %v1609 = vpop.permute.xlu0 %1608
        %1611 = vset.pattern.permute.xlu0 33
        %1612 = vperm.xlu0 %1611, %v546
        %v1613 = vpop.permute.xlu0 %1612
        %v1615 = vsel %vm1603, %v1609, %v1583
        %v1616 = vsel %vm1604, %v1613, %v1584
        %1617 = vset.pattern.permute.xlu0 32
        %1618 = vperm.xlu0 %1617, %v582
        %v1619 = vpop.permute.xlu0 %1618
        %1621 = vset.pattern.permute.xlu0 32
        %1622 = vperm.xlu0 %1621, %v584
        %v1623 = vpop.permute.xlu0 %1622
        %v1625 = vsel %vm1603, %v1619, %v1593
        %v1626 = vsel %vm1604, %v1623, %v1594
        %1627 = vset.pattern.permute.xlu0 33
        %1628 = vperm.xlu0 %1627, %v533
        %v1629 = vpop.permute.xlu0 %1628
        %1631 = vset.pattern.permute.xlu0 33
        %1632 = vperm.xlu0 %1631, %v534
        %v1633 = vpop.permute.xlu0 %1632
        %vm1635 = vcmp.le.f32.partialorder %v1629, %v431
        %vm1636 = vcmp.le.f32.partialorder %v1633, %v432
        %v1637 = vsel %vm1635, %v1629, %v1605
        %v1638 = vsel %vm1636, %v1633, %v1606
        %1639 = vset.pattern.permute.xlu0 34
        %1640 = vperm.xlu0 %1639, %v545
        %v1641 = vpop.permute.xlu0 %1640
        %1643 = vset.pattern.permute.xlu0 34
        %1644 = vperm.xlu0 %1643, %v546
        %v1645 = vpop.permute.xlu0 %1644
        %v1647 = vsel %vm1635, %v1641, %v1615
        %v1648 = vsel %vm1636, %v1645, %v1616
        %1649 = vset.pattern.permute.xlu0 33
        %1650 = vperm.xlu0 %1649, %v582
        %v1651 = vpop.permute.xlu0 %1650
        %1653 = vset.pattern.permute.xlu0 33
        %1654 = vperm.xlu0 %1653, %v584
        %v1655 = vpop.permute.xlu0 %1654
        %v1657 = vsel %vm1635, %v1651, %v1625
        %v1658 = vsel %vm1636, %v1655, %v1626
        %1659 = vset.pattern.permute.xlu0 34
        %1660 = vperm.xlu0 %1659, %v533
        %v1661 = vpop.permute.xlu0 %1660
        %1663 = vset.pattern.permute.xlu0 34
        %1664 = vperm.xlu0 %1663, %v534
        %v1665 = vpop.permute.xlu0 %1664
        %vm1667 = vcmp.le.f32.partialorder %v1661, %v431
        %vm1668 = vcmp.le.f32.partialorder %v1665, %v432
        %v1669 = vsel %vm1667, %v1661, %v1637
        %v1670 = vsel %vm1668, %v1665, %v1638
        %1671 = vset.pattern.permute.xlu0 35
        %1672 = vperm.xlu0 %1671, %v545
        %v1673 = vpop.permute.xlu0 %1672
        %1675 = vset.pattern.permute.xlu0 35
        %1676 = vperm.xlu0 %1675, %v546
        %v1677 = vpop.permute.xlu0 %1676
        %v1679 = vsel %vm1667, %v1673, %v1647
        %v1680 = vsel %vm1668, %v1677, %v1648
        %1681 = vset.pattern.permute.xlu0 34
        %1682 = vperm.xlu0 %1681, %v582
        %v1683 = vpop.permute.xlu0 %1682
        %1685 = vset.pattern.permute.xlu0 34
        %1686 = vperm.xlu0 %1685, %v584
        %v1687 = vpop.permute.xlu0 %1686
        %v1689 = vsel %vm1667, %v1683, %v1657
        %v1690 = vsel %vm1668, %v1687, %v1658
        %1691 = vset.pattern.permute.xlu0 35
        %1692 = vperm.xlu0 %1691, %v533
        %v1693 = vpop.permute.xlu0 %1692
        %1695 = vset.pattern.permute.xlu0 35
        %1696 = vperm.xlu0 %1695, %v534
        %v1697 = vpop.permute.xlu0 %1696
        %vm1699 = vcmp.le.f32.partialorder %v1693, %v431
        %vm1700 = vcmp.le.f32.partialorder %v1697, %v432
        %v1701 = vsel %vm1699, %v1693, %v1669
        %v1702 = vsel %vm1700, %v1697, %v1670
        %1703 = vset.pattern.permute.xlu0 36
        %1704 = vperm.xlu0 %1703, %v545
        %v1705 = vpop.permute.xlu0 %1704
        %1707 = vset.pattern.permute.xlu0 36
        %1708 = vperm.xlu0 %1707, %v546
        %v1709 = vpop.permute.xlu0 %1708
        %v1711 = vsel %vm1699, %v1705, %v1679
        %v1712 = vsel %vm1700, %v1709, %v1680
        %1713 = vset.pattern.permute.xlu0 35
        %1714 = vperm.xlu0 %1713, %v582
        %v1715 = vpop.permute.xlu0 %1714
        %1717 = vset.pattern.permute.xlu0 35
        %1718 = vperm.xlu0 %1717, %v584
        %v1719 = vpop.permute.xlu0 %1718
        %v1721 = vsel %vm1699, %v1715, %v1689
        %v1722 = vsel %vm1700, %v1719, %v1690
        %1723 = vset.pattern.permute.xlu0 36
        %1724 = vperm.xlu0 %1723, %v533
        %v1725 = vpop.permute.xlu0 %1724
        %1727 = vset.pattern.permute.xlu0 36
        %1728 = vperm.xlu0 %1727, %v534
        %v1729 = vpop.permute.xlu0 %1728
        %vm1731 = vcmp.le.f32.partialorder %v1725, %v431
        %vm1732 = vcmp.le.f32.partialorder %v1729, %v432
        %v1733 = vsel %vm1731, %v1725, %v1701
        %v1734 = vsel %vm1732, %v1729, %v1702
        %1735 = vset.pattern.permute.xlu0 37
        %1736 = vperm.xlu0 %1735, %v545
        %v1737 = vpop.permute.xlu0 %1736
        %1739 = vset.pattern.permute.xlu0 37
        %1740 = vperm.xlu0 %1739, %v546
        %v1741 = vpop.permute.xlu0 %1740
        %v1743 = vsel %vm1731, %v1737, %v1711
        %v1744 = vsel %vm1732, %v1741, %v1712
        %1745 = vset.pattern.permute.xlu0 36
        %1746 = vperm.xlu0 %1745, %v582
        %v1747 = vpop.permute.xlu0 %1746
        %1749 = vset.pattern.permute.xlu0 36
        %1750 = vperm.xlu0 %1749, %v584
        %v1751 = vpop.permute.xlu0 %1750
        %v1753 = vsel %vm1731, %v1747, %v1721
        %v1754 = vsel %vm1732, %v1751, %v1722
        %1755 = vset.pattern.permute.xlu0 37
        %1756 = vperm.xlu0 %1755, %v533
        %v1757 = vpop.permute.xlu0 %1756
        %1759 = vset.pattern.permute.xlu0 37
        %1760 = vperm.xlu0 %1759, %v534
        %v1761 = vpop.permute.xlu0 %1760
        %vm1763 = vcmp.le.f32.partialorder %v1757, %v431
        %vm1764 = vcmp.le.f32.partialorder %v1761, %v432
        %v1765 = vsel %vm1763, %v1757, %v1733
        %v1766 = vsel %vm1764, %v1761, %v1734
        %1767 = vset.pattern.permute.xlu0 38
        %1768 = vperm.xlu0 %1767, %v545
        %v1769 = vpop.permute.xlu0 %1768
        %1771 = vset.pattern.permute.xlu0 38
        %1772 = vperm.xlu0 %1771, %v546
        %v1773 = vpop.permute.xlu0 %1772
        %v1775 = vsel %vm1763, %v1769, %v1743
        %v1776 = vsel %vm1764, %v1773, %v1744
        %1777 = vset.pattern.permute.xlu0 37
        %1778 = vperm.xlu0 %1777, %v582
        %v1779 = vpop.permute.xlu0 %1778
        %1781 = vset.pattern.permute.xlu0 37
        %1782 = vperm.xlu0 %1781, %v584
        %v1783 = vpop.permute.xlu0 %1782
        %v1785 = vsel %vm1763, %v1779, %v1753
        %v1786 = vsel %vm1764, %v1783, %v1754
        %1787 = vset.pattern.permute.xlu0 38
        %1788 = vperm.xlu0 %1787, %v533
        %v1789 = vpop.permute.xlu0 %1788
        %1791 = vset.pattern.permute.xlu0 38
        %1792 = vperm.xlu0 %1791, %v534
        %v1793 = vpop.permute.xlu0 %1792
        %vm1795 = vcmp.le.f32.partialorder %v1789, %v431
        %vm1796 = vcmp.le.f32.partialorder %v1793, %v432
        %v1797 = vsel %vm1795, %v1789, %v1765
        %v1798 = vsel %vm1796, %v1793, %v1766
        %1799 = vset.pattern.permute.xlu0 39
        %1800 = vperm.xlu0 %1799, %v545
        %v1801 = vpop.permute.xlu0 %1800
        %1803 = vset.pattern.permute.xlu0 39
        %1804 = vperm.xlu0 %1803, %v546
        %v1805 = vpop.permute.xlu0 %1804
        %v1807 = vsel %vm1795, %v1801, %v1775
        %v1808 = vsel %vm1796, %v1805, %v1776
        %1809 = vset.pattern.permute.xlu0 38
        %1810 = vperm.xlu0 %1809, %v582
        %v1811 = vpop.permute.xlu0 %1810
        %1813 = vset.pattern.permute.xlu0 38
        %1814 = vperm.xlu0 %1813, %v584
        %v1815 = vpop.permute.xlu0 %1814
        %v1817 = vsel %vm1795, %v1811, %v1785
        %v1818 = vsel %vm1796, %v1815, %v1786
        %1819 = vset.pattern.permute.xlu0 39
        %1820 = vperm.xlu0 %1819, %v533
        %v1821 = vpop.permute.xlu0 %1820
        %1823 = vset.pattern.permute.xlu0 39
        %1824 = vperm.xlu0 %1823, %v534
        %v1825 = vpop.permute.xlu0 %1824
        %vm1827 = vcmp.le.f32.partialorder %v1821, %v431
        %vm1828 = vcmp.le.f32.partialorder %v1825, %v432
        %v1829 = vsel %vm1827, %v1821, %v1797
        %v1830 = vsel %vm1828, %v1825, %v1798
        %1831 = vset.pattern.permute.xlu0 40
        %1832 = vperm.xlu0 %1831, %v545
        %v1833 = vpop.permute.xlu0 %1832
        %1835 = vset.pattern.permute.xlu0 40
        %1836 = vperm.xlu0 %1835, %v546
        %v1837 = vpop.permute.xlu0 %1836
        %v1839 = vsel %vm1827, %v1833, %v1807
        %v1840 = vsel %vm1828, %v1837, %v1808
        %1841 = vset.pattern.permute.xlu0 39
        %1842 = vperm.xlu0 %1841, %v582
        %v1843 = vpop.permute.xlu0 %1842
        %1845 = vset.pattern.permute.xlu0 39
        %1846 = vperm.xlu0 %1845, %v584
        %v1847 = vpop.permute.xlu0 %1846
        %v1849 = vsel %vm1827, %v1843, %v1817
        %v1850 = vsel %vm1828, %v1847, %v1818
        %1851 = vset.pattern.permute.xlu0 40
        %1852 = vperm.xlu0 %1851, %v533
        %v1853 = vpop.permute.xlu0 %1852
        %1855 = vset.pattern.permute.xlu0 40
        %1856 = vperm.xlu0 %1855, %v534
        %v1857 = vpop.permute.xlu0 %1856
        %vm1859 = vcmp.le.f32.partialorder %v1853, %v431
        %vm1860 = vcmp.le.f32.partialorder %v1857, %v432
        %v1861 = vsel %vm1859, %v1853, %v1829
        %v1862 = vsel %vm1860, %v1857, %v1830
        %1863 = vset.pattern.permute.xlu0 41
        %1864 = vperm.xlu0 %1863, %v545
        %v1865 = vpop.permute.xlu0 %1864
        %1867 = vset.pattern.permute.xlu0 41
        %1868 = vperm.xlu0 %1867, %v546
        %v1869 = vpop.permute.xlu0 %1868
        %v1871 = vsel %vm1859, %v1865, %v1839
        %v1872 = vsel %vm1860, %v1869, %v1840
        %1873 = vset.pattern.permute.xlu0 40
        %1874 = vperm.xlu0 %1873, %v582
        %v1875 = vpop.permute.xlu0 %1874
        %1877 = vset.pattern.permute.xlu0 40
        %1878 = vperm.xlu0 %1877, %v584
        %v1879 = vpop.permute.xlu0 %1878
        %v1881 = vsel %vm1859, %v1875, %v1849
        %v1882 = vsel %vm1860, %v1879, %v1850
        %1883 = vset.pattern.permute.xlu0 41
        %1884 = vperm.xlu0 %1883, %v533
        %v1885 = vpop.permute.xlu0 %1884
        %1887 = vset.pattern.permute.xlu0 41
        %1888 = vperm.xlu0 %1887, %v534
        %v1889 = vpop.permute.xlu0 %1888
        %vm1891 = vcmp.le.f32.partialorder %v1885, %v431
        %vm1892 = vcmp.le.f32.partialorder %v1889, %v432
        %v1893 = vsel %vm1891, %v1885, %v1861
        %v1894 = vsel %vm1892, %v1889, %v1862
        %1895 = vset.pattern.permute.xlu0 42
        %1896 = vperm.xlu0 %1895, %v545
        %v1897 = vpop.permute.xlu0 %1896
        %1899 = vset.pattern.permute.xlu0 42
        %1900 = vperm.xlu0 %1899, %v546
        %v1901 = vpop.permute.xlu0 %1900
        %v1903 = vsel %vm1891, %v1897, %v1871
        %v1904 = vsel %vm1892, %v1901, %v1872
        %1905 = vset.pattern.permute.xlu0 41
        %1906 = vperm.xlu0 %1905, %v582
        %v1907 = vpop.permute.xlu0 %1906
        %1909 = vset.pattern.permute.xlu0 41
        %1910 = vperm.xlu0 %1909, %v584
        %v1911 = vpop.permute.xlu0 %1910
        %v1913 = vsel %vm1891, %v1907, %v1881
        %v1914 = vsel %vm1892, %v1911, %v1882
        %1915 = vset.pattern.permute.xlu0 42
        %1916 = vperm.xlu0 %1915, %v533
        %v1917 = vpop.permute.xlu0 %1916
        %1919 = vset.pattern.permute.xlu0 42
        %1920 = vperm.xlu0 %1919, %v534
        %v1921 = vpop.permute.xlu0 %1920
        %vm1923 = vcmp.le.f32.partialorder %v1917, %v431
        %vm1924 = vcmp.le.f32.partialorder %v1921, %v432
        %v1925 = vsel %vm1923, %v1917, %v1893
        %v1926 = vsel %vm1924, %v1921, %v1894
        %1927 = vset.pattern.permute.xlu0 43
        %1928 = vperm.xlu0 %1927, %v545
        %v1929 = vpop.permute.xlu0 %1928
        %1931 = vset.pattern.permute.xlu0 43
        %1932 = vperm.xlu0 %1931, %v546
        %v1933 = vpop.permute.xlu0 %1932
        %v1935 = vsel %vm1923, %v1929, %v1903
        %v1936 = vsel %vm1924, %v1933, %v1904
        %1937 = vset.pattern.permute.xlu0 42
        %1938 = vperm.xlu0 %1937, %v582
        %v1939 = vpop.permute.xlu0 %1938
        %1941 = vset.pattern.permute.xlu0 42
        %1942 = vperm.xlu0 %1941, %v584
        %v1943 = vpop.permute.xlu0 %1942
        %v1945 = vsel %vm1923, %v1939, %v1913
        %v1946 = vsel %vm1924, %v1943, %v1914
        %1947 = vset.pattern.permute.xlu0 43
        %1948 = vperm.xlu0 %1947, %v533
        %v1949 = vpop.permute.xlu0 %1948
        %1951 = vset.pattern.permute.xlu0 43
        %1952 = vperm.xlu0 %1951, %v534
        %v1953 = vpop.permute.xlu0 %1952
        %vm1955 = vcmp.le.f32.partialorder %v1949, %v431
        %vm1956 = vcmp.le.f32.partialorder %v1953, %v432
        %v1957 = vsel %vm1955, %v1949, %v1925
        %v1958 = vsel %vm1956, %v1953, %v1926
        %1959 = vset.pattern.permute.xlu0 44
        %1960 = vperm.xlu0 %1959, %v545
        %v1961 = vpop.permute.xlu0 %1960
        %1963 = vset.pattern.permute.xlu0 44
        %1964 = vperm.xlu0 %1963, %v546
        %v1965 = vpop.permute.xlu0 %1964
        %v1967 = vsel %vm1955, %v1961, %v1935
        %v1968 = vsel %vm1956, %v1965, %v1936
        %1969 = vset.pattern.permute.xlu0 43
        %1970 = vperm.xlu0 %1969, %v582
        %v1971 = vpop.permute.xlu0 %1970
        %1973 = vset.pattern.permute.xlu0 43
        %1974 = vperm.xlu0 %1973, %v584
        %v1975 = vpop.permute.xlu0 %1974
        %v1977 = vsel %vm1955, %v1971, %v1945
        %v1978 = vsel %vm1956, %v1975, %v1946
        %1979 = vset.pattern.permute.xlu0 44
        %1980 = vperm.xlu0 %1979, %v533
        %v1981 = vpop.permute.xlu0 %1980
        %1983 = vset.pattern.permute.xlu0 44
        %1984 = vperm.xlu0 %1983, %v534
        %v1985 = vpop.permute.xlu0 %1984
        %vm1987 = vcmp.le.f32.partialorder %v1981, %v431
        %vm1988 = vcmp.le.f32.partialorder %v1985, %v432
        %v1989 = vsel %vm1987, %v1981, %v1957
        %v1990 = vsel %vm1988, %v1985, %v1958
        %1991 = vset.pattern.permute.xlu0 45
        %1992 = vperm.xlu0 %1991, %v545
        %v1993 = vpop.permute.xlu0 %1992
        %1995 = vset.pattern.permute.xlu0 45
        %1996 = vperm.xlu0 %1995, %v546
        %v1997 = vpop.permute.xlu0 %1996
        %v1999 = vsel %vm1987, %v1993, %v1967
        %v2000 = vsel %vm1988, %v1997, %v1968
        %2001 = vset.pattern.permute.xlu0 44
        %2002 = vperm.xlu0 %2001, %v582
        %v2003 = vpop.permute.xlu0 %2002
        %2005 = vset.pattern.permute.xlu0 44
        %2006 = vperm.xlu0 %2005, %v584
        %v2007 = vpop.permute.xlu0 %2006
        %v2009 = vsel %vm1987, %v2003, %v1977
        %v2010 = vsel %vm1988, %v2007, %v1978
        %2011 = vset.pattern.permute.xlu0 45
        %2012 = vperm.xlu0 %2011, %v533
        %v2013 = vpop.permute.xlu0 %2012
        %2015 = vset.pattern.permute.xlu0 45
        %2016 = vperm.xlu0 %2015, %v534
        %v2017 = vpop.permute.xlu0 %2016
        %vm2019 = vcmp.le.f32.partialorder %v2013, %v431
        %vm2020 = vcmp.le.f32.partialorder %v2017, %v432
        %v2021 = vsel %vm2019, %v2013, %v1989
        %v2022 = vsel %vm2020, %v2017, %v1990
        %2023 = vset.pattern.permute.xlu0 46
        %2024 = vperm.xlu0 %2023, %v545
        %v2025 = vpop.permute.xlu0 %2024
        %2027 = vset.pattern.permute.xlu0 46
        %2028 = vperm.xlu0 %2027, %v546
        %v2029 = vpop.permute.xlu0 %2028
        %v2031 = vsel %vm2019, %v2025, %v1999
        %v2032 = vsel %vm2020, %v2029, %v2000
        %2033 = vset.pattern.permute.xlu0 45
        %2034 = vperm.xlu0 %2033, %v582
        %v2035 = vpop.permute.xlu0 %2034
        %2037 = vset.pattern.permute.xlu0 45
        %2038 = vperm.xlu0 %2037, %v584
        %v2039 = vpop.permute.xlu0 %2038
        %v2041 = vsel %vm2019, %v2035, %v2009
        %v2042 = vsel %vm2020, %v2039, %v2010
        %2043 = vset.pattern.permute.xlu0 46
        %2044 = vperm.xlu0 %2043, %v533
        %v2045 = vpop.permute.xlu0 %2044
        %2047 = vset.pattern.permute.xlu0 46
        %2048 = vperm.xlu0 %2047, %v534
        %v2049 = vpop.permute.xlu0 %2048
        %vm2051 = vcmp.le.f32.partialorder %v2045, %v431
        %vm2052 = vcmp.le.f32.partialorder %v2049, %v432
        %v2053 = vsel %vm2051, %v2045, %v2021
        %v2054 = vsel %vm2052, %v2049, %v2022
        %2055 = vset.pattern.permute.xlu0 47
        %2056 = vperm.xlu0 %2055, %v545
        %v2057 = vpop.permute.xlu0 %2056
        %2059 = vset.pattern.permute.xlu0 47
        %2060 = vperm.xlu0 %2059, %v546
        %v2061 = vpop.permute.xlu0 %2060
        %v2063 = vsel %vm2051, %v2057, %v2031
        %v2064 = vsel %vm2052, %v2061, %v2032
        %2065 = vset.pattern.permute.xlu0 46
        %2066 = vperm.xlu0 %2065, %v582
        %v2067 = vpop.permute.xlu0 %2066
        %2069 = vset.pattern.permute.xlu0 46
        %2070 = vperm.xlu0 %2069, %v584
        %v2071 = vpop.permute.xlu0 %2070
        %v2073 = vsel %vm2051, %v2067, %v2041
        %v2074 = vsel %vm2052, %v2071, %v2042
        %2075 = vset.pattern.permute.xlu0 47
        %2076 = vperm.xlu0 %2075, %v533
        %v2077 = vpop.permute.xlu0 %2076
        %2079 = vset.pattern.permute.xlu0 47
        %2080 = vperm.xlu0 %2079, %v534
        %v2081 = vpop.permute.xlu0 %2080
        %vm2083 = vcmp.le.f32.partialorder %v2077, %v431
        %vm2084 = vcmp.le.f32.partialorder %v2081, %v432
        %v2085 = vsel %vm2083, %v2077, %v2053
        %v2086 = vsel %vm2084, %v2081, %v2054
        %2087 = vset.pattern.permute.xlu0 48
        %2088 = vperm.xlu0 %2087, %v545
        %v2089 = vpop.permute.xlu0 %2088
        %2091 = vset.pattern.permute.xlu0 48
        %2092 = vperm.xlu0 %2091, %v546
        %v2093 = vpop.permute.xlu0 %2092
        %v2095 = vsel %vm2083, %v2089, %v2063
        %v2096 = vsel %vm2084, %v2093, %v2064
        %2097 = vset.pattern.permute.xlu0 47
        %2098 = vperm.xlu0 %2097, %v582
        %v2099 = vpop.permute.xlu0 %2098
        %2101 = vset.pattern.permute.xlu0 47
        %2102 = vperm.xlu0 %2101, %v584
        %v2103 = vpop.permute.xlu0 %2102
        %v2105 = vsel %vm2083, %v2099, %v2073
        %v2106 = vsel %vm2084, %v2103, %v2074
        %2107 = vset.pattern.permute.xlu0 48
        %2108 = vperm.xlu0 %2107, %v533
        %v2109 = vpop.permute.xlu0 %2108
        %2111 = vset.pattern.permute.xlu0 48
        %2112 = vperm.xlu0 %2111, %v534
        %v2113 = vpop.permute.xlu0 %2112
        %vm2115 = vcmp.le.f32.partialorder %v2109, %v431
        %vm2116 = vcmp.le.f32.partialorder %v2113, %v432
        %v2117 = vsel %vm2115, %v2109, %v2085
        %v2118 = vsel %vm2116, %v2113, %v2086
        %2119 = vset.pattern.permute.xlu0 49
        %2120 = vperm.xlu0 %2119, %v545
        %v2121 = vpop.permute.xlu0 %2120
        %2123 = vset.pattern.permute.xlu0 49
        %2124 = vperm.xlu0 %2123, %v546
        %v2125 = vpop.permute.xlu0 %2124
        %v2127 = vsel %vm2115, %v2121, %v2095
        %v2128 = vsel %vm2116, %v2125, %v2096
        %2129 = vset.pattern.permute.xlu0 48
        %2130 = vperm.xlu0 %2129, %v582
        %v2131 = vpop.permute.xlu0 %2130
        %2133 = vset.pattern.permute.xlu0 48
        %2134 = vperm.xlu0 %2133, %v584
        %v2135 = vpop.permute.xlu0 %2134
        %v2137 = vsel %vm2115, %v2131, %v2105
        %v2138 = vsel %vm2116, %v2135, %v2106
        %2139 = vset.pattern.permute.xlu0 49
        %2140 = vperm.xlu0 %2139, %v533
        %v2141 = vpop.permute.xlu0 %2140
        %2143 = vset.pattern.permute.xlu0 49
        %2144 = vperm.xlu0 %2143, %v534
        %v2145 = vpop.permute.xlu0 %2144
        %vm2147 = vcmp.le.f32.partialorder %v2141, %v431
        %vm2148 = vcmp.le.f32.partialorder %v2145, %v432
        %v2149 = vsel %vm2147, %v2141, %v2117
        %v2150 = vsel %vm2148, %v2145, %v2118
        %2151 = vset.pattern.permute.xlu0 50
        %2152 = vperm.xlu0 %2151, %v545
        %v2153 = vpop.permute.xlu0 %2152
        %2155 = vset.pattern.permute.xlu0 50
        %2156 = vperm.xlu0 %2155, %v546
        %v2157 = vpop.permute.xlu0 %2156
        %v2159 = vsel %vm2147, %v2153, %v2127
        %v2160 = vsel %vm2148, %v2157, %v2128
        %2161 = vset.pattern.permute.xlu0 49
        %2162 = vperm.xlu0 %2161, %v582
        %v2163 = vpop.permute.xlu0 %2162
        %2165 = vset.pattern.permute.xlu0 49
        %2166 = vperm.xlu0 %2165, %v584
        %v2167 = vpop.permute.xlu0 %2166
        %v2169 = vsel %vm2147, %v2163, %v2137
        %v2170 = vsel %vm2148, %v2167, %v2138
        %2171 = vset.pattern.permute.xlu0 50
        %2172 = vperm.xlu0 %2171, %v533
        %v2173 = vpop.permute.xlu0 %2172
        %2175 = vset.pattern.permute.xlu0 50
        %2176 = vperm.xlu0 %2175, %v534
        %v2177 = vpop.permute.xlu0 %2176
        %vm2179 = vcmp.le.f32.partialorder %v2173, %v431
        %vm2180 = vcmp.le.f32.partialorder %v2177, %v432
        %v2181 = vsel %vm2179, %v2173, %v2149
        %v2182 = vsel %vm2180, %v2177, %v2150
        %2183 = vset.pattern.permute.xlu0 51
        %2184 = vperm.xlu0 %2183, %v545
        %v2185 = vpop.permute.xlu0 %2184
        %2187 = vset.pattern.permute.xlu0 51
        %2188 = vperm.xlu0 %2187, %v546
        %v2189 = vpop.permute.xlu0 %2188
        %v2191 = vsel %vm2179, %v2185, %v2159
        %v2192 = vsel %vm2180, %v2189, %v2160
        %2193 = vset.pattern.permute.xlu0 50
        %2194 = vperm.xlu0 %2193, %v582
        %v2195 = vpop.permute.xlu0 %2194
        %2197 = vset.pattern.permute.xlu0 50
        %2198 = vperm.xlu0 %2197, %v584
        %v2199 = vpop.permute.xlu0 %2198
        %v2201 = vsel %vm2179, %v2195, %v2169
        %v2202 = vsel %vm2180, %v2199, %v2170
        %2203 = vset.pattern.permute.xlu0 51
        %2204 = vperm.xlu0 %2203, %v533
        %v2205 = vpop.permute.xlu0 %2204
        %2207 = vset.pattern.permute.xlu0 51
        %2208 = vperm.xlu0 %2207, %v534
        %v2209 = vpop.permute.xlu0 %2208
        %vm2211 = vcmp.le.f32.partialorder %v2205, %v431
        %vm2212 = vcmp.le.f32.partialorder %v2209, %v432
        %v2213 = vsel %vm2211, %v2205, %v2181
        %v2214 = vsel %vm2212, %v2209, %v2182
        %2215 = vset.pattern.permute.xlu0 52
        %2216 = vperm.xlu0 %2215, %v545
        %v2217 = vpop.permute.xlu0 %2216
        %2219 = vset.pattern.permute.xlu0 52
        %2220 = vperm.xlu0 %2219, %v546
        %v2221 = vpop.permute.xlu0 %2220
        %v2223 = vsel %vm2211, %v2217, %v2191
        %v2224 = vsel %vm2212, %v2221, %v2192
        %2225 = vset.pattern.permute.xlu0 51
        %2226 = vperm.xlu0 %2225, %v582
        %v2227 = vpop.permute.xlu0 %2226
        %2229 = vset.pattern.permute.xlu0 51
        %2230 = vperm.xlu0 %2229, %v584
        %v2231 = vpop.permute.xlu0 %2230
        %v2233 = vsel %vm2211, %v2227, %v2201
        %v2234 = vsel %vm2212, %v2231, %v2202
        %2235 = vset.pattern.permute.xlu0 52
        %2236 = vperm.xlu0 %2235, %v533
        %v2237 = vpop.permute.xlu0 %2236
        %2239 = vset.pattern.permute.xlu0 52
        %2240 = vperm.xlu0 %2239, %v534
        %v2241 = vpop.permute.xlu0 %2240
        %vm2243 = vcmp.le.f32.partialorder %v2237, %v431
        %vm2244 = vcmp.le.f32.partialorder %v2241, %v432
        %v2245 = vsel %vm2243, %v2237, %v2213
        %v2246 = vsel %vm2244, %v2241, %v2214
        %2247 = vset.pattern.permute.xlu0 53
        %2248 = vperm.xlu0 %2247, %v545
        %v2249 = vpop.permute.xlu0 %2248
        %2251 = vset.pattern.permute.xlu0 53
        %2252 = vperm.xlu0 %2251, %v546
        %v2253 = vpop.permute.xlu0 %2252
        %v2255 = vsel %vm2243, %v2249, %v2223
        %v2256 = vsel %vm2244, %v2253, %v2224
        %2257 = vset.pattern.permute.xlu0 52
        %2258 = vperm.xlu0 %2257, %v582
        %v2259 = vpop.permute.xlu0 %2258
        %2261 = vset.pattern.permute.xlu0 52
        %2262 = vperm.xlu0 %2261, %v584
        %v2263 = vpop.permute.xlu0 %2262
        %v2265 = vsel %vm2243, %v2259, %v2233
        %v2266 = vsel %vm2244, %v2263, %v2234
        %2267 = vset.pattern.permute.xlu0 53
        %2268 = vperm.xlu0 %2267, %v533
        %v2269 = vpop.permute.xlu0 %2268
        %2271 = vset.pattern.permute.xlu0 53
        %2272 = vperm.xlu0 %2271, %v534
        %v2273 = vpop.permute.xlu0 %2272
        %vm2275 = vcmp.le.f32.partialorder %v2269, %v431
        %vm2276 = vcmp.le.f32.partialorder %v2273, %v432
        %v2277 = vsel %vm2275, %v2269, %v2245
        %v2278 = vsel %vm2276, %v2273, %v2246
        %2279 = vset.pattern.permute.xlu0 54
        %2280 = vperm.xlu0 %2279, %v545
        %v2281 = vpop.permute.xlu0 %2280
        %2283 = vset.pattern.permute.xlu0 54
        %2284 = vperm.xlu0 %2283, %v546
        %v2285 = vpop.permute.xlu0 %2284
        %v2287 = vsel %vm2275, %v2281, %v2255
        %v2288 = vsel %vm2276, %v2285, %v2256
        %2289 = vset.pattern.permute.xlu0 53
        %2290 = vperm.xlu0 %2289, %v582
        %v2291 = vpop.permute.xlu0 %2290
        %2293 = vset.pattern.permute.xlu0 53
        %2294 = vperm.xlu0 %2293, %v584
        %v2295 = vpop.permute.xlu0 %2294
        %v2297 = vsel %vm2275, %v2291, %v2265
        %v2298 = vsel %vm2276, %v2295, %v2266
        %2299 = vset.pattern.permute.xlu0 54
        %2300 = vperm.xlu0 %2299, %v533
        %v2301 = vpop.permute.xlu0 %2300
        %2303 = vset.pattern.permute.xlu0 54
        %2304 = vperm.xlu0 %2303, %v534
        %v2305 = vpop.permute.xlu0 %2304
        %vm2307 = vcmp.le.f32.partialorder %v2301, %v431
        %vm2308 = vcmp.le.f32.partialorder %v2305, %v432
        %v2309 = vsel %vm2307, %v2301, %v2277
        %v2310 = vsel %vm2308, %v2305, %v2278
        %2311 = vset.pattern.permute.xlu0 55
        %2312 = vperm.xlu0 %2311, %v545
        %v2313 = vpop.permute.xlu0 %2312
        %2315 = vset.pattern.permute.xlu0 55
        %2316 = vperm.xlu0 %2315, %v546
        %v2317 = vpop.permute.xlu0 %2316
        %v2319 = vsel %vm2307, %v2313, %v2287
        %v2320 = vsel %vm2308, %v2317, %v2288
        %2321 = vset.pattern.permute.xlu0 54
        %2322 = vperm.xlu0 %2321, %v582
        %v2323 = vpop.permute.xlu0 %2322
        %2325 = vset.pattern.permute.xlu0 54
        %2326 = vperm.xlu0 %2325, %v584
        %v2327 = vpop.permute.xlu0 %2326
        %v2329 = vsel %vm2307, %v2323, %v2297
        %v2330 = vsel %vm2308, %v2327, %v2298
        %2331 = vset.pattern.permute.xlu0 55
        %2332 = vperm.xlu0 %2331, %v533
        %v2333 = vpop.permute.xlu0 %2332
        %2335 = vset.pattern.permute.xlu0 55
        %2336 = vperm.xlu0 %2335, %v534
        %v2337 = vpop.permute.xlu0 %2336
        %vm2339 = vcmp.le.f32.partialorder %v2333, %v431
        %vm2340 = vcmp.le.f32.partialorder %v2337, %v432
        %v2341 = vsel %vm2339, %v2333, %v2309
        %v2342 = vsel %vm2340, %v2337, %v2310
        %2343 = vset.pattern.permute.xlu0 56
        %2344 = vperm.xlu0 %2343, %v545
        %v2345 = vpop.permute.xlu0 %2344
        %2347 = vset.pattern.permute.xlu0 56
        %2348 = vperm.xlu0 %2347, %v546
        %v2349 = vpop.permute.xlu0 %2348
        %v2351 = vsel %vm2339, %v2345, %v2319
        %v2352 = vsel %vm2340, %v2349, %v2320
        %2353 = vset.pattern.permute.xlu0 55
        %2354 = vperm.xlu0 %2353, %v582
        %v2355 = vpop.permute.xlu0 %2354
        %2357 = vset.pattern.permute.xlu0 55
        %2358 = vperm.xlu0 %2357, %v584
        %v2359 = vpop.permute.xlu0 %2358
        %v2361 = vsel %vm2339, %v2355, %v2329
        %v2362 = vsel %vm2340, %v2359, %v2330
        %2363 = vset.pattern.permute.xlu0 56
        %2364 = vperm.xlu0 %2363, %v533
        %v2365 = vpop.permute.xlu0 %2364
        %2367 = vset.pattern.permute.xlu0 56
        %2368 = vperm.xlu0 %2367, %v534
        %v2369 = vpop.permute.xlu0 %2368
        %vm2371 = vcmp.le.f32.partialorder %v2365, %v431
        %vm2372 = vcmp.le.f32.partialorder %v2369, %v432
        %v2373 = vsel %vm2371, %v2365, %v2341
        %v2374 = vsel %vm2372, %v2369, %v2342
        %2375 = vset.pattern.permute.xlu0 57
        %2376 = vperm.xlu0 %2375, %v545
        %v2377 = vpop.permute.xlu0 %2376
        %2379 = vset.pattern.permute.xlu0 57
        %2380 = vperm.xlu0 %2379, %v546
        %v2381 = vpop.permute.xlu0 %2380
        %v2383 = vsel %vm2371, %v2377, %v2351
        %v2384 = vsel %vm2372, %v2381, %v2352
        %2385 = vset.pattern.permute.xlu0 56
        %2386 = vperm.xlu0 %2385, %v582
        %v2387 = vpop.permute.xlu0 %2386
        %2389 = vset.pattern.permute.xlu0 56
        %2390 = vperm.xlu0 %2389, %v584
        %v2391 = vpop.permute.xlu0 %2390
        %v2393 = vsel %vm2371, %v2387, %v2361
        %v2394 = vsel %vm2372, %v2391, %v2362
        %2395 = vset.pattern.permute.xlu0 57
        %2396 = vperm.xlu0 %2395, %v533
        %v2397 = vpop.permute.xlu0 %2396
        %2399 = vset.pattern.permute.xlu0 57
        %2400 = vperm.xlu0 %2399, %v534
        %v2401 = vpop.permute.xlu0 %2400
        %vm2403 = vcmp.le.f32.partialorder %v2397, %v431
        %vm2404 = vcmp.le.f32.partialorder %v2401, %v432
        %v2405 = vsel %vm2403, %v2397, %v2373
        %v2406 = vsel %vm2404, %v2401, %v2374
        %2407 = vset.pattern.permute.xlu0 58
        %2408 = vperm.xlu0 %2407, %v545
        %v2409 = vpop.permute.xlu0 %2408
        %2411 = vset.pattern.permute.xlu0 58
        %2412 = vperm.xlu0 %2411, %v546
        %v2413 = vpop.permute.xlu0 %2412
        %v2415 = vsel %vm2403, %v2409, %v2383
        %v2416 = vsel %vm2404, %v2413, %v2384
        %2417 = vset.pattern.permute.xlu0 57
        %2418 = vperm.xlu0 %2417, %v582
        %v2419 = vpop.permute.xlu0 %2418
        %2421 = vset.pattern.permute.xlu0 57
        %2422 = vperm.xlu0 %2421, %v584
        %v2423 = vpop.permute.xlu0 %2422
        %v2425 = vsel %vm2403, %v2419, %v2393
        %v2426 = vsel %vm2404, %v2423, %v2394
        %2427 = vset.pattern.permute.xlu0 58
        %2428 = vperm.xlu0 %2427, %v533
        %v2429 = vpop.permute.xlu0 %2428
        %2431 = vset.pattern.permute.xlu0 58
        %2432 = vperm.xlu0 %2431, %v534
        %v2433 = vpop.permute.xlu0 %2432
        %vm2435 = vcmp.le.f32.partialorder %v2429, %v431
        %vm2436 = vcmp.le.f32.partialorder %v2433, %v432
        %v2437 = vsel %vm2435, %v2429, %v2405
        %v2438 = vsel %vm2436, %v2433, %v2406
        %2439 = vset.pattern.permute.xlu0 59
        %2440 = vperm.xlu0 %2439, %v545
        %v2441 = vpop.permute.xlu0 %2440
        %2443 = vset.pattern.permute.xlu0 59
        %2444 = vperm.xlu0 %2443, %v546
        %v2445 = vpop.permute.xlu0 %2444
        %v2447 = vsel %vm2435, %v2441, %v2415
        %v2448 = vsel %vm2436, %v2445, %v2416
        %2449 = vset.pattern.permute.xlu0 58
        %2450 = vperm.xlu0 %2449, %v582
        %v2451 = vpop.permute.xlu0 %2450
        %2453 = vset.pattern.permute.xlu0 58
        %2454 = vperm.xlu0 %2453, %v584
        %v2455 = vpop.permute.xlu0 %2454
        %v2457 = vsel %vm2435, %v2451, %v2425
        %v2458 = vsel %vm2436, %v2455, %v2426
        %2459 = vset.pattern.permute.xlu0 59
        %2460 = vperm.xlu0 %2459, %v533
        %v2461 = vpop.permute.xlu0 %2460
        %2463 = vset.pattern.permute.xlu0 59
        %2464 = vperm.xlu0 %2463, %v534
        %v2465 = vpop.permute.xlu0 %2464
        %vm2467 = vcmp.le.f32.partialorder %v2461, %v431
        %vm2468 = vcmp.le.f32.partialorder %v2465, %v432
        %v2469 = vsel %vm2467, %v2461, %v2437
        %v2470 = vsel %vm2468, %v2465, %v2438
        %2471 = vset.pattern.permute.xlu0 60
        %2472 = vperm.xlu0 %2471, %v545
        %v2473 = vpop.permute.xlu0 %2472
        %2475 = vset.pattern.permute.xlu0 60
        %2476 = vperm.xlu0 %2475, %v546
        %v2477 = vpop.permute.xlu0 %2476
        %v2479 = vsel %vm2467, %v2473, %v2447
        %v2480 = vsel %vm2468, %v2477, %v2448
        %2481 = vset.pattern.permute.xlu0 59
        %2482 = vperm.xlu0 %2481, %v582
        %v2483 = vpop.permute.xlu0 %2482
        %2485 = vset.pattern.permute.xlu0 59
        %2486 = vperm.xlu0 %2485, %v584
        %v2487 = vpop.permute.xlu0 %2486
        %v2489 = vsel %vm2467, %v2483, %v2457
        %v2490 = vsel %vm2468, %v2487, %v2458
        %2491 = vset.pattern.permute.xlu0 60
        %2492 = vperm.xlu0 %2491, %v533
        %v2493 = vpop.permute.xlu0 %2492
        %2495 = vset.pattern.permute.xlu0 60
        %2496 = vperm.xlu0 %2495, %v534
        %v2497 = vpop.permute.xlu0 %2496
        %vm2499 = vcmp.le.f32.partialorder %v2493, %v431
        %vm2500 = vcmp.le.f32.partialorder %v2497, %v432
        %v2501 = vsel %vm2499, %v2493, %v2469
        %v2502 = vsel %vm2500, %v2497, %v2470
        %2503 = vset.pattern.permute.xlu0 61
        %2504 = vperm.xlu0 %2503, %v545
        %v2505 = vpop.permute.xlu0 %2504
        %2507 = vset.pattern.permute.xlu0 61
        %2508 = vperm.xlu0 %2507, %v546
        %v2509 = vpop.permute.xlu0 %2508
        %v2511 = vsel %vm2499, %v2505, %v2479
        %v2512 = vsel %vm2500, %v2509, %v2480
        %2513 = vset.pattern.permute.xlu0 60
        %2514 = vperm.xlu0 %2513, %v582
        %v2515 = vpop.permute.xlu0 %2514
        %2517 = vset.pattern.permute.xlu0 60
        %2518 = vperm.xlu0 %2517, %v584
        %v2519 = vpop.permute.xlu0 %2518
        %v2521 = vsel %vm2499, %v2515, %v2489
        %v2522 = vsel %vm2500, %v2519, %v2490
        %2523 = vset.pattern.permute.xlu0 61
        %2524 = vperm.xlu0 %2523, %v533
        %v2525 = vpop.permute.xlu0 %2524
        %2527 = vset.pattern.permute.xlu0 61
        %2528 = vperm.xlu0 %2527, %v534
        %v2529 = vpop.permute.xlu0 %2528
        %vm2531 = vcmp.le.f32.partialorder %v2525, %v431
        %vm2532 = vcmp.le.f32.partialorder %v2529, %v432
        %v2533 = vsel %vm2531, %v2525, %v2501
        %v2534 = vsel %vm2532, %v2529, %v2502
        %2535 = vset.pattern.permute.xlu0 62
        %2536 = vperm.xlu0 %2535, %v545
        %v2537 = vpop.permute.xlu0 %2536
        %2539 = vset.pattern.permute.xlu0 62
        %2540 = vperm.xlu0 %2539, %v546
        %v2541 = vpop.permute.xlu0 %2540
        %v2543 = vsel %vm2531, %v2537, %v2511
        %v2544 = vsel %vm2532, %v2541, %v2512
        %2545 = vset.pattern.permute.xlu0 61
        %2546 = vperm.xlu0 %2545, %v582
        %v2547 = vpop.permute.xlu0 %2546
        %2549 = vset.pattern.permute.xlu0 61
        %2550 = vperm.xlu0 %2549, %v584
        %v2551 = vpop.permute.xlu0 %2550
        %v2553 = vsel %vm2531, %v2547, %v2521
        %v2554 = vsel %vm2532, %v2551, %v2522
        %2555 = vset.pattern.permute.xlu0 62
        %2556 = vperm.xlu0 %2555, %v533
        %v2557 = vpop.permute.xlu0 %2556
        %2559 = vset.pattern.permute.xlu0 62
        %2560 = vperm.xlu0 %2559, %v534
        %v2561 = vpop.permute.xlu0 %2560
        %vm2563 = vcmp.le.f32.partialorder %v2557, %v431
        %vm2564 = vcmp.le.f32.partialorder %v2561, %v432
        %v2565 = vsel %vm2563, %v2557, %v2533
        %v2566 = vsel %vm2564, %v2561, %v2534
        %2567 = vset.pattern.permute.xlu0 63
        %2568 = vperm.xlu0 %2567, %v545
        %v2569 = vpop.permute.xlu0 %2568
        %2571 = vset.pattern.permute.xlu0 63
        %2572 = vperm.xlu0 %2571, %v546
        %v2573 = vpop.permute.xlu0 %2572
        %v2575 = vsel %vm2563, %v2569, %v2543
        %v2576 = vsel %vm2564, %v2573, %v2544
        %2577 = vset.pattern.permute.xlu0 62
        %2578 = vperm.xlu0 %2577, %v582
        %v2579 = vpop.permute.xlu0 %2578
        %2581 = vset.pattern.permute.xlu0 62
        %2582 = vperm.xlu0 %2581, %v584
        %v2583 = vpop.permute.xlu0 %2582
        %v2585 = vsel %vm2563, %v2579, %v2553
        %v2586 = vsel %vm2564, %v2583, %v2554
        %v2587 = vsub.f32 %v431, %v2565
        %v2588 = vsub.f32 %v432, %v2566
        %v2589 = vmul.f32 %v2587, %v2585
        %v2590 = vmul.f32 %v2588, %v2586
        %v2591 = vadd.f32 %v2575, %v2589
        %v2592 = vadd.f32 %v2576, %v2590
        %2595 = vrot.lane.b32.xlu0 %v2591, 64
        %v2596 = vpop.permute.xlu0 %2595
        %2597 = vrot.lane.b32.xlu0 %v2592, 64
        %v2598 = vpop.permute.xlu0 %2597
        %vm2601 = vcmask 523264
        %v2602 = vsel %vm2601, %v427, %v2596
        %v2603 = vsel %vm2601, %v428, %v2598
        %2604 = vrot.lane.b32.xlu0 %v2602, 64
        %v2605 = vpop.permute.xlu0 %2604
        %2606 = vrot.lane.b32.xlu0 %v2603, 64
        %v2607 = vpop.permute.xlu0 %2606
        %v2608 = vand.u32 %v469, 64
        %vm2609 = vcmp.eq.s32.totalorder %v2608, 0
        %v2610 = vmin.f32 %v2602, %v2605
        %v2611 = vmin.f32 %v2603, %v2607
        %v2612 = vmax.f32 %v2602, %v2605
        %v2613 = vmax.f32 %v2603, %v2607
        %v2614 = vsel %vm2609, %v2610, %v2612
        %v2615 = vsel %vm2609, %v2611, %v2613
        %2616 = vrot.lane.b32.xlu0 %v2614, 96
        %v2617 = vpop.permute.xlu0 %2616
        %2618 = vrot.lane.b32.xlu0 %v2615, 96
        %v2619 = vpop.permute.xlu0 %2618
        %2620 = vrot.lane.b32.xlu0 %v2614, 32
        %v2621 = vpop.permute.xlu0 %2620
        %2622 = vrot.lane.b32.xlu0 %v2615, 32
        %v2623 = vpop.permute.xlu0 %2622
        %v2624 = vand.u32 %v469, 32
        %vm2625 = vcmp.eq.s32.totalorder %v2624, 0
        %v2626 = vmin.f32 %v2614, %v2617
        %v2627 = vmin.f32 %v2615, %v2619
        %v2628 = vmax.f32 %v2614, %v2621
        %v2629 = vmax.f32 %v2615, %v2623
        %v2630 = vsel %vm2625, %v2626, %v2628
        %v2631 = vsel %vm2625, %v2627, %v2629
        %2632 = vrot.lane.b32.xlu0 %v2630, 112
        %v2633 = vpop.permute.xlu0 %2632
        %2634 = vrot.lane.b32.xlu0 %v2631, 112
        %v2635 = vpop.permute.xlu0 %2634
        %2636 = vrot.lane.b32.xlu0 %v2630, 16
        %v2637 = vpop.permute.xlu0 %2636
        %2638 = vrot.lane.b32.xlu0 %v2631, 16
        %v2639 = vpop.permute.xlu0 %2638
        %v2640 = vand.u32 %v469, 16
        %vm2641 = vcmp.eq.s32.totalorder %v2640, 0
        %v2642 = vmin.f32 %v2630, %v2633
        %v2643 = vmin.f32 %v2631, %v2635
        %v2644 = vmax.f32 %v2630, %v2637
        %v2645 = vmax.f32 %v2631, %v2639
        %v2646 = vsel %vm2641, %v2642, %v2644
        %v2647 = vsel %vm2641, %v2643, %v2645
        %2648 = vrot.lane.b32.xlu0 %v2646, 120
        %v2649 = vpop.permute.xlu0 %2648
        %2650 = vrot.lane.b32.xlu0 %v2647, 120
        %v2651 = vpop.permute.xlu0 %2650
        %2652 = vrot.lane.b32.xlu0 %v2646, 8
        %v2653 = vpop.permute.xlu0 %2652
        %2654 = vrot.lane.b32.xlu0 %v2647, 8
        %v2655 = vpop.permute.xlu0 %2654
        %v2656 = vand.u32 %v469, 8
        %vm2657 = vcmp.eq.s32.totalorder %v2656, 0
        %v2658 = vmin.f32 %v2646, %v2649
        %v2659 = vmin.f32 %v2647, %v2651
        %v2660 = vmax.f32 %v2646, %v2653
        %v2661 = vmax.f32 %v2647, %v2655
        %v2662 = vsel %vm2657, %v2658, %v2660
        %v2663 = vsel %vm2657, %v2659, %v2661
        %2664 = vrot.lane.b32.xlu0 %v2662, 124
        %v2665 = vpop.permute.xlu0 %2664
        %2666 = vrot.lane.b32.xlu0 %v2663, 124
        %v2667 = vpop.permute.xlu0 %2666
        %2668 = vrot.lane.b32.xlu0 %v2662, 4
        %v2669 = vpop.permute.xlu0 %2668
        %2670 = vrot.lane.b32.xlu0 %v2663, 4
        %v2671 = vpop.permute.xlu0 %2670
        %v2672 = vand.u32 %v469, 4
        %vm2673 = vcmp.eq.s32.totalorder %v2672, 0
        %v2674 = vmin.f32 %v2662, %v2665
        %v2675 = vmin.f32 %v2663, %v2667
        %v2676 = vmax.f32 %v2662, %v2669
        %v2677 = vmax.f32 %v2663, %v2671
        %v2678 = vsel %vm2673, %v2674, %v2676
        %v2679 = vsel %vm2673, %v2675, %v2677
        %2680 = vrot.lane.b32.xlu0 %v2678, 126
        %v2681 = vpop.permute.xlu0 %2680
        %2682 = vrot.lane.b32.xlu0 %v2679, 126
        %v2683 = vpop.permute.xlu0 %2682
        %2684 = vrot.lane.b32.xlu0 %v2678, 2
        %v2685 = vpop.permute.xlu0 %2684
        %2686 = vrot.lane.b32.xlu0 %v2679, 2
        %v2687 = vpop.permute.xlu0 %2686
        %v2688 = vand.u32 %v469, 2
        %vm2689 = vcmp.eq.s32.totalorder %v2688, 0
        %v2690 = vmin.f32 %v2678, %v2681
        %v2691 = vmin.f32 %v2679, %v2683
        %v2692 = vmax.f32 %v2678, %v2685
        %v2693 = vmax.f32 %v2679, %v2687
        %v2694 = vsel %vm2689, %v2690, %v2692
        %v2695 = vsel %vm2689, %v2691, %v2693
        %2696 = vrot.lane.b32.xlu0 %v2694, 127
        %v2697 = vpop.permute.xlu0 %2696
        %2698 = vrot.lane.b32.xlu0 %v2695, 127
        %v2699 = vpop.permute.xlu0 %2698
        %2700 = vrot.lane.b32.xlu0 %v2694, 1
        %v2701 = vpop.permute.xlu0 %2700
        %2702 = vrot.lane.b32.xlu0 %v2695, 1
        %v2703 = vpop.permute.xlu0 %2702
        %v2704 = vand.u32 %v469, 1
        %vm2705 = vcmp.eq.s32.totalorder %v2704, 0
        %v2706 = vmin.f32 %v2694, %v2697
        %v2707 = vmin.f32 %v2695, %v2699
        %v2708 = vmax.f32 %v2694, %v2701
        %v2709 = vmax.f32 %v2695, %v2703
        %v2710 = vsel %vm2705, %v2706, %v2708
        %v2711 = vsel %vm2705, %v2707, %v2709
        %2712 = vst [vmem:[%s383] sm:$0xff] %v2710
        %2713 = vst [vmem:[%s383 + $0x8] sm:$0xff] %v2711
        %2715 = vset.pattern.permute.xlu0 0
        %2716 = vperm.xlu0 %2715, %v433
        %v2717 = vpop.permute.xlu0 %2716
        %2720 = vset.pattern.permute.xlu0 0
        %2721 = vperm.xlu0 %2720, %v434
        %v2722 = vpop.permute.xlu0 %2721
        %v2724 = vmul.f32 %v2717, %v2710
        %v2725 = vmul.f32 %v2722, %v2711
        %2727 = vset.pattern.permute.xlu0 0
        %2728 = vperm.xlu0 %2727, %v435
        %v2729 = vpop.permute.xlu0 %2728
        %2732 = vset.pattern.permute.xlu0 0
        %2733 = vperm.xlu0 %2732, %v436
        %v2734 = vpop.permute.xlu0 %2733
        %v2736 = vadd.f32 %v2729, %v2724
        %v2737 = vadd.f32 %v2734, %v2725
        %2738 = vst [vmem:[%s376] sm:$0xff] %v2736
        %2739 = vst [vmem:[%s376 + $0x8] sm:$0xff] %v2737
        %2740 = vset.pattern.permute.xlu0 1
        %2741 = vperm.xlu0 %2740, %v433
        %v2742 = vpop.permute.xlu0 %2741
        %2744 = vset.pattern.permute.xlu0 1
        %2745 = vperm.xlu0 %2744, %v434
        %v2746 = vpop.permute.xlu0 %2745
        %v2748 = vmul.f32 %v2742, %v2710
        %v2749 = vmul.f32 %v2746, %v2711
        %2750 = vset.pattern.permute.xlu0 1
        %2751 = vperm.xlu0 %2750, %v435
        %v2752 = vpop.permute.xlu0 %2751
        %2754 = vset.pattern.permute.xlu0 1
        %2755 = vperm.xlu0 %2754, %v436
        %v2756 = vpop.permute.xlu0 %2755
        %v2758 = vadd.f32 %v2752, %v2748
        %v2759 = vadd.f32 %v2756, %v2749
        %s2760 = scalar_lea.vmem %s376, 16 [#allocation5]
        %2761 = vst [vmem:[%s2760] sm:$0xff] %v2758
        %2762 = vst [vmem:[%s2760 + $0x8] sm:$0xff] %v2759
        %2763 = vset.pattern.permute.xlu0 2
        %2764 = vperm.xlu0 %2763, %v433
        %v2765 = vpop.permute.xlu0 %2764
        %2767 = vset.pattern.permute.xlu0 2
        %2768 = vperm.xlu0 %2767, %v434
        %v2769 = vpop.permute.xlu0 %2768
        %v2771 = vmul.f32 %v2765, %v2710
        %v2772 = vmul.f32 %v2769, %v2711
        %2773 = vset.pattern.permute.xlu0 2
        %2774 = vperm.xlu0 %2773, %v435
        %v2775 = vpop.permute.xlu0 %2774
        %2777 = vset.pattern.permute.xlu0 2
        %2778 = vperm.xlu0 %2777, %v436
        %v2779 = vpop.permute.xlu0 %2778
        %v2781 = vadd.f32 %v2775, %v2771
        %v2782 = vadd.f32 %v2779, %v2772
        %s2783 = scalar_lea.vmem %s376, 32 [#allocation5]
        %2784 = vst [vmem:[%s2783] sm:$0xff] %v2781
        %2785 = vst [vmem:[%s2783 + $0x8] sm:$0xff] %v2782
        %s2786 = sand.u32 %s185, 1
        %s2787 = scalar_lea.sflag [#allocation4], %s2786
        %s2788 = sand.u32 %s185, 1
        %s2789 = smul.addr %s2788, 48
        %s2790 = scalar_lea.vmem [#allocation5], %s2789
        %s2791 = sand.u32 %s213, 1
        %s2792 = scalar_lea.sflag [#allocation7], %s2791
        %s2793 = sand.u32 %s213, 1
        %s2794 = smul.addr %s2793, 16
        %s2795 = scalar_lea.vmem [#allocation6], %s2794
        // Predicated region
        $region45: #{tpu_custom_call.1} parent=39 // pred_check
          %p2796 = pneg %p195
        $region46: #{tpu_custom_call.1} parent=39 // pred_check_branch
          %2798 = sbr.rel (%p2796) target = $region48
        $region47: #{tpu_custom_call.1} parent=39 // pred_region
          %s2799 = smul.u32 2, %s29
          %s2801 = ssub.s32 768, 768
          %2802 = vsyncadd %s2787, %s2801
          %s2803 = smul.addr %s30, 6
          %s2804 = sadd.s32 %s2799, %s2803
          %s2805 = smul.addr %s2804, 128
          %s2806 = scalar_lea.hbm %s5, %s2805
          %s2807 = sshll.u32 %s2790, 4
          %s2808 = int_to_ptr.vmem [resolvable:$true] %s2807
          %2813 = dma.vmem_to_hbm [thread:$0]  %s2808, 768, %s2806, %s2787, 128, 128, 8
        $region48: #{tpu_custom_call.1} parent=39 // pred_fallthru
          _
        // Predicated region
        $region49: #{tpu_custom_call.1} parent=39 // pred_check
          %p2814 = pneg %p223
        $region50: #{tpu_custom_call.1} parent=39 // pred_check_branch
          %2816 = sbr.rel (%p2814) target = $region52
        $region51: #{tpu_custom_call.1} parent=39 // pred_region
          %s2817 = smul.u32 2, %s29
          %s2819 = ssub.s32 256, 256
          %2820 = vsyncadd %s2792, %s2819
          %s2821 = smul.addr %s30, 2
          %s2822 = sadd.s32 %s2817, %s2821
          %s2823 = smul.addr %s2822, 128
          %s2824 = scalar_lea.hbm %s6, %s2823
          %s2825 = sshll.u32 %s2795, 4
          %s2826 = int_to_ptr.vmem [resolvable:$true] %s2825
          %2831 = dma.vmem_to_hbm [thread:$0]  %s2826, 256, %s2824, %s2792, 128, 128, 8
        $region52: #{tpu_custom_call.1} parent=39 // pred_fallthru
          _
      $region40: #{tpu_custom_call.1} parent=5 // pred_fallthru
        _
      %p2832 = scmp.le.s32.totalorder 2, %s20
      // Predicated region
      $region53: #{tpu_custom_call.1} parent=5 // pred_check
        %p2833 = pneg %p2832
      $region54: #{tpu_custom_call.1} parent=5 // pred_check_branch
        %2835 = sbr.rel (%p2833) target = $region56
      $region55: #{tpu_custom_call.1} parent=5 // pred_region
        %s2836 = ssub.s32 %s20, 2
        // Predicated region
        $region57: #{tpu_custom_call.1} parent=55 // pred_check
          %p2837 = pneg %p201
        $region58: #{tpu_custom_call.1} parent=55 // pred_check_branch
          %2839 = sbr.rel (%p2837) target = $region60
        $region59: #{tpu_custom_call.1} parent=55 // pred_region
          %s2840 = sand.u32 %s186, 1
          %s2841 = scalar_lea.sflag [#allocation4], %s2840
          %s2842 = sand.u32 %s186, 1
          %s2843 = smul.addr %s2842, 48
          %s2844 = scalar_lea.vmem [#allocation5], %s2843
          %2845 = dma.done %s2841, 768
        $region60: #{tpu_custom_call.1} parent=55 // pred_fallthru
          _
        // Predicated region
        $region61: #{tpu_custom_call.1} parent=55 // pred_check
          %p2846 = pneg %p229
        $region62: #{tpu_custom_call.1} parent=55 // pred_check_branch
          %2848 = sbr.rel (%p2846) target = $region64
        $region63: #{tpu_custom_call.1} parent=55 // pred_region
          %s2849 = sand.u32 %s214, 1
          %s2850 = scalar_lea.sflag [#allocation7], %s2849
          %s2851 = sand.u32 %s214, 1
          %s2852 = smul.addr %s2851, 16
          %s2853 = scalar_lea.vmem [#allocation6], %s2852
          %2854 = dma.done %s2850, 256
        $region64: #{tpu_custom_call.1} parent=55 // pred_fallthru
          _
      $region56: #{tpu_custom_call.1} parent=5 // pred_fallthru
        _
    $region6: #{tpu_custom_call.1} parent=1 // loop_footer
      %s24 = sadd.s32 1, %s20
    $region7: #{tpu_custom_call.1} parent=1 // loop_footer_branch
      %19 = sbr.rel target = $region3
    $region8: #{tpu_custom_call.1} parent=1 // loop_exit
      _
    %2855 = vsyncpa [#allocation3], 1
    %s2856 = scalar_lea.sflag [#allocation3], 1
    %2857 = vsyncpa %s2856, 1
    %2858 = vsyncpa [#allocation4], 1
    %s2859 = scalar_lea.sflag [#allocation4], 1
    %2860 = vsyncpa %s2859, 1
    %2861 = vsyncpa [#allocation7], 1
    %s2862 = scalar_lea.sflag [#allocation7], 1
    %2863 = vsyncpa %s2862, 1

</llo_original>
